<compile_context>
chip_gen: v5e
topology: v5e:2x2
jax: 0.10.0
libtpu: 0.0.40
codegen_flags: <defaults>
</compile_context>

<pallas_src>
import functools

import jax
import jax.numpy as jnp
from jax import lax
from jax.experimental import pallas as pl
from jax.experimental.pallas import tpu as pltpu


def _round_up(x, m):
    return (x + m - 1) // m * m


def _bottleneck_kernel(x_ref, mask_ref, w1_ref, b1_ref, w2_ref, b2_ref,
                       w3_ref, b3_ref, o_ref, h1_buf, *, npad, margin, wp):
    cp = w1_ref.shape[1]

    # Zero only the halo margins of the scratch (the npad interior rows are
    # fully overwritten every grid step).
    h1_buf[:margin, :] = jnp.zeros((margin, cp), jnp.bfloat16)
    h1_buf[margin + npad:, :] = jnp.zeros((margin, cp), jnp.bfloat16)

    # ---- conv1 (1x1, BN scale folded into weights) + bias + ReLU ----------
    x_bf16 = x_ref[0].astype(jnp.bfloat16)                       # (npad, Ccp)
    h1 = jnp.dot(x_bf16, w1_ref[...], preferred_element_type=jnp.float32)
    h1 = jnp.maximum(h1 + b1_ref[...], 0.0)
    h1 = h1 * mask_ref[...]           # zero the spatial halo => zero padding
    h1_buf[margin:margin + npad, :] = h1.astype(jnp.bfloat16)

    # ---- conv2 (3x3, stride=1, pad=1): one big-K matmul over 9 windows ----
    taps = []
    for kh in range(3):
        for kw in range(3):
            start = margin + (kh - 1) * wp + (kw - 1)
            taps.append(h1_buf[start:start + npad, :])
    im2col = jnp.concatenate(taps, axis=1)                       # (npad, 9*Cp)
    h2 = jnp.dot(im2col, w2_ref[...], preferred_element_type=jnp.float32)
    h2 = jnp.maximum(h2 + b2_ref[...], 0.0)

    # ---- conv3 (1x1, BN scale folded) + bias -------------------------------
    h3 = jnp.dot(h2.astype(jnp.bfloat16), w3_ref[...],
                 preferred_element_type=jnp.float32)
    h3 = h3 + b3_ref[...]

    # ---- residual add (identity = x; re-read the resident block) + ReLU ---
    o_ref[0] = jnp.maximum(h3 + x_ref[0], 0.0).astype(o_ref.dtype)


def conv_block(x_nchw, w1, b1, w2, b2, w3, b3):
    """x_nchw: (N, Cin, H, W) f32; weights already folded / padded / bf16."""
    N, C, H, W = x_nchw.shape
    ccp, cp = w1.shape                     # padded in/out channels, padded P
    hp, wp = H + 2, W + 2
    npad = hp * wp
    margin = _round_up(wp + 1, 16)         # aligned scratch margin (>= wp+1)

    # NCHW -> NHWC, zero-pad the spatial halo (for the 3x3 conv) and the
    # channel dim up to a lane multiple, then flatten (H+2)*(W+2) so the
    # kernel works on a lane-dense (npad, Ccp) slab.
    x = jnp.transpose(x_nchw, (0, 2, 3, 1))
    x = jnp.pad(x, ((0, 0), (1, 1), (1, 1), (0, ccp - C)))
    x = x.reshape(N, npad, ccp)

    # interior mask over the padded flat grid (1.0 inside, 0.0 on the halo)
    row = jnp.arange(hp)[:, None]
    col = jnp.arange(wp)[None, :]
    inside = (row >= 1) & (row <= H) & (col >= 1) & (col <= W)
    mask = inside.astype(jnp.float32).reshape(npad, 1)

    kernel = functools.partial(_bottleneck_kernel,
                               npad=npad, margin=margin, wp=wp)

    out = pl.pallas_call(
        kernel,
        out_shape=jax.ShapeDtypeStruct((N, npad, ccp), x_nchw.dtype),
        grid_spec=pltpu.PrefetchScalarGridSpec(
            num_scalar_prefetch=0,
            grid=(N,),
            in_specs=[
                pl.BlockSpec((1, npad, ccp), lambda n: (n, 0, 0)),   # x
                pl.BlockSpec((npad, 1), lambda n: (0, 0)),           # mask
                pl.BlockSpec((ccp, cp), lambda n: (0, 0)),           # w1
                pl.BlockSpec((1, cp), lambda n: (0, 0)),             # b1
                pl.BlockSpec((9 * cp, cp), lambda n: (0, 0)),        # w2
                pl.BlockSpec((1, cp), lambda n: (0, 0)),             # b2
                pl.BlockSpec((cp, ccp), lambda n: (0, 0)),           # w3
                pl.BlockSpec((1, ccp), lambda n: (0, 0)),            # b3
            ],
            out_specs=pl.BlockSpec((1, npad, ccp), lambda n: (n, 0, 0)),
            scratch_shapes=[
                pltpu.VMEM((npad + 2 * margin, cp), jnp.bfloat16),
            ],
        ),
        compiler_params=pltpu.CompilerParams(
            dimension_semantics=("parallel",)),
    )(x, mask, w1, b1, w2, b2, w3, b3)

    out = out.reshape(N, hp, wp, ccp)[:, 1:H + 1, 1:W + 1, :C]
    return jnp.transpose(out, (0, 3, 1, 2))                       # -> NCHW


# ------------------------- parameter setup (glue) ---------------------------

def make_params(key, inplanes, planes, expansion=4, eps=1e-5):
    P = planes
    Cout = planes * expansion
    assert inplanes == Cout, "identity residual requires inplanes == planes*4"
    ks = jax.random.split(key, 6)

    # PyTorch-layout conv weights (OIHW), deterministic init
    w1_t = 0.1 * jax.random.normal(ks[0], (P, inplanes, 1, 1), jnp.float32)
    w2_t = 0.1 * jax.random.normal(ks[1], (P, P, 3, 3), jnp.float32)
    w3_t = 0.1 * jax.random.normal(ks[2], (Cout, P, 1, 1), jnp.float32)

    def bn_fold(k, c):
        kg, kb, km, kv = jax.random.split(k, 4)
        gamma = 1.0 + 0.1 * jax.random.normal(kg, (c,), jnp.float32)
        beta = 0.1 * jax.random.normal(kb, (c,), jnp.float32)
        mean = 0.1 * jax.random.normal(km, (c,), jnp.float32)
        var = jnp.abs(jax.random.normal(kv, (c,), jnp.float32)) + 0.5
        scale = gamma / jnp.sqrt(var + eps)
        bias = beta - mean * scale
        return scale, bias

    s1, b1 = bn_fold(ks[3], P)
    s2, b2 = bn_fold(ks[4], P)
    s3, b3 = bn_fold(ks[5], Cout)

    cp = _round_up(P, 128)        # padded bottleneck width
    ccp = _round_up(Cout, 128)    # padded in/out channels

    # BN scales folded into the conv weights, zero-padded to lane multiples,
    # cast to bf16 (f32 accumulation happens on the MXU).
    w1_f = jnp.transpose(w1_t[:, :, 0, 0], (1, 0)) * s1[None, :]      # (Cin,P)
    w1_k = jnp.zeros((ccp, cp), jnp.float32).at[:inplanes, :P].set(w1_f)

    w2_f = jnp.transpose(w2_t, (2, 3, 1, 0)) * s2[None, None, None, :]  # (3,3,I,O)
    w2_k = (jnp.zeros((3, 3, cp, cp), jnp.float32)
            .at[:, :, :P, :P].set(w2_f)).reshape(9 * cp, cp)

    w3_f = jnp.transpose(w3_t[:, :, 0, 0], (1, 0)) * s3[None, :]      # (P,Cout)
    w3_k = jnp.zeros((cp, ccp), jnp.float32).at[:P, :Cout].set(w3_f)

    b1_k = jnp.zeros((1, cp), jnp.float32).at[0, :P].set(b1)
    b2_k = jnp.zeros((1, cp), jnp.float32).at[0, :P].set(b2)
    b3_k = jnp.zeros((1, ccp), jnp.float32).at[0, :Cout].set(b3)

    pytorch_params = (w1_t, s1, b1, w2_t, s2, b2, w3_t, s3, b3)
    kernel_params = (w1_k.astype(jnp.bfloat16), b1_k,
                     w2_k.astype(jnp.bfloat16), b2_k,
                     w3_k.astype(jnp.bfloat16), b3_k)
    return pytorch_params, kernel_params


def ref_forward(x, w1_t, s1, b1, w2_t, s2, b2, w3_t, s3, b3):
    """Pure-JAX NCHW f32 reference matching the PyTorch forward (eval BN)."""
    dn = ('NCHW', 'OIHW', 'NCHW')

    def bn(y, s, b):
        return y * s[None, :, None, None] + b[None, :, None, None]

    out = lax.conv_general_dilated(x, w1_t, (1, 1), 'VALID', dimension_numbers=dn)
    out = jnp.maximum(bn(out, s1, b1), 0.0)
    out = lax.conv_general_dilated(out, w2_t, (1, 1), ((1, 1), (1, 1)),
                                   dimension_numbers=dn)
    out = jnp.maximum(bn(out, s2, b2), 0.0)
    out = lax.conv_general_dilated(out, w3_t, (1, 1), 'VALID', dimension_numbers=dn)
    out = bn(out, s3, b3)
    return jnp.maximum(out + x, 0.0)


if __name__ == "__main__":
    key = jax.random.PRNGKey(0)
    kx, kp = jax.random.split(key)

    planes = 4
    inplanes = planes * 4        # expansion = 4, so identity add is valid
    N, H, W = 2, 16, 16

    x = jax.random.normal(kx, (N, inplanes, H, W), jnp.float32)
    pytorch_params, kernel_params = make_params(kp, inplanes, planes)

    out = conv_block(x, *kernel_params)
    out = jax.block_until_ready(out)

    ref = ref_forward(x, *pytorch_params)
    ref = jax.block_until_ready(ref)

    assert out.shape == (N, planes * 4, H, W)
    # bf16 MXU operands (f32 accumulate) => loosened tolerance vs f32 reference
    assert jnp.allclose(out, ref, rtol=2e-2, atol=2e-2), \
        f"max abs diff {jnp.max(jnp.abs(out - ref))}"

    print("KERNEL_OK")
</pallas_src>

<mosaic_0001>
module attributes {stable_mosaic.version = 11 : i64} {
  func.func @_bottleneck_kernel(%arg0: i32, %arg1: memref<1x324x128xf32, #tpu.memory_space<vmem>>, %arg2: memref<324x1xf32, #tpu.memory_space<vmem>>, %arg3: memref<128x128xbf16, #tpu.memory_space<vmem>>, %arg4: memref<1x128xf32, #tpu.memory_space<vmem>>, %arg5: memref<1152x128xbf16, #tpu.memory_space<vmem>>, %arg6: memref<1x128xf32, #tpu.memory_space<vmem>>, %arg7: memref<128x128xbf16, #tpu.memory_space<vmem>>, %arg8: memref<1x128xf32, #tpu.memory_space<vmem>>, %arg9: memref<1x324x128xf32, #tpu.memory_space<vmem>>, %arg10: memref<388x128xbf16, #tpu.memory_space<vmem>>) attributes {dimension_semantics = [#tpu.dimension_semantics<parallel>], iteration_bounds = array<i64: 2>, scalar_prefetch = 0 : i64, scratch_operands = 1 : i64, tpu.core_type = #tpu.core_type<tc>, window_params = [{transform_indices = @transform_0, window_bounds = array<i64: 1, 324, 128>}, {pipeline_mode = #tpu.pipeline_mode<synchronous>, transform_indices = @transform_1, window_bounds = array<i64: 324, 1>}, {pipeline_mode = #tpu.pipeline_mode<synchronous>, transform_indices = @transform_2, window_bounds = array<i64: 128, 128>}, {pipeline_mode = #tpu.pipeline_mode<synchronous>, transform_indices = @transform_3, window_bounds = array<i64: 1, 128>}, {pipeline_mode = #tpu.pipeline_mode<synchronous>, transform_indices = @transform_4, window_bounds = array<i64: 1152, 128>}, {pipeline_mode = #tpu.pipeline_mode<synchronous>, transform_indices = @transform_5, window_bounds = array<i64: 1, 128>}, {pipeline_mode = #tpu.pipeline_mode<synchronous>, transform_indices = @transform_6, window_bounds = array<i64: 128, 128>}, {pipeline_mode = #tpu.pipeline_mode<synchronous>, transform_indices = @transform_7, window_bounds = array<i64: 1, 128>}, {transform_indices = @transform_8, window_bounds = array<i64: 1, 324, 128>}]} {
    %cst = arith.constant 0.000000e+00 : bf16
    %0 = vector.broadcast %cst : bf16 to vector<32x128xbf16>
    %c0 = arith.constant 0 : index
    %c0_0 = arith.constant 0 : index
    %1 = vector.load %arg10[%c0, %c0_0] : memref<388x128xbf16, #tpu.memory_space<vmem>>, vector<32x128xbf16>
    tpu.vector_store %arg10[%c0, %c0_0], %0 {strides = array<i32>} : memref<388x128xbf16, #tpu.memory_space<vmem>>, vector<32x128xbf16>,
    %cst_1 = arith.constant 0.000000e+00 : bf16
    %2 = vector.broadcast %cst_1 : bf16 to vector<32x128xbf16>
    %c356 = arith.constant 356 : index
    %c0_2 = arith.constant 0 : index
    %3 = vector.load %arg10[%c356, %c0_2] : memref<388x128xbf16, #tpu.memory_space<vmem>>, vector<32x128xbf16>
    tpu.vector_store %arg10[%c356, %c0_2], %2 {strides = array<i32>} : memref<388x128xbf16, #tpu.memory_space<vmem>>, vector<32x128xbf16>,
    %c0_3 = arith.constant 0 : index
    %c0_4 = arith.constant 0 : index
    %c0_5 = arith.constant 0 : index
    %4 = vector.load %arg1[%c0_3, %c0_4, %c0_5] : memref<1x324x128xf32, #tpu.memory_space<vmem>>, vector<1x324x128xf32>
    %5 = vector.shape_cast %4 : vector<1x324x128xf32> to vector<324x128xf32>
    %6 = arith.truncf %5 : vector<324x128xf32> to vector<324x128xbf16>
    %c0_6 = arith.constant 0 : index
    %c0_7 = arith.constant 0 : index
    %7 = vector.load %arg3[%c0_6, %c0_7] : memref<128x128xbf16, #tpu.memory_space<vmem>>, vector<128x128xbf16>
    %cst_8 = arith.constant dense<0.000000e+00> : vector<324x128xf32>
    %8 = tpu.matmul %6, %7, %cst_8 {dimension_numbers = #tpu.dot_dimension_numbers<[1], [0], [0], [1], [0, 0, 1, 1], [], []>} : vector<324x128xbf16>, vector<128x128xbf16>, vector<324x128xf32> -> vector<324x128xf32>
    %c0_9 = arith.constant 0 : index
    %c0_10 = arith.constant 0 : index
    %9 = vector.load %arg4[%c0_9, %c0_10] : memref<1x128xf32, #tpu.memory_space<vmem>>, vector<1x128xf32>
    %10 = vector.broadcast %9 : vector<1x128xf32> to vector<324x128xf32>
    %11 = arith.addf %8, %10 : vector<324x128xf32>
    %cst_11 = arith.constant 0.000000e+00 : f32
    %12 = vector.broadcast %cst_11 : f32 to vector<324x128xf32>
    %13 = arith.maximumf %11, %12 : vector<324x128xf32>
    %c0_12 = arith.constant 0 : index
    %c0_13 = arith.constant 0 : index
    %14 = vector.load %arg2[%c0_12, %c0_13] : memref<324x1xf32, #tpu.memory_space<vmem>>, vector<324x1xf32>
    %15 = vector.broadcast %14 : vector<324x1xf32> to vector<324x128xf32>
    %16 = arith.mulf %13, %15 : vector<324x128xf32>
    %17 = arith.truncf %16 : vector<324x128xf32> to vector<324x128xbf16>
    %c32 = arith.constant 32 : index
    %c0_14 = arith.constant 0 : index
    %18 = vector.load %arg10[%c32, %c0_14] : memref<388x128xbf16, #tpu.memory_space<vmem>>, vector<324x128xbf16>
    tpu.vector_store %arg10[%c32, %c0_14], %17 {strides = array<i32>} : memref<388x128xbf16, #tpu.memory_space<vmem>>, vector<324x128xbf16>,
    %c13 = arith.constant 13 : index
    %c0_15 = arith.constant 0 : index
    %19 = vector.load %arg10[%c13, %c0_15] : memref<388x128xbf16, #tpu.memory_space<vmem>>, vector<324x128xbf16>
    %c14 = arith.constant 14 : index
    %c0_16 = arith.constant 0 : index
    %20 = vector.load %arg10[%c14, %c0_16] : memref<388x128xbf16, #tpu.memory_space<vmem>>, vector<324x128xbf16>
    %c15 = arith.constant 15 : index
    %c0_17 = arith.constant 0 : index
    %21 = vector.load %arg10[%c15, %c0_17] : memref<388x128xbf16, #tpu.memory_space<vmem>>, vector<324x128xbf16>
    %c31 = arith.constant 31 : index
    %c0_18 = arith.constant 0 : index
    %22 = vector.load %arg10[%c31, %c0_18] : memref<388x128xbf16, #tpu.memory_space<vmem>>, vector<324x128xbf16>
    %c32_19 = arith.constant 32 : index
    %c0_20 = arith.constant 0 : index
    %23 = vector.load %arg10[%c32_19, %c0_20] : memref<388x128xbf16, #tpu.memory_space<vmem>>, vector<324x128xbf16>
    %c33 = arith.constant 33 : index
    %c0_21 = arith.constant 0 : index
    %24 = vector.load %arg10[%c33, %c0_21] : memref<388x128xbf16, #tpu.memory_space<vmem>>, vector<324x128xbf16>
    %c49 = arith.constant 49 : index
    %c0_22 = arith.constant 0 : index
    %25 = vector.load %arg10[%c49, %c0_22] : memref<388x128xbf16, #tpu.memory_space<vmem>>, vector<324x128xbf16>
    %c50 = arith.constant 50 : index
    %c0_23 = arith.constant 0 : index
    %26 = vector.load %arg10[%c50, %c0_23] : memref<388x128xbf16, #tpu.memory_space<vmem>>, vector<324x128xbf16>
    %c51 = arith.constant 51 : index
    %c0_24 = arith.constant 0 : index
    %27 = vector.load %arg10[%c51, %c0_24] : memref<388x128xbf16, #tpu.memory_space<vmem>>, vector<324x128xbf16>
    %28 = tpu.concatenate %19, %20, %21, %22, %23, %24, %25, %26, %27 in 1 : vector<324x128xbf16>, vector<324x128xbf16>, vector<324x128xbf16>, vector<324x128xbf16>, vector<324x128xbf16>, vector<324x128xbf16>, vector<324x128xbf16>, vector<324x128xbf16>, vector<324x128xbf16> -> vector<324x1152xbf16>
    %c0_25 = arith.constant 0 : index
    %c0_26 = arith.constant 0 : index
    %29 = vector.load %arg5[%c0_25, %c0_26] : memref<1152x128xbf16, #tpu.memory_space<vmem>>, vector<1152x128xbf16>
    %cst_27 = arith.constant dense<0.000000e+00> : vector<324x128xf32>
    %30 = tpu.matmul %28, %29, %cst_27 {dimension_numbers = #tpu.dot_dimension_numbers<[1], [0], [0], [1], [0, 0, 1, 1], [], []>} : vector<324x1152xbf16>, vector<1152x128xbf16>, vector<324x128xf32> -> vector<324x128xf32>
    %c0_28 = arith.constant 0 : index
    %c0_29 = arith.constant 0 : index
    %31 = vector.load %arg6[%c0_28, %c0_29] : memref<1x128xf32, #tpu.memory_space<vmem>>, vector<1x128xf32>
    %32 = vector.broadcast %31 : vector<1x128xf32> to vector<324x128xf32>
    %33 = arith.addf %30, %32 : vector<324x128xf32>
    %cst_30 = arith.constant 0.000000e+00 : f32
    %34 = vector.broadcast %cst_30 : f32 to vector<324x128xf32>
    %35 = arith.maximumf %33, %34 : vector<324x128xf32>
    %36 = arith.truncf %35 : vector<324x128xf32> to vector<324x128xbf16>
    %c0_31 = arith.constant 0 : index
    %c0_32 = arith.constant 0 : index
    %37 = vector.load %arg7[%c0_31, %c0_32] : memref<128x128xbf16, #tpu.memory_space<vmem>>, vector<128x128xbf16>
    %cst_33 = arith.constant dense<0.000000e+00> : vector<324x128xf32>
    %38 = tpu.matmul %36, %37, %cst_33 {dimension_numbers = #tpu.dot_dimension_numbers<[1], [0], [0], [1], [0, 0, 1, 1], [], []>} : vector<324x128xbf16>, vector<128x128xbf16>, vector<324x128xf32> -> vector<324x128xf32>
    %c0_34 = arith.constant 0 : index
    %c0_35 = arith.constant 0 : index
    %39 = vector.load %arg8[%c0_34, %c0_35] : memref<1x128xf32, #tpu.memory_space<vmem>>, vector<1x128xf32>
    %40 = vector.broadcast %39 : vector<1x128xf32> to vector<324x128xf32>
    %41 = arith.addf %38, %40 : vector<324x128xf32>
    %c0_36 = arith.constant 0 : index
    %c0_37 = arith.constant 0 : index
    %c0_38 = arith.constant 0 : index
    %42 = vector.load %arg1[%c0_36, %c0_37, %c0_38] : memref<1x324x128xf32, #tpu.memory_space<vmem>>, vector<1x324x128xf32>
    %43 = vector.shape_cast %42 : vector<1x324x128xf32> to vector<324x128xf32>
    %44 = arith.addf %41, %43 : vector<324x128xf32>
    %cst_39 = arith.constant 0.000000e+00 : f32
    %45 = vector.broadcast %cst_39 : f32 to vector<324x128xf32>
    %46 = arith.maximumf %44, %45 : vector<324x128xf32>
    %c0_40 = arith.constant 0 : index
    %c0_41 = arith.constant 0 : index
    %c0_42 = arith.constant 0 : index
    %47 = vector.load %arg9[%c0_40, %c0_41, %c0_42] : memref<1x324x128xf32, #tpu.memory_space<vmem>>, vector<1x324x128xf32>
    %48 = vector.shape_cast %47 : vector<1x324x128xf32> to vector<324x128xf32>
    %49 = vector.shape_cast %46 : vector<324x128xf32> to vector<1x324x128xf32>
    tpu.vector_store %arg9[%c0_40, %c0_41, %c0_42], %49 {strides = array<i32>} : memref<1x324x128xf32, #tpu.memory_space<vmem>>, vector<1x324x128xf32>,
    return
  }
  func.func @transform_0(%arg0: i32) -> (i32, i32, i32) {
    %c0_i32 = arith.constant 0 : i32
    %c0_i32_0 = arith.constant 0 : i32
    %c0_i32_1 = arith.constant 0 : i32
    return %arg0, %c0_i32, %c0_i32_0 : i32, i32, i32
  }
  func.func @transform_1(%arg0: i32) -> (i32, i32) {
    %c0_i32 = arith.constant 0 : i32
    %c0_i32_0 = arith.constant 0 : i32
    %c0_i32_1 = arith.constant 0 : i32
    return %c0_i32, %c0_i32_0 : i32, i32
  }
  func.func @transform_2(%arg0: i32) -> (i32, i32) {
    %c0_i32 = arith.constant 0 : i32
    %c0_i32_0 = arith.constant 0 : i32
    %c0_i32_1 = arith.constant 0 : i32
    return %c0_i32, %c0_i32_0 : i32, i32
  }
  func.func @transform_3(%arg0: i32) -> (i32, i32) {
    %c0_i32 = arith.constant 0 : i32
    %c0_i32_0 = arith.constant 0 : i32
    %c0_i32_1 = arith.constant 0 : i32
    return %c0_i32, %c0_i32_0 : i32, i32
  }
  func.func @transform_4(%arg0: i32) -> (i32, i32) {
    %c0_i32 = arith.constant 0 : i32
    %c0_i32_0 = arith.constant 0 : i32
    %c0_i32_1 = arith.constant 0 : i32
    return %c0_i32, %c0_i32_0 : i32, i32
  }
  func.func @transform_5(%arg0: i32) -> (i32, i32) {
    %c0_i32 = arith.constant 0 : i32
    %c0_i32_0 = arith.constant 0 : i32
    %c0_i32_1 = arith.constant 0 : i32
    return %c0_i32, %c0_i32_0 : i32, i32
  }
  func.func @transform_6(%arg0: i32) -> (i32, i32) {
    %c0_i32 = arith.constant 0 : i32
    %c0_i32_0 = arith.constant 0 : i32
    %c0_i32_1 = arith.constant 0 : i32
    return %c0_i32, %c0_i32_0 : i32, i32
  }
  func.func @transform_7(%arg0: i32) -> (i32, i32) {
    %c0_i32 = arith.constant 0 : i32
    %c0_i32_0 = arith.constant 0 : i32
    %c0_i32_1 = arith.constant 0 : i32
    return %c0_i32, %c0_i32_0 : i32, i32
  }
  func.func @transform_8(%arg0: i32) -> (i32, i32, i32) {
    %c0_i32 = arith.constant 0 : i32
    %c0_i32_0 = arith.constant 0 : i32
    %c0_i32_1 = arith.constant 0 : i32
    return %arg0, %c0_i32, %c0_i32_0 : i32, i32, i32
  }
}

</mosaic_0001>

<llo_original>
// kernel: tpu_custom_call.1
$region0: #{tpu_custom_call.1}
  #allocation0 [shape = 'u32[]', space=smem, size = 0x4, offset = 0x4, fixed_abs, tag = 'smem constant byte address 0x4 - core index']
  #allocation1 [shape = 'u32[72,128]{1,0:T(1,128)}', space=vmem, size = 0x9000, scoped, tag = 'internal scratch']
  #allocation2 [shape = 'bf16[388,128]{1,0:T(8,128)(2,1)}', space=vmem, size = 0x18800, scoped, tag = 'scratch operand']
  %s0 = inlined_call_operand.vmem [shape: f32[2,324,128], index: 0, kind: input, shape index: {}]
  %s1 = inlined_call_operand.vmem [shape: f32[324,1], index: 1, kind: input, shape index: {}]
  %s2 = inlined_call_operand.vmem [shape: bf16[128,128], index: 2, kind: input, shape index: {}]
  %s3 = inlined_call_operand.vmem [shape: f32[1,128], index: 3, kind: input, shape index: {}]
  %s4 = inlined_call_operand.vmem [shape: bf16[1152,128], index: 4, kind: input, shape index: {}]
  %s5 = inlined_call_operand.vmem [shape: f32[1,128], index: 5, kind: input, shape index: {}]
  %s6 = inlined_call_operand.vmem [shape: bf16[128,128], index: 6, kind: input, shape index: {}]
  %s7 = inlined_call_operand.vmem [shape: f32[1,128], index: 7, kind: input, shape index: {}]
  %s8 = inlined_call_operand.vmem [shape: f32[2,324,128], index: 8, kind: output, shape index: {}]
  %s9 = sld [smem:[#allocation0]]
  $region65: #{tpu_custom_call.1} parent=0
    _
  %s11 = ssub.s32 1, %s9
  %s12 = scalar_select 0, %s11, %s9
  loop: start=0, step=1, limit=4
  $region2: #{tpu_custom_call.1} parent=0 // loop_pre_header
    _
  $region3: #{tpu_custom_call.1} parent=0 // loop_header
    %s14 = sphi 0, %s18
    %p15 = scmp.ge.s32.totalorder %s14, 4
    %s24 = sphi 0, %s26
    %s27 = sphi 0, %s24
    %s28 = sphi 0, %s27
    %s44 = sphi 0, %s28
    %s48 = sphi 0, %s48
    %s50 = sphi 0, %s48
    %s51 = sphi 0, %s50
    %s65 = sphi 0, %s51
    %s69 = sphi 0, %s69
    %s71 = sphi 0, %s69
    %s72 = sphi 0, %s71
    %s86 = sphi 0, %s72
    %s90 = sphi 0, %s90
    %s92 = sphi 0, %s90
    %s93 = sphi 0, %s92
    %s107 = sphi 0, %s93
    %s111 = sphi 0, %s111
    %s113 = sphi 0, %s111
    %s114 = sphi 0, %s113
    %s128 = sphi 0, %s114
    %s132 = sphi 0, %s132
    %s134 = sphi 0, %s132
    %s135 = sphi 0, %s134
    %s149 = sphi 0, %s135
    %s153 = sphi 0, %s153
    %s155 = sphi 0, %s153
    %s156 = sphi 0, %s155
    %s170 = sphi 0, %s156
    %s174 = sphi 0, %s174
    %s176 = sphi 0, %s174
    %s177 = sphi 0, %s176
    %s191 = sphi 0, %s177
    %s197 = sphi 0, %s199
    %s200 = sphi 0, %s197
    %s201 = sphi 0, %s200
    %s217 = sphi 0, %s201
  $region4: #{tpu_custom_call.1} parent=0 // loop_header_branch
    %17 = sbr.rel (%p15) target = $region8
  $region5: #{tpu_custom_call.1} parent=0 // loop_body
    %s19 = ssub.s32 %s14, 1
    %s20 = ssub.s32 %s14, 2
    %s21 = sadd.s32 %s14, 1
    %s22 = ssub.s32 %s14, %s21
    %p23 = scmp.eq.s32.totalorder %s22, 0
    %s25 = sadd.s32 %s24, 1
    %s26 = scalar_select %p23, %s24, %s25
    %p29 = pneg %p23
    %p30 = scmp.eq.s32.totalorder %s14, 1
    %p31 = por %p29, %p30
    %p32 = scmp.ne.s32.totalorder %s24, %s27
    %p33 = scmp.eq.s32.totalorder %s14, 0
    %p34 = por %p32, %p33
    %p35 = scmp.ne.s32.totalorder %s24, %s27
    %p36 = scmp.eq.s32.totalorder %s19, 1
    %p37 = por %p35, %p36
    %p38 = scmp.ne.s32.totalorder %s27, %s28
    %p39 = scmp.eq.s32.totalorder %s19, 0
    %p40 = por %p38, %p39
    %p41 = scmp.ne.s32.totalorder %s27, %s28
    %p42 = scmp.eq.s32.totalorder %s20, 1
    %p43 = por %p41, %p42
    %p45 = scmp.ne.s32.totalorder %s28, %s44
    %p46 = scmp.eq.s32.totalorder %s20, 0
    %p47 = por %p45, %p46
    %s49 = sadd.s32 %s48, 1
    %p52 = scmp.eq.s32.totalorder %s14, 1
    %p53 = scmp.ne.s32.totalorder %s48, %s50
    %p54 = scmp.eq.s32.totalorder %s14, 0
    %p55 = por %p53, %p54
    %p56 = scmp.ne.s32.totalorder %s48, %s50
    %p57 = scmp.eq.s32.totalorder %s19, 1
    %p58 = por %p56, %p57
    %p59 = scmp.ne.s32.totalorder %s50, %s51
    %p60 = scmp.eq.s32.totalorder %s19, 0
    %p61 = por %p59, %p60
    %p62 = scmp.ne.s32.totalorder %s50, %s51
    %p63 = scmp.eq.s32.totalorder %s20, 1
    %p64 = por %p62, %p63
    %p66 = scmp.ne.s32.totalorder %s51, %s65
    %p67 = scmp.eq.s32.totalorder %s20, 0
    %p68 = por %p66, %p67
    %s70 = sadd.s32 %s69, 1
    %p73 = scmp.eq.s32.totalorder %s14, 1
    %p74 = scmp.ne.s32.totalorder %s69, %s71
    %p75 = scmp.eq.s32.totalorder %s14, 0
    %p76 = por %p74, %p75
    %p77 = scmp.ne.s32.totalorder %s69, %s71
    %p78 = scmp.eq.s32.totalorder %s19, 1
    %p79 = por %p77, %p78
    %p80 = scmp.ne.s32.totalorder %s71, %s72
    %p81 = scmp.eq.s32.totalorder %s19, 0
    %p82 = por %p80, %p81
    %p83 = scmp.ne.s32.totalorder %s71, %s72
    %p84 = scmp.eq.s32.totalorder %s20, 1
    %p85 = por %p83, %p84
    %p87 = scmp.ne.s32.totalorder %s72, %s86
    %p88 = scmp.eq.s32.totalorder %s20, 0
    %p89 = por %p87, %p88
    %s91 = sadd.s32 %s90, 1
    %p94 = scmp.eq.s32.totalorder %s14, 1
    %p95 = scmp.ne.s32.totalorder %s90, %s92
    %p96 = scmp.eq.s32.totalorder %s14, 0
    %p97 = por %p95, %p96
    %p98 = scmp.ne.s32.totalorder %s90, %s92
    %p99 = scmp.eq.s32.totalorder %s19, 1
    %p100 = por %p98, %p99
    %p101 = scmp.ne.s32.totalorder %s92, %s93
    %p102 = scmp.eq.s32.totalorder %s19, 0
    %p103 = por %p101, %p102
    %p104 = scmp.ne.s32.totalorder %s92, %s93
    %p105 = scmp.eq.s32.totalorder %s20, 1
    %p106 = por %p104, %p105
    %p108 = scmp.ne.s32.totalorder %s93, %s107
    %p109 = scmp.eq.s32.totalorder %s20, 0
    %p110 = por %p108, %p109
    %s112 = sadd.s32 %s111, 1
    %p115 = scmp.eq.s32.totalorder %s14, 1
    %p116 = scmp.ne.s32.totalorder %s111, %s113
    %p117 = scmp.eq.s32.totalorder %s14, 0
    %p118 = por %p116, %p117
    %p119 = scmp.ne.s32.totalorder %s111, %s113
    %p120 = scmp.eq.s32.totalorder %s19, 1
    %p121 = por %p119, %p120
    %p122 = scmp.ne.s32.totalorder %s113, %s114
    %p123 = scmp.eq.s32.totalorder %s19, 0
    %p124 = por %p122, %p123
    %p125 = scmp.ne.s32.totalorder %s113, %s114
    %p126 = scmp.eq.s32.totalorder %s20, 1
    %p127 = por %p125, %p126
    %p129 = scmp.ne.s32.totalorder %s114, %s128
    %p130 = scmp.eq.s32.totalorder %s20, 0
    %p131 = por %p129, %p130
    %s133 = sadd.s32 %s132, 1
    %p136 = scmp.eq.s32.totalorder %s14, 1
    %p137 = scmp.ne.s32.totalorder %s132, %s134
    %p138 = scmp.eq.s32.totalorder %s14, 0
    %p139 = por %p137, %p138
    %p140 = scmp.ne.s32.totalorder %s132, %s134
    %p141 = scmp.eq.s32.totalorder %s19, 1
    %p142 = por %p140, %p141
    %p143 = scmp.ne.s32.totalorder %s134, %s135
    %p144 = scmp.eq.s32.totalorder %s19, 0
    %p145 = por %p143, %p144
    %p146 = scmp.ne.s32.totalorder %s134, %s135
    %p147 = scmp.eq.s32.totalorder %s20, 1
    %p148 = por %p146, %p147
    %p150 = scmp.ne.s32.totalorder %s135, %s149
    %p151 = scmp.eq.s32.totalorder %s20, 0
    %p152 = por %p150, %p151
    %s154 = sadd.s32 %s153, 1
    %p157 = scmp.eq.s32.totalorder %s14, 1
    %p158 = scmp.ne.s32.totalorder %s153, %s155
    %p159 = scmp.eq.s32.totalorder %s14, 0
    %p160 = por %p158, %p159
    %p161 = scmp.ne.s32.totalorder %s153, %s155
    %p162 = scmp.eq.s32.totalorder %s19, 1
    %p163 = por %p161, %p162
    %p164 = scmp.ne.s32.totalorder %s155, %s156
    %p165 = scmp.eq.s32.totalorder %s19, 0
    %p166 = por %p164, %p165
    %p167 = scmp.ne.s32.totalorder %s155, %s156
    %p168 = scmp.eq.s32.totalorder %s20, 1
    %p169 = por %p167, %p168
    %p171 = scmp.ne.s32.totalorder %s156, %s170
    %p172 = scmp.eq.s32.totalorder %s20, 0
    %p173 = por %p171, %p172
    %s175 = sadd.s32 %s174, 1
    %p178 = scmp.eq.s32.totalorder %s14, 1
    %p179 = scmp.ne.s32.totalorder %s174, %s176
    %p180 = scmp.eq.s32.totalorder %s14, 0
    %p181 = por %p179, %p180
    %p182 = scmp.ne.s32.totalorder %s174, %s176
    %p183 = scmp.eq.s32.totalorder %s19, 1
    %p184 = por %p182, %p183
    %p185 = scmp.ne.s32.totalorder %s176, %s177
    %p186 = scmp.eq.s32.totalorder %s19, 0
    %p187 = por %p185, %p186
    %p188 = scmp.ne.s32.totalorder %s176, %s177
    %p189 = scmp.eq.s32.totalorder %s20, 1
    %p190 = por %p188, %p189
    %p192 = scmp.ne.s32.totalorder %s177, %s191
    %p193 = scmp.eq.s32.totalorder %s20, 0
    %p194 = por %p192, %p193
    %s195 = ssub.s32 %s14, %s21
    %p196 = scmp.eq.s32.totalorder %s195, 0
    %s198 = sadd.s32 %s197, 1
    %s199 = scalar_select %p196, %s197, %s198
    %p202 = pneg %p196
    %p203 = scmp.eq.s32.totalorder %s14, 1
    %p204 = por %p202, %p203
    %p205 = scmp.ne.s32.totalorder %s197, %s200
    %p206 = scmp.eq.s32.totalorder %s14, 0
    %p207 = por %p205, %p206
    %p208 = scmp.ne.s32.totalorder %s197, %s200
    %p209 = scmp.eq.s32.totalorder %s19, 1
    %p210 = por %p208, %p209
    %p211 = scmp.ne.s32.totalorder %s200, %s201
    %p212 = scmp.eq.s32.totalorder %s19, 0
    %p213 = por %p211, %p212
    %p214 = scmp.ne.s32.totalorder %s200, %s201
    %p215 = scmp.eq.s32.totalorder %s20, 1
    %p216 = por %p214, %p215
    %p218 = scmp.ne.s32.totalorder %s201, %s217
    %p219 = scmp.eq.s32.totalorder %s20, 0
    %p220 = por %p218, %p219
    %p221 = scmp.le.s32.totalorder 1, %s14
    %p222 = scmp.lt.s32.totalorder %s14, 3
    %p223 = pnand %p221, %p222
    %p224 = pneg %p223
    // Predicated region
    $region9: #{tpu_custom_call.1} parent=5 // pred_check
      _
    $region10: #{tpu_custom_call.1} parent=5 // pred_check_branch
      %226 = sbr.rel (%p223) target = $region12
    $region11: #{tpu_custom_call.1} parent=5 // pred_region
      %s227 = ssub.s32 %s14, 1
      // Predicated region
      $region13: #{tpu_custom_call.1} parent=11 // pred_check
        %p228 = pneg %p61
      $region14: #{tpu_custom_call.1} parent=11 // pred_check_branch
        %230 = sbr.rel (%p228) target = $region16
      $region15: #{tpu_custom_call.1} parent=11 // pred_region
        _
      $region16: #{tpu_custom_call.1} parent=11 // pred_fallthru
        _
      // Predicated region
      $region17: #{tpu_custom_call.1} parent=11 // pred_check
        %p231 = pneg %p82
      $region18: #{tpu_custom_call.1} parent=11 // pred_check_branch
        %233 = sbr.rel (%p231) target = $region20
      $region19: #{tpu_custom_call.1} parent=11 // pred_region
        _
      $region20: #{tpu_custom_call.1} parent=11 // pred_fallthru
        _
      // Predicated region
      $region21: #{tpu_custom_call.1} parent=11 // pred_check
        %p234 = pneg %p103
      $region22: #{tpu_custom_call.1} parent=11 // pred_check_branch
        %236 = sbr.rel (%p234) target = $region24
      $region23: #{tpu_custom_call.1} parent=11 // pred_region
        _
      $region24: #{tpu_custom_call.1} parent=11 // pred_fallthru
        _
      // Predicated region
      $region25: #{tpu_custom_call.1} parent=11 // pred_check
        %p237 = pneg %p124
      $region26: #{tpu_custom_call.1} parent=11 // pred_check_branch
        %239 = sbr.rel (%p237) target = $region28
      $region27: #{tpu_custom_call.1} parent=11 // pred_region
        _
      $region28: #{tpu_custom_call.1} parent=11 // pred_fallthru
        _
      // Predicated region
      $region29: #{tpu_custom_call.1} parent=11 // pred_check
        %p240 = pneg %p145
      $region30: #{tpu_custom_call.1} parent=11 // pred_check_branch
        %242 = sbr.rel (%p240) target = $region32
      $region31: #{tpu_custom_call.1} parent=11 // pred_region
        _
      $region32: #{tpu_custom_call.1} parent=11 // pred_fallthru
        _
      // Predicated region
      $region33: #{tpu_custom_call.1} parent=11 // pred_check
        %p243 = pneg %p166
      $region34: #{tpu_custom_call.1} parent=11 // pred_check_branch
        %245 = sbr.rel (%p243) target = $region36
      $region35: #{tpu_custom_call.1} parent=11 // pred_region
        _
      $region36: #{tpu_custom_call.1} parent=11 // pred_fallthru
        _
      // Predicated region
      $region37: #{tpu_custom_call.1} parent=11 // pred_check
        %p246 = pneg %p187
      $region38: #{tpu_custom_call.1} parent=11 // pred_check_branch
        %248 = sbr.rel (%p246) target = $region40
      $region39: #{tpu_custom_call.1} parent=11 // pred_region
        _
      $region40: #{tpu_custom_call.1} parent=11 // pred_fallthru
        _
    $region12: #{tpu_custom_call.1} parent=5 // pred_fallthru
      _
    %p249 = scmp.lt.s32.totalorder %s14, 2
    // Predicated region
    $region41: #{tpu_custom_call.1} parent=5 // pred_check
      %p250 = pneg %p249
    $region42: #{tpu_custom_call.1} parent=5 // pred_check_branch
      %252 = sbr.rel (%p250) target = $region44
    $region43: #{tpu_custom_call.1} parent=5 // pred_region
      // Predicated region
      $region45: #{tpu_custom_call.1} parent=43 // pred_check
        %p253 = pneg %p34
      $region46: #{tpu_custom_call.1} parent=43 // pred_check_branch
        %255 = sbr.rel (%p253) target = $region48
      $region47: #{tpu_custom_call.1} parent=43 // pred_region
        %p256 = scmp.lt.s32.totalorder %s14, 1
        %s257 = scalar_select %p256, %s14, 1
        %s258 = smul.addr %s257, 41
        %s259 = smul.addr %s258, 8
        %s260 = scalar_lea.vmem %s0, %s259
      $region48: #{tpu_custom_call.1} parent=43 // pred_fallthru
        _
    $region44: #{tpu_custom_call.1} parent=5 // pred_fallthru
      _
    %p261 = scmp.le.s32.totalorder 1, %s14
    %p262 = scmp.lt.s32.totalorder %s14, 3
    %p263 = pnand %p261, %p262
    %p264 = pneg %p263
    // Predicated region
    $region49: #{tpu_custom_call.1} parent=5 // pred_check
      _
    $region50: #{tpu_custom_call.1} parent=5 // pred_check_branch
      %266 = sbr.rel (%p263) target = $region52
    $region51: #{tpu_custom_call.1} parent=5 // pred_region
      %s267 = ssub.s32 %s14, 1
      %p268 = scmp.lt.s32.totalorder %s19, 1
      %s269 = scalar_select %p268, %s19, 1
      %s270 = smul.addr %s269, 41
      %s271 = smul.addr %s270, 8
      %s272 = scalar_lea.vmem %s0, %s271
      %p273 = pneg %p40
      %p274 = pneg %p37
      %p275 = pneg %p61
      %p276 = pneg %p58
      %p277 = pneg %p82
      %p278 = pneg %p79
      %p279 = pneg %p103
      %p280 = pneg %p100
      %p281 = pneg %p124
      %p282 = pneg %p121
      %p283 = pneg %p145
      %p284 = pneg %p142
      %p285 = pneg %p166
      %p286 = pneg %p163
      %p287 = pneg %p187
      %p288 = pneg %p184
      %p289 = pneg %p213
      %p290 = pneg %p210
      %p291 = scmp.lt.s32.totalorder %s19, 1
      %s292 = scalar_select %p291, %s19, 1
      %s293 = smul.addr %s292, 41
      %s294 = smul.addr %s293, 8
      %s295 = scalar_lea.vmem %s8, %s294
      %p296 = scmp.lt.s32.totalorder %s19, 1
      %s297 = scalar_select %p296, %s19, 1
      %s298 = smul.addr %s297, 41
      %s299 = smul.addr %s298, 8
      %s300 = scalar_lea.vmem %s0, %s299
      %p301 = scmp.lt.s32.totalorder %s19, 1
      %s302 = scalar_select %p301, %s19, 1
      %s303 = smul.addr %s302, 41
      %s304 = smul.addr %s303, 8
      %s305 = scalar_lea.vmem %s8, %s304
      %307 = vst [vmem:[#allocation2] sm:$0xf] 0
      %308 = vst [vmem:[#allocation2 + $0x4] sm:$0xf] 0
      %309 = vst [vmem:[#allocation2 + $0x8] sm:$0xf] 0
      %310 = vst [vmem:[#allocation2 + $0xc] sm:$0xf] 0
      %311 = vst [vmem:[#allocation2 + $0xb0] sm:$0xc] 0
      %312 = vst [vmem:[#allocation2 + $0xb4] sm:$0xf] 0
      %313 = vst [vmem:[#allocation2 + $0xb8] sm:$0xf] 0
      %314 = vst [vmem:[#allocation2 + $0xbc] sm:$0xf] 0
      %315 = vst [vmem:[#allocation2 + $0xc0] sm:$0x3] 0
      %v316 = vld [vmem:[%s300] sm:$0xff]
      %v317 = vld [vmem:[%s300 + $0x8] sm:$0xff]
      %v318 = vld [vmem:[%s300 + $0x10] sm:$0xff]
      %v319 = vld [vmem:[%s300 + $0x18] sm:$0xff]
      %v320 = vld [vmem:[%s300 + $0x20] sm:$0xff]
      %v321 = vld [vmem:[%s300 + $0x28] sm:$0xff]
      %v322 = vld [vmem:[%s300 + $0x30] sm:$0xff]
      %v323 = vld [vmem:[%s300 + $0x38] sm:$0xff]
      %v324 = vld [vmem:[%s300 + $0x40] sm:$0xff]
      %v325 = vld [vmem:[%s300 + $0x48] sm:$0xff]
      %v326 = vld [vmem:[%s300 + $0x50] sm:$0xff]
      %v327 = vld [vmem:[%s300 + $0x58] sm:$0xff]
      %v328 = vld [vmem:[%s300 + $0x60] sm:$0xff]
      %v329 = vld [vmem:[%s300 + $0x68] sm:$0xff]
      %v330 = vld [vmem:[%s300 + $0x70] sm:$0xff]
      %v331 = vld [vmem:[%s300 + $0x78] sm:$0xff]
      %v332 = vld [vmem:[%s300 + $0x80] sm:$0xff]
      %v333 = vld [vmem:[%s300 + $0x88] sm:$0xff]
      %v334 = vld [vmem:[%s300 + $0x90] sm:$0xff]
      %v335 = vld [vmem:[%s300 + $0x98] sm:$0xff]
      %v336 = vld [vmem:[%s300 + $0xa0] sm:$0xff]
      %v337 = vld [vmem:[%s300 + $0xa8] sm:$0xff]
      %v338 = vld [vmem:[%s300 + $0xb0] sm:$0xff]
      %v339 = vld [vmem:[%s300 + $0xb8] sm:$0xff]
      %v340 = vld [vmem:[%s300 + $0xc0] sm:$0xff]
      %v341 = vld [vmem:[%s300 + $0xc8] sm:$0xff]
      %v342 = vld [vmem:[%s300 + $0xd0] sm:$0xff]
      %v343 = vld [vmem:[%s300 + $0xd8] sm:$0xff]
      %v344 = vld [vmem:[%s300 + $0xe0] sm:$0xff]
      %v345 = vld [vmem:[%s300 + $0xe8] sm:$0xff]
      %v346 = vld [vmem:[%s300 + $0xf0] sm:$0xff]
      %v347 = vld [vmem:[%s300 + $0xf8] sm:$0xff]
      %v348 = vld [vmem:[%s300 + $0x100] sm:$0xff]
      %v349 = vld [vmem:[%s300 + $0x108] sm:$0xff]
      %v350 = vld [vmem:[%s300 + $0x110] sm:$0xff]
      %v351 = vld [vmem:[%s300 + $0x118] sm:$0xff]
      %v352 = vld [vmem:[%s300 + $0x120] sm:$0xff]
      %v353 = vld [vmem:[%s300 + $0x128] sm:$0xff]
      %v354 = vld [vmem:[%s300 + $0x130] sm:$0xff]
      %v355 = vld [vmem:[%s300 + $0x138] sm:$0xff]
      %v356 = vld [vmem:[%s300 + $0x140] sm:$0xf]
      %v357 = vpack.c.bf16 %v317, %v316
      %v358 = vpack.c.bf16 %v319, %v318
      %v359 = vpack.c.bf16 %v321, %v320
      %v360 = vpack.c.bf16 %v323, %v322
      %v361 = vpack.c.bf16 %v325, %v324
      %v362 = vpack.c.bf16 %v327, %v326
      %v363 = vpack.c.bf16 %v329, %v328
      %v364 = vpack.c.bf16 %v331, %v330
      %v365 = vpack.c.bf16 %v333, %v332
      %v366 = vpack.c.bf16 %v335, %v334
      %v367 = vpack.c.bf16 %v337, %v336
      %v368 = vpack.c.bf16 %v339, %v338
      %v369 = vpack.c.bf16 %v341, %v340
      %v370 = vpack.c.bf16 %v343, %v342
      %v371 = vpack.c.bf16 %v345, %v344
      %v372 = vpack.c.bf16 %v347, %v346
      %v373 = vpack.c.bf16 %v349, %v348
      %v374 = vpack.c.bf16 %v351, %v350
      %v375 = vpack.c.bf16 %v353, %v352
      %v376 = vpack.c.bf16 %v355, %v354
      %v377 = vpack.c.bf16 %v356, %v356
      %v378 = vld [vmem:[%s2] sm:$0xf]
      %v379 = vld [vmem:[%s2 + $0x4] sm:$0xf]
      %v380 = vld [vmem:[%s2 + $0x8] sm:$0xf]
      %v381 = vld [vmem:[%s2 + $0xc] sm:$0xf]
      %v382 = vld [vmem:[%s2 + $0x10] sm:$0xf]
      %v383 = vld [vmem:[%s2 + $0x14] sm:$0xf]
      %v384 = vld [vmem:[%s2 + $0x18] sm:$0xf]
      %v385 = vld [vmem:[%s2 + $0x1c] sm:$0xf]
      %v386 = vld [vmem:[%s2 + $0x20] sm:$0xf]
      %v387 = vld [vmem:[%s2 + $0x24] sm:$0xf]
      %v388 = vld [vmem:[%s2 + $0x28] sm:$0xf]
      %v389 = vld [vmem:[%s2 + $0x2c] sm:$0xf]
      %v390 = vld [vmem:[%s2 + $0x30] sm:$0xf]
      %v391 = vld [vmem:[%s2 + $0x34] sm:$0xf]
      %v392 = vld [vmem:[%s2 + $0x38] sm:$0xf]
      %v393 = vld [vmem:[%s2 + $0x3c] sm:$0xf]
      %v394 = vld [vmem:[%s3] sm:$0x1]
      %v396 = vperm.slane %v394, 0
      %v414 = vunpack.c.l.b16 %v378
      %v415 = vunpack.c.l.b16 %v379
      %v416 = vunpack.c.l.b16 %v380
      %v417 = vunpack.c.l.b16 %v381
      %v418 = vunpack.c.l.b16 %v382
      %v419 = vunpack.c.l.b16 %v383
      %v420 = vunpack.c.l.b16 %v384
      %v421 = vunpack.c.l.b16 %v385
      %v422 = vunpack.c.l.b16 %v386
      %v423 = vunpack.c.l.b16 %v387
      %v424 = vunpack.c.l.b16 %v388
      %v425 = vunpack.c.l.b16 %v389
      %v426 = vunpack.c.l.b16 %v390
      %v427 = vunpack.c.l.b16 %v391
      %v428 = vunpack.c.l.b16 %v392
      %v429 = vunpack.c.l.b16 %v393
      %v430 = vpack.c.b16 %v415, %v414
      %v431 = vpack.c.b16 %v417, %v416
      %v432 = vpack.c.b16 %v419, %v418
      %v433 = vpack.c.b16 %v421, %v420
      %v434 = vpack.c.b16 %v423, %v422
      %v435 = vpack.c.b16 %v425, %v424
      %v436 = vpack.c.b16 %v427, %v426
      %v437 = vpack.c.b16 %v429, %v428
      %446 = vmatpush.bf16.msra.mxu0 %v437
      %447 = vmatpush.bf16.msra.mxu0 %v436
      %448 = vmatpush.bf16.msra.mxu0 %v435
      %449 = vmatpush.bf16.msra.mxu0 %v434
      %450 = vmatpush.bf16.msra.mxu0 %v433
      %451 = vmatpush.bf16.msra.mxu0 %v432
      %452 = vmatpush.bf16.msra.mxu0 %v431
      %453 = vmatpush.bf16.msra.mxu0 %v430
      %454 = vmatmul.bf16.gmra.mxu0 %v357
      %v455 = vpop.f32.mrf.mxu0
      %v456 = vadd.f32 %v396, %v455
      %v457 = vpop.f32.mrf.mxu0
      %v458 = vadd.f32 %v396, %v457
      %459 = vmatmul.bf16.gmra.mxu0 %v358
      %v460 = vpop.f32.mrf.mxu0
      %v461 = vadd.f32 %v396, %v460
      %v462 = vpop.f32.mrf.mxu0
      %v463 = vadd.f32 %v396, %v462
      %464 = vmatmul.bf16.gmra.mxu0 %v359
      %v465 = vpop.f32.mrf.mxu0
      %v466 = vadd.f32 %v396, %v465
      %v467 = vpop.f32.mrf.mxu0
      %v468 = vadd.f32 %v396, %v467
      %469 = vmatmul.bf16.gmra.mxu0 %v360
      %v470 = vpop.f32.mrf.mxu0
      %v471 = vadd.f32 %v396, %v470
      %v472 = vpop.f32.mrf.mxu0
      %v473 = vadd.f32 %v396, %v472
      %474 = vmatmul.bf16.gmra.mxu0 %v361
      %v475 = vpop.f32.mrf.mxu0
      %v476 = vadd.f32 %v396, %v475
      %v477 = vpop.f32.mrf.mxu0
      %v478 = vadd.f32 %v396, %v477
      %479 = vmatmul.bf16.gmra.mxu0 %v362
      %v480 = vpop.f32.mrf.mxu0
      %v481 = vadd.f32 %v396, %v480
      %v482 = vpop.f32.mrf.mxu0
      %v483 = vadd.f32 %v396, %v482
      %484 = vmatmul.bf16.gmra.mxu0 %v363
      %v485 = vpop.f32.mrf.mxu0
      %v486 = vadd.f32 %v396, %v485
      %v487 = vpop.f32.mrf.mxu0
      %v488 = vadd.f32 %v396, %v487
      %489 = vmatmul.bf16.gmra.mxu0 %v364
      %v490 = vpop.f32.mrf.mxu0
      %v491 = vadd.f32 %v396, %v490
      %v492 = vpop.f32.mrf.mxu0
      %v493 = vadd.f32 %v396, %v492
      %494 = vmatmul.bf16.gmra.mxu0 %v365
      %v495 = vpop.f32.mrf.mxu0
      %v496 = vadd.f32 %v396, %v495
      %v497 = vpop.f32.mrf.mxu0
      %v498 = vadd.f32 %v396, %v497
      %499 = vmatmul.bf16.gmra.mxu0 %v366
      %v500 = vpop.f32.mrf.mxu0
      %v501 = vadd.f32 %v396, %v500
      %v502 = vpop.f32.mrf.mxu0
      %v503 = vadd.f32 %v396, %v502
      %504 = vmatmul.bf16.gmra.mxu0 %v367
      %v505 = vpop.f32.mrf.mxu0
      %v506 = vadd.f32 %v396, %v505
      %v507 = vpop.f32.mrf.mxu0
      %v508 = vadd.f32 %v396, %v507
      %509 = vmatmul.bf16.gmra.mxu0 %v368
      %v510 = vpop.f32.mrf.mxu0
      %v511 = vadd.f32 %v396, %v510
      %v512 = vpop.f32.mrf.mxu0
      %v513 = vadd.f32 %v396, %v512
      %514 = vmatmul.bf16.gmra.mxu0 %v369
      %v515 = vpop.f32.mrf.mxu0
      %v516 = vadd.f32 %v396, %v515
      %v517 = vpop.f32.mrf.mxu0
      %v518 = vadd.f32 %v396, %v517
      %519 = vmatmul.bf16.gmra.mxu0 %v370
      %v520 = vpop.f32.mrf.mxu0
      %v521 = vadd.f32 %v396, %v520
      %v522 = vpop.f32.mrf.mxu0
      %v523 = vadd.f32 %v396, %v522
      %524 = vmatmul.bf16.gmra.mxu0 %v371
      %v525 = vpop.f32.mrf.mxu0
      %v526 = vadd.f32 %v396, %v525
      %v527 = vpop.f32.mrf.mxu0
      %v528 = vadd.f32 %v396, %v527
      %529 = vmatmul.bf16.gmra.mxu0 %v372
      %v530 = vpop.f32.mrf.mxu0
      %v531 = vadd.f32 %v396, %v530
      %v532 = vpop.f32.mrf.mxu0
      %v533 = vadd.f32 %v396, %v532
      %534 = vmatmul.bf16.gmra.mxu0 %v373
      %v535 = vpop.f32.mrf.mxu0
      %v536 = vadd.f32 %v396, %v535
      %v537 = vpop.f32.mrf.mxu0
      %v538 = vadd.f32 %v396, %v537
      %539 = vmatmul.bf16.gmra.mxu0 %v374
      %v540 = vpop.f32.mrf.mxu0
      %v541 = vadd.f32 %v396, %v540
      %v542 = vpop.f32.mrf.mxu0
      %v543 = vadd.f32 %v396, %v542
      %544 = vmatmul.bf16.gmra.mxu0 %v375
      %v545 = vpop.f32.mrf.mxu0
      %v546 = vadd.f32 %v396, %v545
      %v547 = vpop.f32.mrf.mxu0
      %v548 = vadd.f32 %v396, %v547
      %549 = vmatmul.bf16.gmra.mxu0 %v376
      %v550 = vpop.f32.mrf.mxu0
      %v551 = vadd.f32 %v396, %v550
      %v552 = vpop.f32.mrf.mxu0
      %v553 = vadd.f32 %v396, %v552
      %554 = vmatmul.bf16.gmra.mxu0 %v377
      %v555 = vpop.f32.mrf.mxu0
      %v556 = vadd.f32 %v396, %v555
      %v557 = vpop.f32.mrf.mxu0
      %558 = vdwg.mxu0
      %v559 = vmax.f32 %v456, 0.0
      %v560 = vmax.f32 %v458, 0.0
      %v561 = vmax.f32 %v461, 0.0
      %v562 = vmax.f32 %v463, 0.0
      %v563 = vmax.f32 %v466, 0.0
      %v564 = vmax.f32 %v468, 0.0
      %v565 = vmax.f32 %v471, 0.0
      %v566 = vmax.f32 %v473, 0.0
      %v567 = vmax.f32 %v476, 0.0
      %v568 = vmax.f32 %v478, 0.0
      %v569 = vmax.f32 %v481, 0.0
      %v570 = vmax.f32 %v483, 0.0
      %v571 = vmax.f32 %v486, 0.0
      %v572 = vmax.f32 %v488, 0.0
      %v573 = vmax.f32 %v491, 0.0
      %v574 = vmax.f32 %v493, 0.0
      %v575 = vmax.f32 %v496, 0.0
      %v576 = vmax.f32 %v498, 0.0
      %v577 = vmax.f32 %v501, 0.0
      %v578 = vmax.f32 %v503, 0.0
      %v579 = vmax.f32 %v506, 0.0
      %v580 = vmax.f32 %v508, 0.0
      %v581 = vmax.f32 %v511, 0.0
      %v582 = vmax.f32 %v513, 0.0
      %v583 = vmax.f32 %v516, 0.0
      %v584 = vmax.f32 %v518, 0.0
      %v585 = vmax.f32 %v521, 0.0
      %v586 = vmax.f32 %v523, 0.0
      %v587 = vmax.f32 %v526, 0.0
      %v588 = vmax.f32 %v528, 0.0
      %v589 = vmax.f32 %v531, 0.0
      %v590 = vmax.f32 %v533, 0.0
      %v591 = vmax.f32 %v536, 0.0
      %v592 = vmax.f32 %v538, 0.0
      %v593 = vmax.f32 %v541, 0.0
      %v594 = vmax.f32 %v543, 0.0
      %v595 = vmax.f32 %v546, 0.0
      %v596 = vmax.f32 %v548, 0.0
      %v597 = vmax.f32 %v551, 0.0
      %v598 = vmax.f32 %v553, 0.0
      %v599 = vmax.f32 %v556, 0.0
      %v600 = vld [vmem:[%s1] sm:$0xff]
      %v601 = vld [vmem:[%s1 + $0x8] sm:$0xff]
      %v602 = vld [vmem:[%s1 + $0x10] sm:$0xff]
      %v603 = vld [vmem:[%s1 + $0x18] sm:$0xff]
      %v604 = vld [vmem:[%s1 + $0x20] sm:$0xff]
      %v605 = vld [vmem:[%s1 + $0x28] sm:$0xff]
      %v606 = vld [vmem:[%s1 + $0x30] sm:$0xff]
      %v607 = vld [vmem:[%s1 + $0x38] sm:$0xff]
      %v608 = vld [vmem:[%s1 + $0x40] sm:$0xff]
      %v609 = vld [vmem:[%s1 + $0x48] sm:$0xff]
      %v610 = vld [vmem:[%s1 + $0x50] sm:$0xff]
      %v611 = vld [vmem:[%s1 + $0x58] sm:$0xff]
      %v612 = vld [vmem:[%s1 + $0x60] sm:$0xff]
      %v613 = vld [vmem:[%s1 + $0x68] sm:$0xff]
      %v614 = vld [vmem:[%s1 + $0x70] sm:$0xff]
      %v615 = vld [vmem:[%s1 + $0x78] sm:$0xff]
      %v616 = vld [vmem:[%s1 + $0x80] sm:$0xff]
      %v617 = vld [vmem:[%s1 + $0x88] sm:$0xff]
      %v618 = vld [vmem:[%s1 + $0x90] sm:$0xff]
      %v619 = vld [vmem:[%s1 + $0x98] sm:$0xff]
      %v620 = vld [vmem:[%s1 + $0xa0] sm:$0xff]
      %v621 = vld [vmem:[%s1 + $0xa8] sm:$0xff]
      %v622 = vld [vmem:[%s1 + $0xb0] sm:$0xff]
      %v623 = vld [vmem:[%s1 + $0xb8] sm:$0xff]
      %v624 = vld [vmem:[%s1 + $0xc0] sm:$0xff]
      %v625 = vld [vmem:[%s1 + $0xc8] sm:$0xff]
      %v626 = vld [vmem:[%s1 + $0xd0] sm:$0xff]
      %v627 = vld [vmem:[%s1 + $0xd8] sm:$0xff]
      %v628 = vld [vmem:[%s1 + $0xe0] sm:$0xff]
      %v629 = vld [vmem:[%s1 + $0xe8] sm:$0xff]
      %v630 = vld [vmem:[%s1 + $0xf0] sm:$0xff]
      %v631 = vld [vmem:[%s1 + $0xf8] sm:$0xff]
      %v632 = vld [vmem:[%s1 + $0x100] sm:$0xff]
      %v633 = vld [vmem:[%s1 + $0x108] sm:$0xff]
      %v634 = vld [vmem:[%s1 + $0x110] sm:$0xff]
      %v635 = vld [vmem:[%s1 + $0x118] sm:$0xff]
      %v636 = vld [vmem:[%s1 + $0x120] sm:$0xff]
      %v637 = vld [vmem:[%s1 + $0x128] sm:$0xff]
      %v638 = vld [vmem:[%s1 + $0x130] sm:$0xff]
      %v639 = vld [vmem:[%s1 + $0x138] sm:$0xff]
      %v640 = vld [vmem:[%s1 + $0x140] sm:$0xf]
      %642 = vset.pattern.permute.xlu0 0
      %643 = vperm.xlu0 %642, %v600
      %v644 = vpop.permute.xlu0 %643
      %647 = vset.pattern.permute.xlu0 0
      %648 = vperm.xlu0 %647, %v601
      %v649 = vpop.permute.xlu0 %648
      %652 = vset.pattern.permute.xlu0 0
      %653 = vperm.xlu0 %652, %v602
      %v654 = vpop.permute.xlu0 %653
      %657 = vset.pattern.permute.xlu0 0
      %658 = vperm.xlu0 %657, %v603
      %v659 = vpop.permute.xlu0 %658
      %662 = vset.pattern.permute.xlu0 0
      %663 = vperm.xlu0 %662, %v604
      %v664 = vpop.permute.xlu0 %663
      %667 = vset.pattern.permute.xlu0 0
      %668 = vperm.xlu0 %667, %v605
      %v669 = vpop.permute.xlu0 %668
      %672 = vset.pattern.permute.xlu0 0
      %673 = vperm.xlu0 %672, %v606
      %v674 = vpop.permute.xlu0 %673
      %677 = vset.pattern.permute.xlu0 0
      %678 = vperm.xlu0 %677, %v607
      %v679 = vpop.permute.xlu0 %678
      %682 = vset.pattern.permute.xlu0 0
      %683 = vperm.xlu0 %682, %v608
      %v684 = vpop.permute.xlu0 %683
      %687 = vset.pattern.permute.xlu0 0
      %688 = vperm.xlu0 %687, %v609
      %v689 = vpop.permute.xlu0 %688
      %692 = vset.pattern.permute.xlu0 0
      %693 = vperm.xlu0 %692, %v610
      %v694 = vpop.permute.xlu0 %693
      %697 = vset.pattern.permute.xlu0 0
      %698 = vperm.xlu0 %697, %v611
      %v699 = vpop.permute.xlu0 %698
      %702 = vset.pattern.permute.xlu0 0
      %703 = vperm.xlu0 %702, %v612
      %v704 = vpop.permute.xlu0 %703
      %707 = vset.pattern.permute.xlu0 0
      %708 = vperm.xlu0 %707, %v613
      %v709 = vpop.permute.xlu0 %708
      %712 = vset.pattern.permute.xlu0 0
      %713 = vperm.xlu0 %712, %v614
      %v714 = vpop.permute.xlu0 %713
      %717 = vset.pattern.permute.xlu0 0
      %718 = vperm.xlu0 %717, %v615
      %v719 = vpop.permute.xlu0 %718
      %722 = vset.pattern.permute.xlu0 0
      %723 = vperm.xlu0 %722, %v616
      %v724 = vpop.permute.xlu0 %723
      %727 = vset.pattern.permute.xlu0 0
      %728 = vperm.xlu0 %727, %v617
      %v729 = vpop.permute.xlu0 %728
      %732 = vset.pattern.permute.xlu0 0
      %733 = vperm.xlu0 %732, %v618
      %v734 = vpop.permute.xlu0 %733
      %737 = vset.pattern.permute.xlu0 0
      %738 = vperm.xlu0 %737, %v619
      %v739 = vpop.permute.xlu0 %738
      %742 = vset.pattern.permute.xlu0 0
      %743 = vperm.xlu0 %742, %v620
      %v744 = vpop.permute.xlu0 %743
      %747 = vset.pattern.permute.xlu0 0
      %748 = vperm.xlu0 %747, %v621
      %v749 = vpop.permute.xlu0 %748
      %752 = vset.pattern.permute.xlu0 0
      %753 = vperm.xlu0 %752, %v622
      %v754 = vpop.permute.xlu0 %753
      %757 = vset.pattern.permute.xlu0 0
      %758 = vperm.xlu0 %757, %v623
      %v759 = vpop.permute.xlu0 %758
      %762 = vset.pattern.permute.xlu0 0
      %763 = vperm.xlu0 %762, %v624
      %v764 = vpop.permute.xlu0 %763
      %767 = vset.pattern.permute.xlu0 0
      %768 = vperm.xlu0 %767, %v625
      %v769 = vpop.permute.xlu0 %768
      %772 = vset.pattern.permute.xlu0 0
      %773 = vperm.xlu0 %772, %v626
      %v774 = vpop.permute.xlu0 %773
      %777 = vset.pattern.permute.xlu0 0
      %778 = vperm.xlu0 %777, %v627
      %v779 = vpop.permute.xlu0 %778
      %782 = vset.pattern.permute.xlu0 0
      %783 = vperm.xlu0 %782, %v628
      %v784 = vpop.permute.xlu0 %783
      %787 = vset.pattern.permute.xlu0 0
      %788 = vperm.xlu0 %787, %v629
      %v789 = vpop.permute.xlu0 %788
      %792 = vset.pattern.permute.xlu0 0
      %793 = vperm.xlu0 %792, %v630
      %v794 = vpop.permute.xlu0 %793
      %797 = vset.pattern.permute.xlu0 0
      %798 = vperm.xlu0 %797, %v631
      %v799 = vpop.permute.xlu0 %798
      %802 = vset.pattern.permute.xlu0 0
      %803 = vperm.xlu0 %802, %v632
      %v804 = vpop.permute.xlu0 %803
      %807 = vset.pattern.permute.xlu0 0
      %808 = vperm.xlu0 %807, %v633
      %v809 = vpop.permute.xlu0 %808
      %812 = vset.pattern.permute.xlu0 0
      %813 = vperm.xlu0 %812, %v634
      %v814 = vpop.permute.xlu0 %813
      %817 = vset.pattern.permute.xlu0 0
      %818 = vperm.xlu0 %817, %v635
      %v819 = vpop.permute.xlu0 %818
      %822 = vset.pattern.permute.xlu0 0
      %823 = vperm.xlu0 %822, %v636
      %v824 = vpop.permute.xlu0 %823
      %827 = vset.pattern.permute.xlu0 0
      %828 = vperm.xlu0 %827, %v637
      %v829 = vpop.permute.xlu0 %828
      %832 = vset.pattern.permute.xlu0 0
      %833 = vperm.xlu0 %832, %v638
      %v834 = vpop.permute.xlu0 %833
      %837 = vset.pattern.permute.xlu0 0
      %838 = vperm.xlu0 %837, %v639
      %v839 = vpop.permute.xlu0 %838
      %842 = vset.pattern.permute.xlu0 0
      %843 = vperm.xlu0 %842, %v640
      %v844 = vpop.permute.xlu0 %843
      %v846 = vmul.f32 %v559, %v644
      %v847 = vmul.f32 %v560, %v649
      %v848 = vmul.f32 %v561, %v654
      %v849 = vmul.f32 %v562, %v659
      %v850 = vmul.f32 %v563, %v664
      %v851 = vmul.f32 %v564, %v669
      %v852 = vmul.f32 %v565, %v674
      %v853 = vmul.f32 %v566, %v679
      %v854 = vmul.f32 %v567, %v684
      %v855 = vmul.f32 %v568, %v689
      %v856 = vmul.f32 %v569, %v694
      %v857 = vmul.f32 %v570, %v699
      %v858 = vmul.f32 %v571, %v704
      %v859 = vmul.f32 %v572, %v709
      %v860 = vmul.f32 %v573, %v714
      %v861 = vmul.f32 %v574, %v719
      %v862 = vmul.f32 %v575, %v724
      %v863 = vmul.f32 %v576, %v729
      %v864 = vmul.f32 %v577, %v734
      %v865 = vmul.f32 %v578, %v739
      %v866 = vmul.f32 %v579, %v744
      %v867 = vmul.f32 %v580, %v749
      %v868 = vmul.f32 %v581, %v754
      %v869 = vmul.f32 %v582, %v759
      %v870 = vmul.f32 %v583, %v764
      %v871 = vmul.f32 %v584, %v769
      %v872 = vmul.f32 %v585, %v774
      %v873 = vmul.f32 %v586, %v779
      %v874 = vmul.f32 %v587, %v784
      %v875 = vmul.f32 %v588, %v789
      %v876 = vmul.f32 %v589, %v794
      %v877 = vmul.f32 %v590, %v799
      %v878 = vmul.f32 %v591, %v804
      %v879 = vmul.f32 %v592, %v809
      %v880 = vmul.f32 %v593, %v814
      %v881 = vmul.f32 %v594, %v819
      %v882 = vmul.f32 %v595, %v824
      %v883 = vmul.f32 %v596, %v829
      %v884 = vmul.f32 %v597, %v834
      %v885 = vmul.f32 %v598, %v839
      %v886 = vmul.f32 %v599, %v844
      %v887 = vpack.c.bf16 %v846, %v846
      %v888 = vpack.c.bf16 %v847, %v847
      %v889 = vpack.c.bf16 %v848, %v848
      %v890 = vpack.c.bf16 %v849, %v849
      %v891 = vpack.c.bf16 %v850, %v850
      %v892 = vpack.c.bf16 %v851, %v851
      %v893 = vpack.c.bf16 %v852, %v852
      %v894 = vpack.c.bf16 %v853, %v853
      %v895 = vpack.c.bf16 %v854, %v854
      %v896 = vpack.c.bf16 %v855, %v855
      %v897 = vpack.c.bf16 %v856, %v856
      %v898 = vpack.c.bf16 %v857, %v857
      %v899 = vpack.c.bf16 %v858, %v858
      %v900 = vpack.c.bf16 %v859, %v859
      %v901 = vpack.c.bf16 %v860, %v860
      %v902 = vpack.c.bf16 %v861, %v861
      %v903 = vpack.c.bf16 %v862, %v862
      %v904 = vpack.c.bf16 %v863, %v863
      %v905 = vpack.c.bf16 %v864, %v864
      %v906 = vpack.c.bf16 %v865, %v865
      %v907 = vpack.c.bf16 %v866, %v866
      %v908 = vpack.c.bf16 %v867, %v867
      %v909 = vpack.c.bf16 %v868, %v868
      %v910 = vpack.c.bf16 %v869, %v869
      %v911 = vpack.c.bf16 %v870, %v870
      %v912 = vpack.c.bf16 %v871, %v871
      %v913 = vpack.c.bf16 %v872, %v872
      %v914 = vpack.c.bf16 %v873, %v873
      %v915 = vpack.c.bf16 %v874, %v874
      %v916 = vpack.c.bf16 %v875, %v875
      %v917 = vpack.c.bf16 %v876, %v876
      %v918 = vpack.c.bf16 %v877, %v877
      %v919 = vpack.c.bf16 %v878, %v878
      %v920 = vpack.c.bf16 %v879, %v879
      %v921 = vpack.c.bf16 %v880, %v880
      %v922 = vpack.c.bf16 %v881, %v881
      %v923 = vpack.c.bf16 %v882, %v882
      %v924 = vpack.c.bf16 %v883, %v883
      %v925 = vpack.c.bf16 %v884, %v884
      %v926 = vpack.c.bf16 %v885, %v885
      %v927 = vpack.c.bf16 %v886, %v886
      %928 = vst [vmem:[#allocation2 + $0x10] sm:$0xf] %v887
      %929 = vst [vmem:[#allocation2 + $0x14] sm:$0xf] %v888
      %930 = vst [vmem:[#allocation2 + $0x18] sm:$0xf] %v889
      %931 = vst [vmem:[#allocation2 + $0x1c] sm:$0xf] %v890
      %932 = vst [vmem:[#allocation2 + $0x20] sm:$0xf] %v891
      %933 = vst [vmem:[#allocation2 + $0x24] sm:$0xf] %v892
      %934 = vst [vmem:[#allocation2 + $0x28] sm:$0xf] %v893
      %935 = vst [vmem:[#allocation2 + $0x2c] sm:$0xf] %v894
      %936 = vst [vmem:[#allocation2 + $0x30] sm:$0xf] %v895
      %937 = vst [vmem:[#allocation2 + $0x34] sm:$0xf] %v896
      %938 = vst [vmem:[#allocation2 + $0x38] sm:$0xf] %v897
      %939 = vst [vmem:[#allocation2 + $0x3c] sm:$0xf] %v898
      %940 = vst [vmem:[#allocation2 + $0x40] sm:$0xf] %v899
      %941 = vst [vmem:[#allocation2 + $0x44] sm:$0xf] %v900
      %942 = vst [vmem:[#allocation2 + $0x48] sm:$0xf] %v901
      %943 = vst [vmem:[#allocation2 + $0x4c] sm:$0xf] %v902
      %944 = vst [vmem:[#allocation2 + $0x50] sm:$0xf] %v903
      %945 = vst [vmem:[#allocation2 + $0x54] sm:$0xf] %v904
      %946 = vst [vmem:[#allocation2 + $0x58] sm:$0xf] %v905
      %947 = vst [vmem:[#allocation2 + $0x5c] sm:$0xf] %v906
      %948 = vst [vmem:[#allocation2 + $0x60] sm:$0xf] %v907
      %949 = vst [vmem:[#allocation2 + $0x64] sm:$0xf] %v908
      %950 = vst [vmem:[#allocation2 + $0x68] sm:$0xf] %v909
      %951 = vst [vmem:[#allocation2 + $0x6c] sm:$0xf] %v910
      %952 = vst [vmem:[#allocation2 + $0x70] sm:$0xf] %v911
      %953 = vst [vmem:[#allocation2 + $0x74] sm:$0xf] %v912
      %954 = vst [vmem:[#allocation2 + $0x78] sm:$0xf] %v913
      %955 = vst [vmem:[#allocation2 + $0x7c] sm:$0xf] %v914
      %956 = vst [vmem:[#allocation2 + $0x80] sm:$0xf] %v915
      %957 = vst [vmem:[#allocation2 + $0x84] sm:$0xf] %v916
      %958 = vst [vmem:[#allocation2 + $0x88] sm:$0xf] %v917
      %959 = vst [vmem:[#allocation2 + $0x8c] sm:$0xf] %v918
      %960 = vst [vmem:[#allocation2 + $0x90] sm:$0xf] %v919
      %961 = vst [vmem:[#allocation2 + $0x94] sm:$0xf] %v920
      %962 = vst [vmem:[#allocation2 + $0x98] sm:$0xf] %v921
      %963 = vst [vmem:[#allocation2 + $0x9c] sm:$0xf] %v922
      %964 = vst [vmem:[#allocation2 + $0xa0] sm:$0xf] %v923
      %965 = vst [vmem:[#allocation2 + $0xa4] sm:$0xf] %v924
      %966 = vst [vmem:[#allocation2 + $0xa8] sm:$0xf] %v925
      %967 = vst [vmem:[#allocation2 + $0xac] sm:$0xf] %v926
      %968 = vst [vmem:[#allocation2 + $0xb0] sm:$0x3] %v927
      %v969 = vld [vmem:[#allocation2 + $0x4] sm:$0xc]
      %v970 = vld [vmem:[#allocation2 + $0x8] sm:$0xf]
      %v971 = vld [vmem:[#allocation2 + $0xc] sm:$0xf]
      %v972 = vld [vmem:[#allocation2 + $0x10] sm:$0xf]
      %v973 = vld [vmem:[#allocation2 + $0x14] sm:$0xf]
      %v974 = vld [vmem:[#allocation2 + $0x18] sm:$0xf]
      %v975 = vld [vmem:[#allocation2 + $0x1c] sm:$0xf]
      %v976 = vld [vmem:[#allocation2 + $0x20] sm:$0xf]
      %v977 = vld [vmem:[#allocation2 + $0x24] sm:$0xf]
      %v978 = vld [vmem:[#allocation2 + $0x28] sm:$0xf]
      %v979 = vld [vmem:[#allocation2 + $0x2c] sm:$0xf]
      %v980 = vld [vmem:[#allocation2 + $0x30] sm:$0xf]
      %v981 = vld [vmem:[#allocation2 + $0x34] sm:$0xf]
      %v982 = vld [vmem:[#allocation2 + $0x38] sm:$0xf]
      %v983 = vld [vmem:[#allocation2 + $0x3c] sm:$0xf]
      %v984 = vld [vmem:[#allocation2 + $0x40] sm:$0xf]
      %v985 = vld [vmem:[#allocation2 + $0x44] sm:$0xf]
      %v986 = vld [vmem:[#allocation2 + $0x48] sm:$0xf]
      %v987 = vld [vmem:[#allocation2 + $0x4c] sm:$0xf]
      %v988 = vld [vmem:[#allocation2 + $0x50] sm:$0xf]
      %v989 = vld [vmem:[#allocation2 + $0x54] sm:$0xf]
      %v990 = vld [vmem:[#allocation2 + $0x58] sm:$0xf]
      %v991 = vld [vmem:[#allocation2 + $0x5c] sm:$0xf]
      %v992 = vld [vmem:[#allocation2 + $0x60] sm:$0xf]
      %v993 = vld [vmem:[#allocation2 + $0x64] sm:$0xf]
      %v994 = vld [vmem:[#allocation2 + $0x68] sm:$0xf]
      %v995 = vld [vmem:[#allocation2 + $0x6c] sm:$0xf]
      %v996 = vld [vmem:[#allocation2 + $0x70] sm:$0xf]
      %v997 = vld [vmem:[#allocation2 + $0x74] sm:$0xf]
      %v998 = vld [vmem:[#allocation2 + $0x78] sm:$0xf]
      %v999 = vld [vmem:[#allocation2 + $0x7c] sm:$0xf]
      %v1000 = vld [vmem:[#allocation2 + $0x80] sm:$0xf]
      %v1001 = vld [vmem:[#allocation2 + $0x84] sm:$0xf]
      %v1002 = vld [vmem:[#allocation2 + $0x88] sm:$0xf]
      %v1003 = vld [vmem:[#allocation2 + $0x8c] sm:$0xf]
      %v1004 = vld [vmem:[#allocation2 + $0x90] sm:$0xf]
      %v1005 = vld [vmem:[#allocation2 + $0x94] sm:$0xf]
      %v1006 = vld [vmem:[#allocation2 + $0x98] sm:$0xf]
      %v1007 = vld [vmem:[#allocation2 + $0x9c] sm:$0xf]
      %v1008 = vld [vmem:[#allocation2 + $0xa0] sm:$0xf]
      %v1009 = vld [vmem:[#allocation2 + $0xa4] sm:$0xf]
      %v1010 = vld [vmem:[#allocation2 + $0xa8] sm:$0x1]
      %v1011 = vld [vmem:[#allocation2 + $0x4] sm:$0x8]
      %v1012 = vld [vmem:[#allocation2 + $0xa8] sm:$0x3]
      %v1013 = vld [vmem:[#allocation2 + $0xc] sm:$0x8]
      %v1014 = vld [vmem:[#allocation2 + $0xa8] sm:$0xf]
      %v1015 = vld [vmem:[#allocation2 + $0xac] sm:$0xf]
      %v1016 = vld [vmem:[#allocation2 + $0xb0] sm:$0x3]
      %v1017 = vld [vmem:[#allocation2 + $0xb0] sm:$0x7]
      %v1018 = vld [vmem:[#allocation2 + $0xb0] sm:$0xf]
      %v1019 = vld [vmem:[#allocation2 + $0xb4] sm:$0xf]
      %v1020 = vld [vmem:[#allocation2 + $0xb8] sm:$0x7]
      %v1021 = vld [vmem:[#allocation2 + $0x18] sm:$0xe]
      %v1022 = vld [vmem:[#allocation2 + $0xb8] sm:$0xf]
      %v1065 = vunpack.c.l.b16 %v969
      %v1066 = vunpack.c.l.b16 %v970
      %v1067 = vunpack.c.l.b16 %v971
      %v1068 = vunpack.c.l.b16 %v972
      %v1069 = vunpack.c.l.b16 %v973
      %v1070 = vunpack.c.l.b16 %v974
      %v1071 = vunpack.c.l.b16 %v975
      %v1072 = vunpack.c.l.b16 %v976
      %v1073 = vunpack.c.l.b16 %v977
      %v1074 = vunpack.c.l.b16 %v978
      %v1075 = vunpack.c.l.b16 %v979
      %v1076 = vunpack.c.l.b16 %v980
      %v1077 = vunpack.c.l.b16 %v981
      %v1078 = vunpack.c.l.b16 %v982
      %v1079 = vunpack.c.l.b16 %v983
      %v1080 = vunpack.c.l.b16 %v984
      %v1081 = vunpack.c.l.b16 %v985
      %v1082 = vunpack.c.l.b16 %v986
      %v1083 = vunpack.c.l.b16 %v987
      %v1084 = vunpack.c.l.b16 %v988
      %v1085 = vunpack.c.l.b16 %v989
      %v1086 = vunpack.c.l.b16 %v990
      %v1087 = vunpack.c.l.b16 %v991
      %v1088 = vunpack.c.l.b16 %v992
      %v1089 = vunpack.c.l.b16 %v993
      %v1090 = vunpack.c.l.b16 %v994
      %v1091 = vunpack.c.l.b16 %v995
      %v1092 = vunpack.c.l.b16 %v996
      %v1093 = vunpack.c.l.b16 %v997
      %v1094 = vunpack.c.l.b16 %v998
      %v1095 = vunpack.c.l.b16 %v999
      %v1096 = vunpack.c.l.b16 %v1000
      %v1097 = vunpack.c.l.b16 %v1001
      %v1098 = vunpack.c.l.b16 %v1002
      %v1099 = vunpack.c.l.b16 %v1003
      %v1100 = vunpack.c.l.b16 %v1004
      %v1101 = vunpack.c.l.b16 %v1005
      %v1102 = vunpack.c.l.b16 %v1006
      %v1103 = vunpack.c.l.b16 %v1007
      %v1104 = vunpack.c.l.b16 %v1008
      %v1105 = vunpack.c.l.b16 %v1009
      %v1106 = vunpack.c.l.b16 %v1010
      %v1107 = vpack.c.b16 %v1066, %v1065
      %v1108 = vpack.c.b16 %v1068, %v1067
      %v1109 = vpack.c.b16 %v1070, %v1069
      %v1110 = vpack.c.b16 %v1072, %v1071
      %v1111 = vpack.c.b16 %v1074, %v1073
      %v1112 = vpack.c.b16 %v1076, %v1075
      %v1113 = vpack.c.b16 %v1078, %v1077
      %v1114 = vpack.c.b16 %v1080, %v1079
      %v1115 = vpack.c.b16 %v1082, %v1081
      %v1116 = vpack.c.b16 %v1084, %v1083
      %v1117 = vpack.c.b16 %v1086, %v1085
      %v1118 = vpack.c.b16 %v1088, %v1087
      %v1119 = vpack.c.b16 %v1090, %v1089
      %v1120 = vpack.c.b16 %v1092, %v1091
      %v1121 = vpack.c.b16 %v1094, %v1093
      %v1122 = vpack.c.b16 %v1096, %v1095
      %v1123 = vpack.c.b16 %v1098, %v1097
      %v1124 = vpack.c.b16 %v1100, %v1099
      %v1125 = vpack.c.b16 %v1102, %v1101
      %v1126 = vpack.c.b16 %v1104, %v1103
      %v1127 = vpack.c.b16 %v1106, %v1105
      %v1129 = vunpack.c.l.b16 %v1011
      %v1130 = vpack.c.b16 %v1066, %v1129
      %vm1131 = vsmask.f32 7424
      %v1133 = vshrl.u32 %v1130, 16
      %v1135 = vshll.u32 %v1130, 16
      %v1137 = vrot.slane %v1135, 1
      %v1138 = vor.u32 %v1133, %v1137
      %v1140 = vshll.u32 %v1108, 16
      %v1142 = vrot.slane %v1140, 1
      %v1143 = vsel %vm1131, %v1138, %v1142
      %v1144 = vshrl.u32 %v1108, 16
      %v1146 = vor.u32 %v1144, %v1142
      %v1148 = vshll.u32 %v1109, 16
      %v1150 = vrot.slane %v1148, 1
      %v1151 = vsel %vm1131, %v1146, %v1150
      %v1152 = vshrl.u32 %v1109, 16
      %v1154 = vor.u32 %v1152, %v1150
      %v1156 = vshll.u32 %v1110, 16
      %v1158 = vrot.slane %v1156, 1
      %v1159 = vsel %vm1131, %v1154, %v1158
      %v1160 = vshrl.u32 %v1110, 16
      %v1162 = vor.u32 %v1160, %v1158
      %v1164 = vshll.u32 %v1111, 16
      %v1166 = vrot.slane %v1164, 1
      %v1167 = vsel %vm1131, %v1162, %v1166
      %v1168 = vshrl.u32 %v1111, 16
      %v1170 = vor.u32 %v1168, %v1166
      %v1172 = vshll.u32 %v1112, 16
      %v1174 = vrot.slane %v1172, 1
      %v1175 = vsel %vm1131, %v1170, %v1174
      %v1176 = vshrl.u32 %v1112, 16
      %v1178 = vor.u32 %v1176, %v1174
      %v1180 = vshll.u32 %v1113, 16
      %v1182 = vrot.slane %v1180, 1
      %v1183 = vsel %vm1131, %v1178, %v1182
      %v1184 = vshrl.u32 %v1113, 16
      %v1186 = vor.u32 %v1184, %v1182
      %v1188 = vshll.u32 %v1114, 16
      %v1190 = vrot.slane %v1188, 1
      %v1191 = vsel %vm1131, %v1186, %v1190
      %v1192 = vshrl.u32 %v1114, 16
      %v1194 = vor.u32 %v1192, %v1190
      %v1196 = vshll.u32 %v1115, 16
      %v1198 = vrot.slane %v1196, 1
      %v1199 = vsel %vm1131, %v1194, %v1198
      %v1200 = vshrl.u32 %v1115, 16
      %v1202 = vor.u32 %v1200, %v1198
      %v1204 = vshll.u32 %v1116, 16
      %v1206 = vrot.slane %v1204, 1
      %v1207 = vsel %vm1131, %v1202, %v1206
      %v1208 = vshrl.u32 %v1116, 16
      %v1210 = vor.u32 %v1208, %v1206
      %v1212 = vshll.u32 %v1117, 16
      %v1214 = vrot.slane %v1212, 1
      %v1215 = vsel %vm1131, %v1210, %v1214
      %v1216 = vshrl.u32 %v1117, 16
      %v1218 = vor.u32 %v1216, %v1214
      %v1220 = vshll.u32 %v1118, 16
      %v1222 = vrot.slane %v1220, 1
      %v1223 = vsel %vm1131, %v1218, %v1222
      %v1224 = vshrl.u32 %v1118, 16
      %v1226 = vor.u32 %v1224, %v1222
      %v1228 = vshll.u32 %v1119, 16
      %v1230 = vrot.slane %v1228, 1
      %v1231 = vsel %vm1131, %v1226, %v1230
      %v1232 = vshrl.u32 %v1119, 16
      %v1234 = vor.u32 %v1232, %v1230
      %v1236 = vshll.u32 %v1120, 16
      %v1238 = vrot.slane %v1236, 1
      %v1239 = vsel %vm1131, %v1234, %v1238
      %v1240 = vshrl.u32 %v1120, 16
      %v1242 = vor.u32 %v1240, %v1238
      %v1244 = vshll.u32 %v1121, 16
      %v1246 = vrot.slane %v1244, 1
      %v1247 = vsel %vm1131, %v1242, %v1246
      %v1248 = vshrl.u32 %v1121, 16
      %v1250 = vor.u32 %v1248, %v1246
      %v1252 = vshll.u32 %v1122, 16
      %v1254 = vrot.slane %v1252, 1
      %v1255 = vsel %vm1131, %v1250, %v1254
      %v1256 = vshrl.u32 %v1122, 16
      %v1258 = vor.u32 %v1256, %v1254
      %v1260 = vshll.u32 %v1123, 16
      %v1262 = vrot.slane %v1260, 1
      %v1263 = vsel %vm1131, %v1258, %v1262
      %v1264 = vshrl.u32 %v1123, 16
      %v1266 = vor.u32 %v1264, %v1262
      %v1268 = vshll.u32 %v1124, 16
      %v1270 = vrot.slane %v1268, 1
      %v1271 = vsel %vm1131, %v1266, %v1270
      %v1272 = vshrl.u32 %v1124, 16
      %v1274 = vor.u32 %v1272, %v1270
      %v1276 = vshll.u32 %v1125, 16
      %v1278 = vrot.slane %v1276, 1
      %v1279 = vsel %vm1131, %v1274, %v1278
      %v1280 = vshrl.u32 %v1125, 16
      %v1282 = vor.u32 %v1280, %v1278
      %v1284 = vshll.u32 %v1126, 16
      %v1286 = vrot.slane %v1284, 1
      %v1287 = vsel %vm1131, %v1282, %v1286
      %v1288 = vshrl.u32 %v1126, 16
      %v1290 = vor.u32 %v1288, %v1286
      %v1292 = vshll.u32 %v1127, 16
      %v1294 = vrot.slane %v1292, 1
      %v1295 = vsel %vm1131, %v1290, %v1294
      %v1296 = vshrl.u32 %v1127, 16
      %v1298 = vor.u32 %v1296, %v1294
      %v1300 = vunpack.c.l.b16 %v1012
      %v1301 = vpack.c.b16 %v1300, %v1105
      %vm1302 = vcmask 1046528
      %v1303 = vrot.slane %v1130, 1
      %v1304 = vrot.slane %v1108, 1
      %v1305 = vsel %vm1302, %v1303, %v1304
      %v1306 = vrot.slane %v1109, 1
      %v1307 = vsel %vm1302, %v1304, %v1306
      %v1308 = vrot.slane %v1110, 1
      %v1309 = vsel %vm1302, %v1306, %v1308
      %v1310 = vrot.slane %v1111, 1
      %v1311 = vsel %vm1302, %v1308, %v1310
      %v1312 = vrot.slane %v1112, 1
      %v1313 = vsel %vm1302, %v1310, %v1312
      %v1314 = vrot.slane %v1113, 1
      %v1315 = vsel %vm1302, %v1312, %v1314
      %v1316 = vrot.slane %v1114, 1
      %v1317 = vsel %vm1302, %v1314, %v1316
      %v1318 = vrot.slane %v1115, 1
      %v1319 = vsel %vm1302, %v1316, %v1318
      %v1320 = vrot.slane %v1116, 1
      %v1321 = vsel %vm1302, %v1318, %v1320
      %v1322 = vrot.slane %v1117, 1
      %v1323 = vsel %vm1302, %v1320, %v1322
      %v1324 = vrot.slane %v1118, 1
      %v1325 = vsel %vm1302, %v1322, %v1324
      %v1326 = vrot.slane %v1119, 1
      %v1327 = vsel %vm1302, %v1324, %v1326
      %v1328 = vrot.slane %v1120, 1
      %v1329 = vsel %vm1302, %v1326, %v1328
      %v1330 = vrot.slane %v1121, 1
      %v1331 = vsel %vm1302, %v1328, %v1330
      %v1332 = vrot.slane %v1122, 1
      %v1333 = vsel %vm1302, %v1330, %v1332
      %v1334 = vrot.slane %v1123, 1
      %v1335 = vsel %vm1302, %v1332, %v1334
      %v1336 = vrot.slane %v1124, 1
      %v1337 = vsel %vm1302, %v1334, %v1336
      %v1338 = vrot.slane %v1125, 1
      %v1339 = vsel %vm1302, %v1336, %v1338
      %v1340 = vrot.slane %v1126, 1
      %v1341 = vsel %vm1302, %v1338, %v1340
      %v1342 = vrot.slane %v1301, 1
      %v1343 = vsel %vm1302, %v1340, %v1342
      %v1348 = vunpack.c.l.b16 %v1013
      %v1349 = vunpack.c.l.b16 %v1014
      %v1350 = vunpack.c.l.b16 %v1015
      %v1351 = vunpack.c.l.b16 %v1016
      %v1352 = vpack.c.b16 %v1068, %v1348
      %v1353 = vpack.c.b16 %v1349, %v1105
      %v1354 = vpack.c.b16 %v1351, %v1350
      %v1355 = vrot.slane %v1352, 1
      %v1356 = vsel %vm1302, %v1355, %v1306
      %v1357 = vrot.slane %v1353, 1
      %v1358 = vsel %vm1302, %v1340, %v1357
      %v1359 = vrot.slane %v1354, 1
      %v1360 = vsel %vm1302, %v1357, %v1359
      %v1361 = vpack.c.b16 %v1069, %v1068
      %v1362 = vpack.c.b16 %v1071, %v1070
      %v1363 = vpack.c.b16 %v1073, %v1072
      %v1364 = vpack.c.b16 %v1075, %v1074
      %v1365 = vpack.c.b16 %v1077, %v1076
      %v1366 = vpack.c.b16 %v1079, %v1078
      %v1367 = vpack.c.b16 %v1081, %v1080
      %v1368 = vpack.c.b16 %v1083, %v1082
      %v1369 = vpack.c.b16 %v1085, %v1084
      %v1370 = vpack.c.b16 %v1087, %v1086
      %v1371 = vpack.c.b16 %v1089, %v1088
      %v1372 = vpack.c.b16 %v1091, %v1090
      %v1373 = vpack.c.b16 %v1093, %v1092
      %v1374 = vpack.c.b16 %v1095, %v1094
      %v1375 = vpack.c.b16 %v1097, %v1096
      %v1376 = vpack.c.b16 %v1099, %v1098
      %v1377 = vpack.c.b16 %v1101, %v1100
      %v1378 = vpack.c.b16 %v1103, %v1102
      %v1379 = vpack.c.b16 %v1105, %v1104
      %v1380 = vpack.c.b16 %v1350, %v1349
      %v1381 = vpack.c.b16 %v1351, %v1351
      %vm1382 = vsmask.f32 2304
      %v1384 = vshrl.u32 %v1361, 16
      %v1386 = vrot.slane %v1384, 5
      %v1387 = vshll.u32 %v1361, 16
      %v1389 = vrot.slane %v1387, 6
      %v1390 = vor.u32 %v1386, %v1389
      %v1392 = vshrl.u32 %v1362, 16
      %v1394 = vrot.slane %v1392, 5
      %v1395 = vshll.u32 %v1362, 16
      %v1397 = vrot.slane %v1395, 6
      %v1398 = vor.u32 %v1394, %v1397
      %v1399 = vsel %vm1382, %v1390, %v1398
      %v1401 = vshrl.u32 %v1363, 16
      %v1403 = vrot.slane %v1401, 5
      %v1404 = vshll.u32 %v1363, 16
      %v1406 = vrot.slane %v1404, 6
      %v1407 = vor.u32 %v1403, %v1406
      %v1408 = vsel %vm1382, %v1398, %v1407
      %v1410 = vshrl.u32 %v1364, 16
      %v1412 = vrot.slane %v1410, 5
      %v1413 = vshll.u32 %v1364, 16
      %v1415 = vrot.slane %v1413, 6
      %v1416 = vor.u32 %v1412, %v1415
      %v1417 = vsel %vm1382, %v1407, %v1416
      %v1419 = vshrl.u32 %v1365, 16
      %v1421 = vrot.slane %v1419, 5
      %v1422 = vshll.u32 %v1365, 16
      %v1424 = vrot.slane %v1422, 6
      %v1425 = vor.u32 %v1421, %v1424
      %v1426 = vsel %vm1382, %v1416, %v1425
      %v1428 = vshrl.u32 %v1366, 16
      %v1430 = vrot.slane %v1428, 5
      %v1431 = vshll.u32 %v1366, 16
      %v1433 = vrot.slane %v1431, 6
      %v1434 = vor.u32 %v1430, %v1433
      %v1435 = vsel %vm1382, %v1425, %v1434
      %v1437 = vshrl.u32 %v1367, 16
      %v1439 = vrot.slane %v1437, 5
      %v1440 = vshll.u32 %v1367, 16
      %v1442 = vrot.slane %v1440, 6
      %v1443 = vor.u32 %v1439, %v1442
      %v1444 = vsel %vm1382, %v1434, %v1443
      %v1446 = vshrl.u32 %v1368, 16
      %v1448 = vrot.slane %v1446, 5
      %v1449 = vshll.u32 %v1368, 16
      %v1451 = vrot.slane %v1449, 6
      %v1452 = vor.u32 %v1448, %v1451
      %v1453 = vsel %vm1382, %v1443, %v1452
      %v1455 = vshrl.u32 %v1369, 16
      %v1457 = vrot.slane %v1455, 5
      %v1458 = vshll.u32 %v1369, 16
      %v1460 = vrot.slane %v1458, 6
      %v1461 = vor.u32 %v1457, %v1460
      %v1462 = vsel %vm1382, %v1452, %v1461
      %v1464 = vshrl.u32 %v1370, 16
      %v1466 = vrot.slane %v1464, 5
      %v1467 = vshll.u32 %v1370, 16
      %v1469 = vrot.slane %v1467, 6
      %v1470 = vor.u32 %v1466, %v1469
      %v1471 = vsel %vm1382, %v1461, %v1470
      %v1473 = vshrl.u32 %v1371, 16
      %v1475 = vrot.slane %v1473, 5
      %v1476 = vshll.u32 %v1371, 16
      %v1478 = vrot.slane %v1476, 6
      %v1479 = vor.u32 %v1475, %v1478
      %v1480 = vsel %vm1382, %v1470, %v1479
      %v1482 = vshrl.u32 %v1372, 16
      %v1484 = vrot.slane %v1482, 5
      %v1485 = vshll.u32 %v1372, 16
      %v1487 = vrot.slane %v1485, 6
      %v1488 = vor.u32 %v1484, %v1487
      %v1489 = vsel %vm1382, %v1479, %v1488
      %v1491 = vshrl.u32 %v1373, 16
      %v1493 = vrot.slane %v1491, 5
      %v1494 = vshll.u32 %v1373, 16
      %v1496 = vrot.slane %v1494, 6
      %v1497 = vor.u32 %v1493, %v1496
      %v1498 = vsel %vm1382, %v1488, %v1497
      %v1500 = vshrl.u32 %v1374, 16
      %v1502 = vrot.slane %v1500, 5
      %v1503 = vshll.u32 %v1374, 16
      %v1505 = vrot.slane %v1503, 6
      %v1506 = vor.u32 %v1502, %v1505
      %v1507 = vsel %vm1382, %v1497, %v1506
      %v1509 = vshrl.u32 %v1375, 16
      %v1511 = vrot.slane %v1509, 5
      %v1512 = vshll.u32 %v1375, 16
      %v1514 = vrot.slane %v1512, 6
      %v1515 = vor.u32 %v1511, %v1514
      %v1516 = vsel %vm1382, %v1506, %v1515
      %v1518 = vshrl.u32 %v1376, 16
      %v1520 = vrot.slane %v1518, 5
      %v1521 = vshll.u32 %v1376, 16
      %v1523 = vrot.slane %v1521, 6
      %v1524 = vor.u32 %v1520, %v1523
      %v1525 = vsel %vm1382, %v1515, %v1524
      %v1527 = vshrl.u32 %v1377, 16
      %v1529 = vrot.slane %v1527, 5
      %v1530 = vshll.u32 %v1377, 16
      %v1532 = vrot.slane %v1530, 6
      %v1533 = vor.u32 %v1529, %v1532
      %v1534 = vsel %vm1382, %v1524, %v1533
      %v1536 = vshrl.u32 %v1378, 16
      %v1538 = vrot.slane %v1536, 5
      %v1539 = vshll.u32 %v1378, 16
      %v1541 = vrot.slane %v1539, 6
      %v1542 = vor.u32 %v1538, %v1541
      %v1543 = vsel %vm1382, %v1533, %v1542
      %v1545 = vshrl.u32 %v1379, 16
      %v1547 = vrot.slane %v1545, 5
      %v1548 = vshll.u32 %v1379, 16
      %v1550 = vrot.slane %v1548, 6
      %v1551 = vor.u32 %v1547, %v1550
      %v1552 = vsel %vm1382, %v1542, %v1551
      %v1554 = vshrl.u32 %v1380, 16
      %v1556 = vrot.slane %v1554, 5
      %v1557 = vshll.u32 %v1380, 16
      %v1559 = vrot.slane %v1557, 6
      %v1560 = vor.u32 %v1556, %v1559
      %v1561 = vsel %vm1382, %v1551, %v1560
      %v1563 = vshrl.u32 %v1381, 16
      %v1565 = vrot.slane %v1563, 5
      %v1566 = vshll.u32 %v1381, 16
      %v1568 = vrot.slane %v1566, 6
      %v1569 = vor.u32 %v1565, %v1568
      %v1570 = vsel %vm1382, %v1560, %v1569
      %v1572 = vunpack.c.l.b16 %v1017
      %v1573 = vpack.c.b16 %v1572, %v1572
      %vm1574 = vcmask 1041408
      %v1575 = vrot.slane %v1361, 6
      %v1576 = vrot.slane %v1362, 6
      %v1577 = vsel %vm1574, %v1575, %v1576
      %v1578 = vrot.slane %v1363, 6
      %v1579 = vsel %vm1574, %v1576, %v1578
      %v1580 = vrot.slane %v1364, 6
      %v1581 = vsel %vm1574, %v1578, %v1580
      %v1582 = vrot.slane %v1365, 6
      %v1583 = vsel %vm1574, %v1580, %v1582
      %v1584 = vrot.slane %v1366, 6
      %v1585 = vsel %vm1574, %v1582, %v1584
      %v1586 = vrot.slane %v1367, 6
      %v1587 = vsel %vm1574, %v1584, %v1586
      %v1588 = vrot.slane %v1368, 6
      %v1589 = vsel %vm1574, %v1586, %v1588
      %v1590 = vrot.slane %v1369, 6
      %v1591 = vsel %vm1574, %v1588, %v1590
      %v1592 = vrot.slane %v1370, 6
      %v1593 = vsel %vm1574, %v1590, %v1592
      %v1594 = vrot.slane %v1371, 6
      %v1595 = vsel %vm1574, %v1592, %v1594
      %v1596 = vrot.slane %v1372, 6
      %v1597 = vsel %vm1574, %v1594, %v1596
      %v1598 = vrot.slane %v1373, 6
      %v1599 = vsel %vm1574, %v1596, %v1598
      %v1600 = vrot.slane %v1374, 6
      %v1601 = vsel %vm1574, %v1598, %v1600
      %v1602 = vrot.slane %v1375, 6
      %v1603 = vsel %vm1574, %v1600, %v1602
      %v1604 = vrot.slane %v1376, 6
      %v1605 = vsel %vm1574, %v1602, %v1604
      %v1606 = vrot.slane %v1377, 6
      %v1607 = vsel %vm1574, %v1604, %v1606
      %v1608 = vrot.slane %v1378, 6
      %v1609 = vsel %vm1574, %v1606, %v1608
      %v1610 = vrot.slane %v1379, 6
      %v1611 = vsel %vm1574, %v1608, %v1610
      %v1612 = vrot.slane %v1380, 6
      %v1613 = vsel %vm1574, %v1610, %v1612
      %v1614 = vrot.slane %v1573, 6
      %v1615 = vsel %vm1574, %v1612, %v1614
      %v1619 = vunpack.c.l.b16 %v1018
      %v1620 = vunpack.c.l.b16 %v1019
      %v1621 = vunpack.c.l.b16 %v1020
      %v1622 = vpack.c.b16 %v1620, %v1619
      %v1623 = vpack.c.b16 %v1621, %v1621
      %v1624 = vrot.slane %v1622, 6
      %v1625 = vsel %vm1574, %v1612, %v1624
      %v1626 = vrot.slane %v1623, 6
      %v1627 = vsel %vm1574, %v1624, %v1626
      %v1629 = vunpack.c.l.b16 %v1021
      %v1630 = vpack.c.b16 %v1071, %v1629
      %vm1631 = vsmask.f32 1280
      %v1633 = vshrl.u32 %v1630, 16
      %v1635 = vrot.slane %v1633, 6
      %v1636 = vshll.u32 %v1630, 16
      %v1638 = vrot.slane %v1636, 7
      %v1639 = vor.u32 %v1635, %v1638
      %v1640 = vrot.slane %v1401, 6
      %v1641 = vrot.slane %v1404, 7
      %v1642 = vor.u32 %v1640, %v1641
      %v1643 = vsel %vm1631, %v1639, %v1642
      %v1644 = vrot.slane %v1410, 6
      %v1645 = vrot.slane %v1413, 7
      %v1646 = vor.u32 %v1644, %v1645
      %v1647 = vsel %vm1631, %v1642, %v1646
      %v1648 = vrot.slane %v1419, 6
      %v1649 = vrot.slane %v1422, 7
      %v1650 = vor.u32 %v1648, %v1649
      %v1651 = vsel %vm1631, %v1646, %v1650
      %v1652 = vrot.slane %v1428, 6
      %v1653 = vrot.slane %v1431, 7
      %v1654 = vor.u32 %v1652, %v1653
      %v1655 = vsel %vm1631, %v1650, %v1654
      %v1656 = vrot.slane %v1437, 6
      %v1657 = vrot.slane %v1440, 7
      %v1658 = vor.u32 %v1656, %v1657
      %v1659 = vsel %vm1631, %v1654, %v1658
      %v1660 = vrot.slane %v1446, 6
      %v1661 = vrot.slane %v1449, 7
      %v1662 = vor.u32 %v1660, %v1661
      %v1663 = vsel %vm1631, %v1658, %v1662
      %v1664 = vrot.slane %v1455, 6
      %v1665 = vrot.slane %v1458, 7
      %v1666 = vor.u32 %v1664, %v1665
      %v1667 = vsel %vm1631, %v1662, %v1666
      %v1668 = vrot.slane %v1464, 6
      %v1669 = vrot.slane %v1467, 7
      %v1670 = vor.u32 %v1668, %v1669
      %v1671 = vsel %vm1631, %v1666, %v1670
      %v1672 = vrot.slane %v1473, 6
      %v1673 = vrot.slane %v1476, 7
      %v1674 = vor.u32 %v1672, %v1673
      %v1675 = vsel %vm1631, %v1670, %v1674
      %v1676 = vrot.slane %v1482, 6
      %v1677 = vrot.slane %v1485, 7
      %v1678 = vor.u32 %v1676, %v1677
      %v1679 = vsel %vm1631, %v1674, %v1678
      %v1680 = vrot.slane %v1491, 6
      %v1681 = vrot.slane %v1494, 7
      %v1682 = vor.u32 %v1680, %v1681
      %v1683 = vsel %vm1631, %v1678, %v1682
      %v1684 = vrot.slane %v1500, 6
      %v1685 = vrot.slane %v1503, 7
      %v1686 = vor.u32 %v1684, %v1685
      %v1687 = vsel %vm1631, %v1682, %v1686
      %v1688 = vrot.slane %v1509, 6
      %v1689 = vrot.slane %v1512, 7
      %v1690 = vor.u32 %v1688, %v1689
      %v1691 = vsel %vm1631, %v1686, %v1690
      %v1692 = vrot.slane %v1518, 6
      %v1693 = vrot.slane %v1521, 7
      %v1694 = vor.u32 %v1692, %v1693
      %v1695 = vsel %vm1631, %v1690, %v1694
      %v1696 = vrot.slane %v1527, 6
      %v1697 = vrot.slane %v1530, 7
      %v1698 = vor.u32 %v1696, %v1697
      %v1699 = vsel %vm1631, %v1694, %v1698
      %v1700 = vrot.slane %v1536, 6
      %v1701 = vrot.slane %v1539, 7
      %v1702 = vor.u32 %v1700, %v1701
      %v1703 = vsel %vm1631, %v1698, %v1702
      %v1704 = vrot.slane %v1545, 6
      %v1705 = vrot.slane %v1548, 7
      %v1706 = vor.u32 %v1704, %v1705
      %v1707 = vsel %vm1631, %v1702, %v1706
      %v1708 = vrot.slane %v1554, 6
      %v1709 = vrot.slane %v1557, 7
      %v1710 = vor.u32 %v1708, %v1709
      %v1711 = vsel %vm1631, %v1706, %v1710
      %v1713 = vshrl.u32 %v1622, 16
      %v1715 = vrot.slane %v1713, 6
      %v1716 = vshll.u32 %v1622, 16
      %v1718 = vrot.slane %v1716, 7
      %v1719 = vor.u32 %v1715, %v1718
      %v1720 = vsel %vm1631, %v1710, %v1719
      %v1722 = vshrl.u32 %v1623, 16
      %v1724 = vrot.slane %v1722, 6
      %v1725 = vshll.u32 %v1623, 16
      %v1727 = vrot.slane %v1725, 7
      %v1728 = vor.u32 %v1724, %v1727
      %v1729 = vsel %vm1631, %v1719, %v1728
      %v1731 = vunpack.c.l.b16 %v1022
      %v1732 = vpack.c.b16 %v1731, %v1731
      %vm1733 = vcmask 1040384
      %v1734 = vrot.slane %v1630, 7
      %v1735 = vrot.slane %v1363, 7
      %v1736 = vsel %vm1733, %v1734, %v1735
      %v1737 = vrot.slane %v1364, 7
      %v1738 = vsel %vm1733, %v1735, %v1737
      %v1739 = vrot.slane %v1365, 7
      %v1740 = vsel %vm1733, %v1737, %v1739
      %v1741 = vrot.slane %v1366, 7
      %v1742 = vsel %vm1733, %v1739, %v1741
      %v1743 = vrot.slane %v1367, 7
      %v1744 = vsel %vm1733, %v1741, %v1743
      %v1745 = vrot.slane %v1368, 7
      %v1746 = vsel %vm1733, %v1743, %v1745
      %v1747 = vrot.slane %v1369, 7
      %v1748 = vsel %vm1733, %v1745, %v1747
      %v1749 = vrot.slane %v1370, 7
      %v1750 = vsel %vm1733, %v1747, %v1749
      %v1751 = vrot.slane %v1371, 7
      %v1752 = vsel %vm1733, %v1749, %v1751
      %v1753 = vrot.slane %v1372, 7
      %v1754 = vsel %vm1733, %v1751, %v1753
      %v1755 = vrot.slane %v1373, 7
      %v1756 = vsel %vm1733, %v1753, %v1755
      %v1757 = vrot.slane %v1374, 7
      %v1758 = vsel %vm1733, %v1755, %v1757
      %v1759 = vrot.slane %v1375, 7
      %v1760 = vsel %vm1733, %v1757, %v1759
      %v1761 = vrot.slane %v1376, 7
      %v1762 = vsel %vm1733, %v1759, %v1761
      %v1763 = vrot.slane %v1377, 7
      %v1764 = vsel %vm1733, %v1761, %v1763
      %v1765 = vrot.slane %v1378, 7
      %v1766 = vsel %vm1733, %v1763, %v1765
      %v1767 = vrot.slane %v1379, 7
      %v1768 = vsel %vm1733, %v1765, %v1767
      %v1769 = vrot.slane %v1380, 7
      %v1770 = vsel %vm1733, %v1767, %v1769
      %v1771 = vrot.slane %v1622, 7
      %v1772 = vsel %vm1733, %v1769, %v1771
      %v1773 = vrot.slane %v1732, 7
      %v1774 = vsel %vm1733, %v1771, %v1773
      %v1775 = vld [vmem:[%s4] sm:$0xf]
      %v1776 = vld [vmem:[%s4 + $0x4] sm:$0xf]
      %v1777 = vld [vmem:[%s4 + $0x8] sm:$0xf]
      %v1778 = vld [vmem:[%s4 + $0xc] sm:$0xf]
      %v1779 = vld [vmem:[%s4 + $0x10] sm:$0xf]
      %v1780 = vld [vmem:[%s4 + $0x14] sm:$0xf]
      %v1781 = vld [vmem:[%s4 + $0x18] sm:$0xf]
      %v1782 = vld [vmem:[%s4 + $0x1c] sm:$0xf]
      %v1783 = vld [vmem:[%s4 + $0x20] sm:$0xf]
      %v1784 = vld [vmem:[%s4 + $0x24] sm:$0xf]
      %v1785 = vld [vmem:[%s4 + $0x28] sm:$0xf]
      %v1786 = vld [vmem:[%s4 + $0x2c] sm:$0xf]
      %v1787 = vld [vmem:[%s4 + $0x30] sm:$0xf]
      %v1788 = vld [vmem:[%s4 + $0x34] sm:$0xf]
      %v1789 = vld [vmem:[%s4 + $0x38] sm:$0xf]
      %v1790 = vld [vmem:[%s4 + $0x3c] sm:$0xf]
      %v1791 = vld [vmem:[%s4 + $0x40] sm:$0xf]
      %v1792 = vld [vmem:[%s4 + $0x44] sm:$0xf]
      %v1793 = vld [vmem:[%s4 + $0x48] sm:$0xf]
      %v1794 = vld [vmem:[%s4 + $0x4c] sm:$0xf]
      %v1795 = vld [vmem:[%s4 + $0x50] sm:$0xf]
      %v1796 = vld [vmem:[%s4 + $0x54] sm:$0xf]
      %v1797 = vld [vmem:[%s4 + $0x58] sm:$0xf]
      %v1798 = vld [vmem:[%s4 + $0x5c] sm:$0xf]
      %v1799 = vld [vmem:[%s4 + $0x60] sm:$0xf]
      %v1800 = vld [vmem:[%s4 + $0x64] sm:$0xf]
      %v1801 = vld [vmem:[%s4 + $0x68] sm:$0xf]
      %v1802 = vld [vmem:[%s4 + $0x6c] sm:$0xf]
      %v1803 = vld [vmem:[%s4 + $0x70] sm:$0xf]
      %v1804 = vld [vmem:[%s4 + $0x74] sm:$0xf]
      %v1805 = vld [vmem:[%s4 + $0x78] sm:$0xf]
      %v1806 = vld [vmem:[%s4 + $0x7c] sm:$0xf]
      %v1807 = vld [vmem:[%s4 + $0x80] sm:$0xf]
      %v1808 = vld [vmem:[%s4 + $0x84] sm:$0xf]
      %v1809 = vld [vmem:[%s4 + $0x88] sm:$0xf]
      %v1810 = vld [vmem:[%s4 + $0x8c] sm:$0xf]
      %v1811 = vld [vmem:[%s4 + $0x90] sm:$0xf]
      %v1812 = vld [vmem:[%s4 + $0x94] sm:$0xf]
      %v1813 = vld [vmem:[%s4 + $0x98] sm:$0xf]
      %v1814 = vld [vmem:[%s4 + $0x9c] sm:$0xf]
      %v1815 = vld [vmem:[%s4 + $0xa0] sm:$0xf]
      %v1816 = vld [vmem:[%s4 + $0xa4] sm:$0xf]
      %v1817 = vld [vmem:[%s4 + $0xa8] sm:$0xf]
      %v1818 = vld [vmem:[%s4 + $0xac] sm:$0xf]
      %v1819 = vld [vmem:[%s4 + $0xb0] sm:$0xf]
      %v1820 = vld [vmem:[%s4 + $0xb4] sm:$0xf]
      %v1821 = vld [vmem:[%s4 + $0xb8] sm:$0xf]
      %v1822 = vld [vmem:[%s4 + $0xbc] sm:$0xf]
      %v1823 = vld [vmem:[%s4 + $0xc0] sm:$0xf]
      %v1824 = vld [vmem:[%s4 + $0xc4] sm:$0xf]
      %v1825 = vld [vmem:[%s4 + $0xc8] sm:$0xf]
      %v1826 = vld [vmem:[%s4 + $0xcc] sm:$0xf]
      %v1827 = vld [vmem:[%s4 + $0xd0] sm:$0xf]
      %v1828 = vld [vmem:[%s4 + $0xd4] sm:$0xf]
      %v1829 = vld [vmem:[%s4 + $0xd8] sm:$0xf]
      %v1830 = vld [vmem:[%s4 + $0xdc] sm:$0xf]
      %v1831 = vld [vmem:[%s4 + $0xe0] sm:$0xf]
      %v1832 = vld [vmem:[%s4 + $0xe4] sm:$0xf]
      %v1833 = vld [vmem:[%s4 + $0xe8] sm:$0xf]
      %v1834 = vld [vmem:[%s4 + $0xec] sm:$0xf]
      %v1835 = vld [vmem:[%s4 + $0xf0] sm:$0xf]
      %v1836 = vld [vmem:[%s4 + $0xf4] sm:$0xf]
      %v1837 = vld [vmem:[%s4 + $0xf8] sm:$0xf]
      %v1838 = vld [vmem:[%s4 + $0xfc] sm:$0xf]
      %v1839 = vld [vmem:[%s4 + $0x100] sm:$0xf]
      %v1840 = vld [vmem:[%s4 + $0x104] sm:$0xf]
      %v1841 = vld [vmem:[%s4 + $0x108] sm:$0xf]
      %v1842 = vld [vmem:[%s4 + $0x10c] sm:$0xf]
      %v1843 = vld [vmem:[%s4 + $0x110] sm:$0xf]
      %v1844 = vld [vmem:[%s4 + $0x114] sm:$0xf]
      %v1845 = vld [vmem:[%s4 + $0x118] sm:$0xf]
      %v1846 = vld [vmem:[%s4 + $0x11c] sm:$0xf]
      %v1847 = vld [vmem:[%s4 + $0x120] sm:$0xf]
      %v1848 = vld [vmem:[%s4 + $0x124] sm:$0xf]
      %v1849 = vld [vmem:[%s4 + $0x128] sm:$0xf]
      %v1850 = vld [vmem:[%s4 + $0x12c] sm:$0xf]
      %v1851 = vld [vmem:[%s4 + $0x130] sm:$0xf]
      %v1852 = vld [vmem:[%s4 + $0x134] sm:$0xf]
      %v1853 = vld [vmem:[%s4 + $0x138] sm:$0xf]
      %v1854 = vld [vmem:[%s4 + $0x13c] sm:$0xf]
      %v1855 = vld [vmem:[%s4 + $0x140] sm:$0xf]
      %v1856 = vld [vmem:[%s4 + $0x144] sm:$0xf]
      %v1857 = vld [vmem:[%s4 + $0x148] sm:$0xf]
      %v1858 = vld [vmem:[%s4 + $0x14c] sm:$0xf]
      %v1859 = vld [vmem:[%s4 + $0x150] sm:$0xf]
      %v1860 = vld [vmem:[%s4 + $0x154] sm:$0xf]
      %v1861 = vld [vmem:[%s4 + $0x158] sm:$0xf]
      %v1862 = vld [vmem:[%s4 + $0x15c] sm:$0xf]
      %v1863 = vld [vmem:[%s4 + $0x160] sm:$0xf]
      %v1864 = vld [vmem:[%s4 + $0x164] sm:$0xf]
      %v1865 = vld [vmem:[%s4 + $0x168] sm:$0xf]
      %v1866 = vld [vmem:[%s4 + $0x16c] sm:$0xf]
      %v1867 = vld [vmem:[%s4 + $0x170] sm:$0xf]
      %v1868 = vld [vmem:[%s4 + $0x174] sm:$0xf]
      %v1869 = vld [vmem:[%s4 + $0x178] sm:$0xf]
      %v1870 = vld [vmem:[%s4 + $0x17c] sm:$0xf]
      %v1871 = vld [vmem:[%s4 + $0x180] sm:$0xf]
      %v1872 = vld [vmem:[%s4 + $0x184] sm:$0xf]
      %v1873 = vld [vmem:[%s4 + $0x188] sm:$0xf]
      %v1874 = vld [vmem:[%s4 + $0x18c] sm:$0xf]
      %v1875 = vld [vmem:[%s4 + $0x190] sm:$0xf]
      %v1876 = vld [vmem:[%s4 + $0x194] sm:$0xf]
      %v1877 = vld [vmem:[%s4 + $0x198] sm:$0xf]
      %v1878 = vld [vmem:[%s4 + $0x19c] sm:$0xf]
      %v1879 = vld [vmem:[%s4 + $0x1a0] sm:$0xf]
      %v1880 = vld [vmem:[%s4 + $0x1a4] sm:$0xf]
      %v1881 = vld [vmem:[%s4 + $0x1a8] sm:$0xf]
      %v1882 = vld [vmem:[%s4 + $0x1ac] sm:$0xf]
      %v1883 = vld [vmem:[%s4 + $0x1b0] sm:$0xf]
      %v1884 = vld [vmem:[%s4 + $0x1b4] sm:$0xf]
      %v1885 = vld [vmem:[%s4 + $0x1b8] sm:$0xf]
      %v1886 = vld [vmem:[%s4 + $0x1bc] sm:$0xf]
      %v1887 = vld [vmem:[%s4 + $0x1c0] sm:$0xf]
      %v1888 = vld [vmem:[%s4 + $0x1c4] sm:$0xf]
      %v1889 = vld [vmem:[%s4 + $0x1c8] sm:$0xf]
      %v1890 = vld [vmem:[%s4 + $0x1cc] sm:$0xf]
      %v1891 = vld [vmem:[%s4 + $0x1d0] sm:$0xf]
      %v1892 = vld [vmem:[%s4 + $0x1d4] sm:$0xf]
      %v1893 = vld [vmem:[%s4 + $0x1d8] sm:$0xf]
      %v1894 = vld [vmem:[%s4 + $0x1dc] sm:$0xf]
      %v1895 = vld [vmem:[%s4 + $0x1e0] sm:$0xf]
      %v1896 = vld [vmem:[%s4 + $0x1e4] sm:$0xf]
      %v1897 = vld [vmem:[%s4 + $0x1e8] sm:$0xf]
      %v1898 = vld [vmem:[%s4 + $0x1ec] sm:$0xf]
      %v1899 = vld [vmem:[%s4 + $0x1f0] sm:$0xf]
      %v1900 = vld [vmem:[%s4 + $0x1f4] sm:$0xf]
      %v1901 = vld [vmem:[%s4 + $0x1f8] sm:$0xf]
      %v1902 = vld [vmem:[%s4 + $0x1fc] sm:$0xf]
      %v1903 = vld [vmem:[%s4 + $0x200] sm:$0xf]
      %v1904 = vld [vmem:[%s4 + $0x204] sm:$0xf]
      %v1905 = vld [vmem:[%s4 + $0x208] sm:$0xf]
      %v1906 = vld [vmem:[%s4 + $0x20c] sm:$0xf]
      %v1907 = vld [vmem:[%s4 + $0x210] sm:$0xf]
      %v1908 = vld [vmem:[%s4 + $0x214] sm:$0xf]
      %v1909 = vld [vmem:[%s4 + $0x218] sm:$0xf]
      %v1910 = vld [vmem:[%s4 + $0x21c] sm:$0xf]
      %v1911 = vld [vmem:[%s4 + $0x220] sm:$0xf]
      %v1912 = vld [vmem:[%s4 + $0x224] sm:$0xf]
      %v1913 = vld [vmem:[%s4 + $0x228] sm:$0xf]
      %v1914 = vld [vmem:[%s4 + $0x22c] sm:$0xf]
      %v1915 = vld [vmem:[%s4 + $0x230] sm:$0xf]
      %v1916 = vld [vmem:[%s4 + $0x234] sm:$0xf]
      %v1917 = vld [vmem:[%s4 + $0x238] sm:$0xf]
      %v1918 = vld [vmem:[%s4 + $0x23c] sm:$0xf]
      %v1919 = vld [vmem:[%s5] sm:$0x1]
      %v1921 = vperm.slane %v1919, 0
      %vm1923 = vsmask.f32 5376
      %v1925 = vshrl.u32 %v1107, 16
      %v1927 = vrot.slane %v1925, 2
      %v1928 = vshll.u32 %v1107, 16
      %v1930 = vrot.slane %v1928, 3
      %v1931 = vor.u32 %v1927, %v1930
      %v1932 = vrot.slane %v1144, 2
      %v1933 = vrot.slane %v1140, 3
      %v1934 = vor.u32 %v1932, %v1933
      %v1935 = vsel %vm1923, %v1931, %v1934
      %v1937 = vshrl.u32 %v1143, 16
      %v1939 = vrot.slane %v1937, 2
      %v1940 = vshll.u32 %v1143, 16
      %v1942 = vrot.slane %v1940, 3
      %v1943 = vor.u32 %v1939, %v1942
      %v1945 = vshrl.u32 %v1151, 16
      %v1947 = vrot.slane %v1945, 2
      %v1948 = vshll.u32 %v1151, 16
      %v1950 = vrot.slane %v1948, 3
      %v1951 = vor.u32 %v1947, %v1950
      %v1952 = vsel %vm1923, %v1943, %v1951
      %v1954 = vshrl.u32 %v1305, 16
      %v1956 = vrot.slane %v1954, 2
      %v1957 = vshll.u32 %v1305, 16
      %v1959 = vrot.slane %v1957, 3
      %v1960 = vor.u32 %v1956, %v1959
      %v1962 = vshrl.u32 %v1307, 16
      %v1964 = vrot.slane %v1962, 2
      %v1965 = vshll.u32 %v1307, 16
      %v1967 = vrot.slane %v1965, 3
      %v1968 = vor.u32 %v1964, %v1967
      %v1969 = vsel %vm1923, %v1960, %v1968
      %v1971 = vshrl.u32 %v1356, 16
      %v1973 = vrot.slane %v1971, 2
      %v1974 = vshll.u32 %v1356, 16
      %v1976 = vrot.slane %v1974, 3
      %v1977 = vor.u32 %v1973, %v1976
      %v1979 = vshrl.u32 %v1309, 16
      %v1981 = vrot.slane %v1979, 2
      %v1982 = vshll.u32 %v1309, 16
      %v1984 = vrot.slane %v1982, 3
      %v1985 = vor.u32 %v1981, %v1984
      %v1986 = vsel %vm1923, %v1977, %v1985
      %v1988 = vshrl.u32 %v1390, 16
      %v1990 = vrot.slane %v1988, 2
      %v1991 = vshll.u32 %v1390, 16
      %v1993 = vrot.slane %v1991, 3
      %v1994 = vor.u32 %v1990, %v1993
      %v1996 = vshrl.u32 %v1399, 16
      %v1998 = vrot.slane %v1996, 2
      %v1999 = vshll.u32 %v1399, 16
      %v2001 = vrot.slane %v1999, 3
      %v2002 = vor.u32 %v1998, %v2001
      %v2003 = vsel %vm1923, %v1994, %v2002
      %v2005 = vshrl.u32 %v1575, 16
      %v2007 = vrot.slane %v2005, 2
      %v2008 = vshll.u32 %v1575, 16
      %v2010 = vrot.slane %v2008, 3
      %v2011 = vor.u32 %v2007, %v2010
      %v2013 = vshrl.u32 %v1577, 16
      %v2015 = vrot.slane %v2013, 2
      %v2016 = vshll.u32 %v1577, 16
      %v2018 = vrot.slane %v2016, 3
      %v2019 = vor.u32 %v2015, %v2018
      %v2020 = vsel %vm1923, %v2011, %v2019
      %v2022 = vshrl.u32 %v1576, 16
      %v2024 = vrot.slane %v2022, 2
      %v2025 = vshll.u32 %v1576, 16
      %v2027 = vrot.slane %v2025, 3
      %v2028 = vor.u32 %v2024, %v2027
      %v2030 = vshrl.u32 %v1579, 16
      %v2032 = vrot.slane %v2030, 2
      %v2033 = vshll.u32 %v1579, 16
      %v2035 = vrot.slane %v2033, 3
      %v2036 = vor.u32 %v2032, %v2035
      %v2037 = vsel %vm1923, %v2028, %v2036
      %v2039 = vshrl.u32 %v1639, 16
      %v2041 = vrot.slane %v2039, 2
      %v2042 = vshll.u32 %v1639, 16
      %v2044 = vrot.slane %v2042, 3
      %v2045 = vor.u32 %v2041, %v2044
      %v2047 = vshrl.u32 %v1643, 16
      %v2049 = vrot.slane %v2047, 2
      %v2050 = vshll.u32 %v1643, 16
      %v2052 = vrot.slane %v2050, 3
      %v2053 = vor.u32 %v2049, %v2052
      %v2054 = vsel %vm1923, %v2045, %v2053
      %v2056 = vshrl.u32 %v1734, 16
      %v2058 = vrot.slane %v2056, 2
      %v2059 = vshll.u32 %v1734, 16
      %v2061 = vrot.slane %v2059, 3
      %v2062 = vor.u32 %v2058, %v2061
      %v2064 = vshrl.u32 %v1736, 16
      %v2066 = vrot.slane %v2064, 2
      %v2067 = vshll.u32 %v1736, 16
      %v2069 = vrot.slane %v2067, 3
      %v2070 = vor.u32 %v2066, %v2069
      %v2071 = vsel %vm1923, %v2062, %v2070
      %v2072 = vrot.slane %v1152, 2
      %v2073 = vrot.slane %v1148, 3
      %v2074 = vor.u32 %v2072, %v2073
      %v2075 = vsel %vm1923, %v1934, %v2074
      %v2077 = vshrl.u32 %v1159, 16
      %v2079 = vrot.slane %v2077, 2
      %v2080 = vshll.u32 %v1159, 16
      %v2082 = vrot.slane %v2080, 3
      %v2083 = vor.u32 %v2079, %v2082
      %v2084 = vsel %vm1923, %v1951, %v2083
      %v2085 = vsel %vm1923, %v1968, %v1985
      %v2087 = vshrl.u32 %v1311, 16
      %v2089 = vrot.slane %v2087, 2
      %v2090 = vshll.u32 %v1311, 16
      %v2092 = vrot.slane %v2090, 3
      %v2093 = vor.u32 %v2089, %v2092
      %v2094 = vsel %vm1923, %v1985, %v2093
      %v2096 = vshrl.u32 %v1408, 16
      %v2098 = vrot.slane %v2096, 2
      %v2099 = vshll.u32 %v1408, 16
      %v2101 = vrot.slane %v2099, 3
      %v2102 = vor.u32 %v2098, %v2101
      %v2103 = vsel %vm1923, %v2002, %v2102
      %v2104 = vsel %vm1923, %v2019, %v2036
      %v2106 = vshrl.u32 %v1581, 16
      %v2108 = vrot.slane %v2106, 2
      %v2109 = vshll.u32 %v1581, 16
      %v2111 = vrot.slane %v2109, 3
      %v2112 = vor.u32 %v2108, %v2111
      %v2113 = vsel %vm1923, %v2036, %v2112
      %v2115 = vshrl.u32 %v1647, 16
      %v2117 = vrot.slane %v2115, 2
      %v2118 = vshll.u32 %v1647, 16
      %v2120 = vrot.slane %v2118, 3
      %v2121 = vor.u32 %v2117, %v2120
      %v2122 = vsel %vm1923, %v2053, %v2121
      %v2124 = vshrl.u32 %v1738, 16
      %v2126 = vrot.slane %v2124, 2
      %v2127 = vshll.u32 %v1738, 16
      %v2129 = vrot.slane %v2127, 3
      %v2130 = vor.u32 %v2126, %v2129
      %v2131 = vsel %vm1923, %v2070, %v2130
      %v2132 = vrot.slane %v1160, 2
      %v2133 = vrot.slane %v1156, 3
      %v2134 = vor.u32 %v2132, %v2133
      %v2135 = vsel %vm1923, %v2074, %v2134
      %v2137 = vshrl.u32 %v1167, 16
      %v2139 = vrot.slane %v2137, 2
      %v2140 = vshll.u32 %v1167, 16
      %v2142 = vrot.slane %v2140, 3
      %v2143 = vor.u32 %v2139, %v2142
      %v2144 = vsel %vm1923, %v2083, %v2143
      %v2146 = vshrl.u32 %v1313, 16
      %v2148 = vrot.slane %v2146, 2
      %v2149 = vshll.u32 %v1313, 16
      %v2151 = vrot.slane %v2149, 3
      %v2152 = vor.u32 %v2148, %v2151
      %v2153 = vsel %vm1923, %v2093, %v2152
      %v2155 = vshrl.u32 %v1417, 16
      %v2157 = vrot.slane %v2155, 2
      %v2158 = vshll.u32 %v1417, 16
      %v2160 = vrot.slane %v2158, 3
      %v2161 = vor.u32 %v2157, %v2160
      %v2162 = vsel %vm1923, %v2102, %v2161
      %v2164 = vshrl.u32 %v1583, 16
      %v2166 = vrot.slane %v2164, 2
      %v2167 = vshll.u32 %v1583, 16
      %v2169 = vrot.slane %v2167, 3
      %v2170 = vor.u32 %v2166, %v2169
      %v2171 = vsel %vm1923, %v2112, %v2170
      %v2173 = vshrl.u32 %v1651, 16
      %v2175 = vrot.slane %v2173, 2
      %v2176 = vshll.u32 %v1651, 16
      %v2178 = vrot.slane %v2176, 3
      %v2179 = vor.u32 %v2175, %v2178
      %v2180 = vsel %vm1923, %v2121, %v2179
      %v2182 = vshrl.u32 %v1740, 16
      %v2184 = vrot.slane %v2182, 2
      %v2185 = vshll.u32 %v1740, 16
      %v2187 = vrot.slane %v2185, 3
      %v2188 = vor.u32 %v2184, %v2187
      %v2189 = vsel %vm1923, %v2130, %v2188
      %v2190 = vrot.slane %v1168, 2
      %v2191 = vrot.slane %v1164, 3
      %v2192 = vor.u32 %v2190, %v2191
      %v2193 = vsel %vm1923, %v2134, %v2192
      %v2195 = vshrl.u32 %v1175, 16
      %v2197 = vrot.slane %v2195, 2
      %v2198 = vshll.u32 %v1175, 16
      %v2200 = vrot.slane %v2198, 3
      %v2201 = vor.u32 %v2197, %v2200
      %v2202 = vsel %vm1923, %v2143, %v2201
      %v2204 = vshrl.u32 %v1315, 16
      %v2206 = vrot.slane %v2204, 2
      %v2207 = vshll.u32 %v1315, 16
      %v2209 = vrot.slane %v2207, 3
      %v2210 = vor.u32 %v2206, %v2209
      %v2211 = vsel %vm1923, %v2152, %v2210
      %v2213 = vshrl.u32 %v1426, 16
      %v2215 = vrot.slane %v2213, 2
      %v2216 = vshll.u32 %v1426, 16
      %v2218 = vrot.slane %v2216, 3
      %v2219 = vor.u32 %v2215, %v2218
      %v2220 = vsel %vm1923, %v2161, %v2219
      %v2222 = vshrl.u32 %v1585, 16
      %v2224 = vrot.slane %v2222, 2
      %v2225 = vshll.u32 %v1585, 16
      %v2227 = vrot.slane %v2225, 3
      %v2228 = vor.u32 %v2224, %v2227
      %v2229 = vsel %vm1923, %v2170, %v2228
      %v2231 = vshrl.u32 %v1655, 16
      %v2233 = vrot.slane %v2231, 2
      %v2234 = vshll.u32 %v1655, 16
      %v2236 = vrot.slane %v2234, 3
      %v2237 = vor.u32 %v2233, %v2236
      %v2238 = vsel %vm1923, %v2179, %v2237
      %v2240 = vshrl.u32 %v1742, 16
      %v2242 = vrot.slane %v2240, 2
      %v2243 = vshll.u32 %v1742, 16
      %v2245 = vrot.slane %v2243, 3
      %v2246 = vor.u32 %v2242, %v2245
      %v2247 = vsel %vm1923, %v2188, %v2246
      %v2248 = vrot.slane %v1176, 2
      %v2249 = vrot.slane %v1172, 3
      %v2250 = vor.u32 %v2248, %v2249
      %v2251 = vsel %vm1923, %v2192, %v2250
      %v2253 = vshrl.u32 %v1183, 16
      %v2255 = vrot.slane %v2253, 2
      %v2256 = vshll.u32 %v1183, 16
      %v2258 = vrot.slane %v2256, 3
      %v2259 = vor.u32 %v2255, %v2258
      %v2260 = vsel %vm1923, %v2201, %v2259
      %v2262 = vshrl.u32 %v1317, 16
      %v2264 = vrot.slane %v2262, 2
      %v2265 = vshll.u32 %v1317, 16
      %v2267 = vrot.slane %v2265, 3
      %v2268 = vor.u32 %v2264, %v2267
      %v2269 = vsel %vm1923, %v2210, %v2268
      %v2271 = vshrl.u32 %v1435, 16
      %v2273 = vrot.slane %v2271, 2
      %v2274 = vshll.u32 %v1435, 16
      %v2276 = vrot.slane %v2274, 3
      %v2277 = vor.u32 %v2273, %v2276
      %v2278 = vsel %vm1923, %v2219, %v2277
      %v2280 = vshrl.u32 %v1587, 16
      %v2282 = vrot.slane %v2280, 2
      %v2283 = vshll.u32 %v1587, 16
      %v2285 = vrot.slane %v2283, 3
      %v2286 = vor.u32 %v2282, %v2285
      %v2287 = vsel %vm1923, %v2228, %v2286
      %v2289 = vshrl.u32 %v1659, 16
      %v2291 = vrot.slane %v2289, 2
      %v2292 = vshll.u32 %v1659, 16
      %v2294 = vrot.slane %v2292, 3
      %v2295 = vor.u32 %v2291, %v2294
      %v2296 = vsel %vm1923, %v2237, %v2295
      %v2298 = vshrl.u32 %v1744, 16
      %v2300 = vrot.slane %v2298, 2
      %v2301 = vshll.u32 %v1744, 16
      %v2303 = vrot.slane %v2301, 3
      %v2304 = vor.u32 %v2300, %v2303
      %v2305 = vsel %vm1923, %v2246, %v2304
      %v2306 = vrot.slane %v1184, 2
      %v2307 = vrot.slane %v1180, 3
      %v2308 = vor.u32 %v2306, %v2307
      %v2309 = vsel %vm1923, %v2250, %v2308
      %v2311 = vshrl.u32 %v1191, 16
      %v2313 = vrot.slane %v2311, 2
      %v2314 = vshll.u32 %v1191, 16
      %v2316 = vrot.slane %v2314, 3
      %v2317 = vor.u32 %v2313, %v2316
      %v2318 = vsel %vm1923, %v2259, %v2317
      %v2320 = vshrl.u32 %v1319, 16
      %v2322 = vrot.slane %v2320, 2
      %v2323 = vshll.u32 %v1319, 16
      %v2325 = vrot.slane %v2323, 3
      %v2326 = vor.u32 %v2322, %v2325
      %v2327 = vsel %vm1923, %v2268, %v2326
      %v2329 = vshrl.u32 %v1444, 16
      %v2331 = vrot.slane %v2329, 2
      %v2332 = vshll.u32 %v1444, 16
      %v2334 = vrot.slane %v2332, 3
      %v2335 = vor.u32 %v2331, %v2334
      %v2336 = vsel %vm1923, %v2277, %v2335
      %v2338 = vshrl.u32 %v1589, 16
      %v2340 = vrot.slane %v2338, 2
      %v2341 = vshll.u32 %v1589, 16
      %v2343 = vrot.slane %v2341, 3
      %v2344 = vor.u32 %v2340, %v2343
      %v2345 = vsel %vm1923, %v2286, %v2344
      %v2347 = vshrl.u32 %v1663, 16
      %v2349 = vrot.slane %v2347, 2
      %v2350 = vshll.u32 %v1663, 16
      %v2352 = vrot.slane %v2350, 3
      %v2353 = vor.u32 %v2349, %v2352
      %v2354 = vsel %vm1923, %v2295, %v2353
      %v2356 = vshrl.u32 %v1746, 16
      %v2358 = vrot.slane %v2356, 2
      %v2359 = vshll.u32 %v1746, 16
      %v2361 = vrot.slane %v2359, 3
      %v2362 = vor.u32 %v2358, %v2361
      %v2363 = vsel %vm1923, %v2304, %v2362
      %v2364 = vrot.slane %v1192, 2
      %v2365 = vrot.slane %v1188, 3
      %v2366 = vor.u32 %v2364, %v2365
      %v2367 = vsel %vm1923, %v2308, %v2366
      %v2369 = vshrl.u32 %v1199, 16
      %v2371 = vrot.slane %v2369, 2
      %v2372 = vshll.u32 %v1199, 16
      %v2374 = vrot.slane %v2372, 3
      %v2375 = vor.u32 %v2371, %v2374
      %v2376 = vsel %vm1923, %v2317, %v2375
      %v2378 = vshrl.u32 %v1321, 16
      %v2380 = vrot.slane %v2378, 2
      %v2381 = vshll.u32 %v1321, 16
      %v2383 = vrot.slane %v2381, 3
      %v2384 = vor.u32 %v2380, %v2383
      %v2385 = vsel %vm1923, %v2326, %v2384
      %v2387 = vshrl.u32 %v1453, 16
      %v2389 = vrot.slane %v2387, 2
      %v2390 = vshll.u32 %v1453, 16
      %v2392 = vrot.slane %v2390, 3
      %v2393 = vor.u32 %v2389, %v2392
      %v2394 = vsel %vm1923, %v2335, %v2393
      %v2396 = vshrl.u32 %v1591, 16
      %v2398 = vrot.slane %v2396, 2
      %v2399 = vshll.u32 %v1591, 16
      %v2401 = vrot.slane %v2399, 3
      %v2402 = vor.u32 %v2398, %v2401
      %v2403 = vsel %vm1923, %v2344, %v2402
      %v2405 = vshrl.u32 %v1667, 16
      %v2407 = vrot.slane %v2405, 2
      %v2408 = vshll.u32 %v1667, 16
      %v2410 = vrot.slane %v2408, 3
      %v2411 = vor.u32 %v2407, %v2410
      %v2412 = vsel %vm1923, %v2353, %v2411
      %v2414 = vshrl.u32 %v1748, 16
      %v2416 = vrot.slane %v2414, 2
      %v2417 = vshll.u32 %v1748, 16
      %v2419 = vrot.slane %v2417, 3
      %v2420 = vor.u32 %v2416, %v2419
      %v2421 = vsel %vm1923, %v2362, %v2420
      %v2422 = vrot.slane %v1200, 2
      %v2423 = vrot.slane %v1196, 3
      %v2424 = vor.u32 %v2422, %v2423
      %v2425 = vsel %vm1923, %v2366, %v2424
      %v2427 = vshrl.u32 %v1207, 16
      %v2429 = vrot.slane %v2427, 2
      %v2430 = vshll.u32 %v1207, 16
      %v2432 = vrot.slane %v2430, 3
      %v2433 = vor.u32 %v2429, %v2432
      %v2434 = vsel %vm1923, %v2375, %v2433
      %v2436 = vshrl.u32 %v1323, 16
      %v2438 = vrot.slane %v2436, 2
      %v2439 = vshll.u32 %v1323, 16
      %v2441 = vrot.slane %v2439, 3
      %v2442 = vor.u32 %v2438, %v2441
      %v2443 = vsel %vm1923, %v2384, %v2442
      %v2445 = vshrl.u32 %v1462, 16
      %v2447 = vrot.slane %v2445, 2
      %v2448 = vshll.u32 %v1462, 16
      %v2450 = vrot.slane %v2448, 3
      %v2451 = vor.u32 %v2447, %v2450
      %v2452 = vsel %vm1923, %v2393, %v2451
      %v2454 = vshrl.u32 %v1593, 16
      %v2456 = vrot.slane %v2454, 2
      %v2457 = vshll.u32 %v1593, 16
      %v2459 = vrot.slane %v2457, 3
      %v2460 = vor.u32 %v2456, %v2459
      %v2461 = vsel %vm1923, %v2402, %v2460
      %v2463 = vshrl.u32 %v1671, 16
      %v2465 = vrot.slane %v2463, 2
      %v2466 = vshll.u32 %v1671, 16
      %v2468 = vrot.slane %v2466, 3
      %v2469 = vor.u32 %v2465, %v2468
      %v2470 = vsel %vm1923, %v2411, %v2469
      %v2472 = vshrl.u32 %v1750, 16
      %v2474 = vrot.slane %v2472, 2
      %v2475 = vshll.u32 %v1750, 16
      %v2477 = vrot.slane %v2475, 3
      %v2478 = vor.u32 %v2474, %v2477
      %v2479 = vsel %vm1923, %v2420, %v2478
      %v2480 = vrot.slane %v1208, 2
      %v2481 = vrot.slane %v1204, 3
      %v2482 = vor.u32 %v2480, %v2481
      %v2483 = vsel %vm1923, %v2424, %v2482
      %v2485 = vshrl.u32 %v1215, 16
      %v2487 = vrot.slane %v2485, 2
      %v2488 = vshll.u32 %v1215, 16
      %v2490 = vrot.slane %v2488, 3
      %v2491 = vor.u32 %v2487, %v2490
      %v2492 = vsel %vm1923, %v2433, %v2491
      %v2494 = vshrl.u32 %v1325, 16
      %v2496 = vrot.slane %v2494, 2
      %v2497 = vshll.u32 %v1325, 16
      %v2499 = vrot.slane %v2497, 3
      %v2500 = vor.u32 %v2496, %v2499
      %v2501 = vsel %vm1923, %v2442, %v2500
      %v2503 = vshrl.u32 %v1471, 16
      %v2505 = vrot.slane %v2503, 2
      %v2506 = vshll.u32 %v1471, 16
      %v2508 = vrot.slane %v2506, 3
      %v2509 = vor.u32 %v2505, %v2508
      %v2510 = vsel %vm1923, %v2451, %v2509
      %v2512 = vshrl.u32 %v1595, 16
      %v2514 = vrot.slane %v2512, 2
      %v2515 = vshll.u32 %v1595, 16
      %v2517 = vrot.slane %v2515, 3
      %v2518 = vor.u32 %v2514, %v2517
      %v2519 = vsel %vm1923, %v2460, %v2518
      %v2521 = vshrl.u32 %v1675, 16
      %v2523 = vrot.slane %v2521, 2
      %v2524 = vshll.u32 %v1675, 16
      %v2526 = vrot.slane %v2524, 3
      %v2527 = vor.u32 %v2523, %v2526
      %v2528 = vsel %vm1923, %v2469, %v2527
      %v2530 = vshrl.u32 %v1752, 16
      %v2532 = vrot.slane %v2530, 2
      %v2533 = vshll.u32 %v1752, 16
      %v2535 = vrot.slane %v2533, 3
      %v2536 = vor.u32 %v2532, %v2535
      %v2537 = vsel %vm1923, %v2478, %v2536
      %v2538 = vrot.slane %v1216, 2
      %v2539 = vrot.slane %v1212, 3
      %v2540 = vor.u32 %v2538, %v2539
      %v2541 = vsel %vm1923, %v2482, %v2540
      %v2543 = vshrl.u32 %v1223, 16
      %v2545 = vrot.slane %v2543, 2
      %v2546 = vshll.u32 %v1223, 16
      %v2548 = vrot.slane %v2546, 3
      %v2549 = vor.u32 %v2545, %v2548
      %v2550 = vsel %vm1923, %v2491, %v2549
      %v2552 = vshrl.u32 %v1327, 16
      %v2554 = vrot.slane %v2552, 2
      %v2555 = vshll.u32 %v1327, 16
      %v2557 = vrot.slane %v2555, 3
      %v2558 = vor.u32 %v2554, %v2557
      %v2559 = vsel %vm1923, %v2500, %v2558
      %v2561 = vshrl.u32 %v1480, 16
      %v2563 = vrot.slane %v2561, 2
      %v2564 = vshll.u32 %v1480, 16
      %v2566 = vrot.slane %v2564, 3
      %v2567 = vor.u32 %v2563, %v2566
      %v2568 = vsel %vm1923, %v2509, %v2567
      %v2570 = vshrl.u32 %v1597, 16
      %v2572 = vrot.slane %v2570, 2
      %v2573 = vshll.u32 %v1597, 16
      %v2575 = vrot.slane %v2573, 3
      %v2576 = vor.u32 %v2572, %v2575
      %v2577 = vsel %vm1923, %v2518, %v2576
      %v2579 = vshrl.u32 %v1679, 16
      %v2581 = vrot.slane %v2579, 2
      %v2582 = vshll.u32 %v1679, 16
      %v2584 = vrot.slane %v2582, 3
      %v2585 = vor.u32 %v2581, %v2584
      %v2586 = vsel %vm1923, %v2527, %v2585
      %v2588 = vshrl.u32 %v1754, 16
      %v2590 = vrot.slane %v2588, 2
      %v2591 = vshll.u32 %v1754, 16
      %v2593 = vrot.slane %v2591, 3
      %v2594 = vor.u32 %v2590, %v2593
      %v2595 = vsel %vm1923, %v2536, %v2594
      %v2596 = vrot.slane %v1224, 2
      %v2597 = vrot.slane %v1220, 3
      %v2598 = vor.u32 %v2596, %v2597
      %v2599 = vsel %vm1923, %v2540, %v2598
      %v2601 = vshrl.u32 %v1231, 16
      %v2603 = vrot.slane %v2601, 2
      %v2604 = vshll.u32 %v1231, 16
      %v2606 = vrot.slane %v2604, 3
      %v2607 = vor.u32 %v2603, %v2606
      %v2608 = vsel %vm1923, %v2549, %v2607
      %v2610 = vshrl.u32 %v1329, 16
      %v2612 = vrot.slane %v2610, 2
      %v2613 = vshll.u32 %v1329, 16
      %v2615 = vrot.slane %v2613, 3
      %v2616 = vor.u32 %v2612, %v2615
      %v2617 = vsel %vm1923, %v2558, %v2616
      %v2619 = vshrl.u32 %v1489, 16
      %v2621 = vrot.slane %v2619, 2
      %v2622 = vshll.u32 %v1489, 16
      %v2624 = vrot.slane %v2622, 3
      %v2625 = vor.u32 %v2621, %v2624
      %v2626 = vsel %vm1923, %v2567, %v2625
      %v2628 = vshrl.u32 %v1599, 16
      %v2630 = vrot.slane %v2628, 2
      %v2631 = vshll.u32 %v1599, 16
      %v2633 = vrot.slane %v2631, 3
      %v2634 = vor.u32 %v2630, %v2633
      %v2635 = vsel %vm1923, %v2576, %v2634
      %v2637 = vshrl.u32 %v1683, 16
      %v2639 = vrot.slane %v2637, 2
      %v2640 = vshll.u32 %v1683, 16
      %v2642 = vrot.slane %v2640, 3
      %v2643 = vor.u32 %v2639, %v2642
      %v2644 = vsel %vm1923, %v2585, %v2643
      %v2646 = vshrl.u32 %v1756, 16
      %v2648 = vrot.slane %v2646, 2
      %v2649 = vshll.u32 %v1756, 16
      %v2651 = vrot.slane %v2649, 3
      %v2652 = vor.u32 %v2648, %v2651
      %v2653 = vsel %vm1923, %v2594, %v2652
      %v2654 = vrot.slane %v1232, 2
      %v2655 = vrot.slane %v1228, 3
      %v2656 = vor.u32 %v2654, %v2655
      %v2657 = vsel %vm1923, %v2598, %v2656
      %v2659 = vshrl.u32 %v1239, 16
      %v2661 = vrot.slane %v2659, 2
      %v2662 = vshll.u32 %v1239, 16
      %v2664 = vrot.slane %v2662, 3
      %v2665 = vor.u32 %v2661, %v2664
      %v2666 = vsel %vm1923, %v2607, %v2665
      %v2668 = vshrl.u32 %v1331, 16
      %v2670 = vrot.slane %v2668, 2
      %v2671 = vshll.u32 %v1331, 16
      %v2673 = vrot.slane %v2671, 3
      %v2674 = vor.u32 %v2670, %v2673
      %v2675 = vsel %vm1923, %v2616, %v2674
      %v2677 = vshrl.u32 %v1498, 16
      %v2679 = vrot.slane %v2677, 2
      %v2680 = vshll.u32 %v1498, 16
      %v2682 = vrot.slane %v2680, 3
      %v2683 = vor.u32 %v2679, %v2682
      %v2684 = vsel %vm1923, %v2625, %v2683
      %v2686 = vshrl.u32 %v1601, 16
      %v2688 = vrot.slane %v2686, 2
      %v2689 = vshll.u32 %v1601, 16
      %v2691 = vrot.slane %v2689, 3
      %v2692 = vor.u32 %v2688, %v2691
      %v2693 = vsel %vm1923, %v2634, %v2692
      %v2695 = vshrl.u32 %v1687, 16
      %v2697 = vrot.slane %v2695, 2
      %v2698 = vshll.u32 %v1687, 16
      %v2700 = vrot.slane %v2698, 3
      %v2701 = vor.u32 %v2697, %v2700
      %v2702 = vsel %vm1923, %v2643, %v2701
      %v2704 = vshrl.u32 %v1758, 16
      %v2706 = vrot.slane %v2704, 2
      %v2707 = vshll.u32 %v1758, 16
      %v2709 = vrot.slane %v2707, 3
      %v2710 = vor.u32 %v2706, %v2709
      %v2711 = vsel %vm1923, %v2652, %v2710
      %v2712 = vrot.slane %v1240, 2
      %v2713 = vrot.slane %v1236, 3
      %v2714 = vor.u32 %v2712, %v2713
      %v2715 = vsel %vm1923, %v2656, %v2714
      %v2717 = vshrl.u32 %v1247, 16
      %v2719 = vrot.slane %v2717, 2
      %v2720 = vshll.u32 %v1247, 16
      %v2722 = vrot.slane %v2720, 3
      %v2723 = vor.u32 %v2719, %v2722
      %v2724 = vsel %vm1923, %v2665, %v2723
      %v2726 = vshrl.u32 %v1333, 16
      %v2728 = vrot.slane %v2726, 2
      %v2729 = vshll.u32 %v1333, 16
      %v2731 = vrot.slane %v2729, 3
      %v2732 = vor.u32 %v2728, %v2731
      %v2733 = vsel %vm1923, %v2674, %v2732
      %v2735 = vshrl.u32 %v1507, 16
      %v2737 = vrot.slane %v2735, 2
      %v2738 = vshll.u32 %v1507, 16
      %v2740 = vrot.slane %v2738, 3
      %v2741 = vor.u32 %v2737, %v2740
      %v2742 = vsel %vm1923, %v2683, %v2741
      %v2744 = vshrl.u32 %v1603, 16
      %v2746 = vrot.slane %v2744, 2
      %v2747 = vshll.u32 %v1603, 16
      %v2749 = vrot.slane %v2747, 3
      %v2750 = vor.u32 %v2746, %v2749
      %v2751 = vsel %vm1923, %v2692, %v2750
      %v2753 = vshrl.u32 %v1691, 16
      %v2755 = vrot.slane %v2753, 2
      %v2756 = vshll.u32 %v1691, 16
      %v2758 = vrot.slane %v2756, 3
      %v2759 = vor.u32 %v2755, %v2758
      %v2760 = vsel %vm1923, %v2701, %v2759
      %v2762 = vshrl.u32 %v1760, 16
      %v2764 = vrot.slane %v2762, 2
      %v2765 = vshll.u32 %v1760, 16
      %v2767 = vrot.slane %v2765, 3
      %v2768 = vor.u32 %v2764, %v2767
      %v2769 = vsel %vm1923, %v2710, %v2768
      %v2770 = vrot.slane %v1248, 2
      %v2771 = vrot.slane %v1244, 3
      %v2772 = vor.u32 %v2770, %v2771
      %v2773 = vsel %vm1923, %v2714, %v2772
      %v2775 = vshrl.u32 %v1255, 16
      %v2777 = vrot.slane %v2775, 2
      %v2778 = vshll.u32 %v1255, 16
      %v2780 = vrot.slane %v2778, 3
      %v2781 = vor.u32 %v2777, %v2780
      %v2782 = vsel %vm1923, %v2723, %v2781
      %v2784 = vshrl.u32 %v1335, 16
      %v2786 = vrot.slane %v2784, 2
      %v2787 = vshll.u32 %v1335, 16
      %v2789 = vrot.slane %v2787, 3
      %v2790 = vor.u32 %v2786, %v2789
      %v2791 = vsel %vm1923, %v2732, %v2790
      %v2793 = vshrl.u32 %v1516, 16
      %v2795 = vrot.slane %v2793, 2
      %v2796 = vshll.u32 %v1516, 16
      %v2798 = vrot.slane %v2796, 3
      %v2799 = vor.u32 %v2795, %v2798
      %v2800 = vsel %vm1923, %v2741, %v2799
      %v2802 = vshrl.u32 %v1605, 16
      %v2804 = vrot.slane %v2802, 2
      %v2805 = vshll.u32 %v1605, 16
      %v2807 = vrot.slane %v2805, 3
      %v2808 = vor.u32 %v2804, %v2807
      %v2809 = vsel %vm1923, %v2750, %v2808
      %v2811 = vshrl.u32 %v1695, 16
      %v2813 = vrot.slane %v2811, 2
      %v2814 = vshll.u32 %v1695, 16
      %v2816 = vrot.slane %v2814, 3
      %v2817 = vor.u32 %v2813, %v2816
      %v2818 = vsel %vm1923, %v2759, %v2817
      %v2820 = vshrl.u32 %v1762, 16
      %v2822 = vrot.slane %v2820, 2
      %v2823 = vshll.u32 %v1762, 16
      %v2825 = vrot.slane %v2823, 3
      %v2826 = vor.u32 %v2822, %v2825
      %v2827 = vsel %vm1923, %v2768, %v2826
      %v2828 = vrot.slane %v1256, 2
      %v2829 = vrot.slane %v1252, 3
      %v2830 = vor.u32 %v2828, %v2829
      %v2831 = vsel %vm1923, %v2772, %v2830
      %v2833 = vshrl.u32 %v1263, 16
      %v2835 = vrot.slane %v2833, 2
      %v2836 = vshll.u32 %v1263, 16
      %v2838 = vrot.slane %v2836, 3
      %v2839 = vor.u32 %v2835, %v2838
      %v2840 = vsel %vm1923, %v2781, %v2839
      %v2842 = vshrl.u32 %v1337, 16
      %v2844 = vrot.slane %v2842, 2
      %v2845 = vshll.u32 %v1337, 16
      %v2847 = vrot.slane %v2845, 3
      %v2848 = vor.u32 %v2844, %v2847
      %v2849 = vsel %vm1923, %v2790, %v2848
      %v2851 = vshrl.u32 %v1525, 16
      %v2853 = vrot.slane %v2851, 2
      %v2854 = vshll.u32 %v1525, 16
      %v2856 = vrot.slane %v2854, 3
      %v2857 = vor.u32 %v2853, %v2856
      %v2858 = vsel %vm1923, %v2799, %v2857
      %v2860 = vshrl.u32 %v1607, 16
      %v2862 = vrot.slane %v2860, 2
      %v2863 = vshll.u32 %v1607, 16
      %v2865 = vrot.slane %v2863, 3
      %v2866 = vor.u32 %v2862, %v2865
      %v2867 = vsel %vm1923, %v2808, %v2866
      %v2869 = vshrl.u32 %v1699, 16
      %v2871 = vrot.slane %v2869, 2
      %v2872 = vshll.u32 %v1699, 16
      %v2874 = vrot.slane %v2872, 3
      %v2875 = vor.u32 %v2871, %v2874
      %v2876 = vsel %vm1923, %v2817, %v2875
      %v2878 = vshrl.u32 %v1764, 16
      %v2880 = vrot.slane %v2878, 2
      %v2881 = vshll.u32 %v1764, 16
      %v2883 = vrot.slane %v2881, 3
      %v2884 = vor.u32 %v2880, %v2883
      %v2885 = vsel %vm1923, %v2826, %v2884
      %v2886 = vrot.slane %v1264, 2
      %v2887 = vrot.slane %v1260, 3
      %v2888 = vor.u32 %v2886, %v2887
      %v2889 = vsel %vm1923, %v2830, %v2888
      %v2891 = vshrl.u32 %v1271, 16
      %v2893 = vrot.slane %v2891, 2
      %v2894 = vshll.u32 %v1271, 16
      %v2896 = vrot.slane %v2894, 3
      %v2897 = vor.u32 %v2893, %v2896
      %v2898 = vsel %vm1923, %v2839, %v2897
      %v2900 = vshrl.u32 %v1339, 16
      %v2902 = vrot.slane %v2900, 2
      %v2903 = vshll.u32 %v1339, 16
      %v2905 = vrot.slane %v2903, 3
      %v2906 = vor.u32 %v2902, %v2905
      %v2907 = vsel %vm1923, %v2848, %v2906
      %v2909 = vshrl.u32 %v1534, 16
      %v2911 = vrot.slane %v2909, 2
      %v2912 = vshll.u32 %v1534, 16
      %v2914 = vrot.slane %v2912, 3
      %v2915 = vor.u32 %v2911, %v2914
      %v2916 = vsel %vm1923, %v2857, %v2915
      %v2918 = vshrl.u32 %v1609, 16
      %v2920 = vrot.slane %v2918, 2
      %v2921 = vshll.u32 %v1609, 16
      %v2923 = vrot.slane %v2921, 3
      %v2924 = vor.u32 %v2920, %v2923
      %v2925 = vsel %vm1923, %v2866, %v2924
      %v2927 = vshrl.u32 %v1703, 16
      %v2929 = vrot.slane %v2927, 2
      %v2930 = vshll.u32 %v1703, 16
      %v2932 = vrot.slane %v2930, 3
      %v2933 = vor.u32 %v2929, %v2932
      %v2934 = vsel %vm1923, %v2875, %v2933
      %v2936 = vshrl.u32 %v1766, 16
      %v2938 = vrot.slane %v2936, 2
      %v2939 = vshll.u32 %v1766, 16
      %v2941 = vrot.slane %v2939, 3
      %v2942 = vor.u32 %v2938, %v2941
      %v2943 = vsel %vm1923, %v2884, %v2942
      %v2944 = vrot.slane %v1272, 2
      %v2945 = vrot.slane %v1268, 3
      %v2946 = vor.u32 %v2944, %v2945
      %v2947 = vsel %vm1923, %v2888, %v2946
      %v2949 = vshrl.u32 %v1279, 16
      %v2951 = vrot.slane %v2949, 2
      %v2952 = vshll.u32 %v1279, 16
      %v2954 = vrot.slane %v2952, 3
      %v2955 = vor.u32 %v2951, %v2954
      %v2956 = vsel %vm1923, %v2897, %v2955
      %v2958 = vshrl.u32 %v1341, 16
      %v2960 = vrot.slane %v2958, 2
      %v2961 = vshll.u32 %v1341, 16
      %v2963 = vrot.slane %v2961, 3
      %v2964 = vor.u32 %v2960, %v2963
      %v2965 = vsel %vm1923, %v2906, %v2964
      %v2967 = vshrl.u32 %v1543, 16
      %v2969 = vrot.slane %v2967, 2
      %v2970 = vshll.u32 %v1543, 16
      %v2972 = vrot.slane %v2970, 3
      %v2973 = vor.u32 %v2969, %v2972
      %v2974 = vsel %vm1923, %v2915, %v2973
      %v2976 = vshrl.u32 %v1611, 16
      %v2978 = vrot.slane %v2976, 2
      %v2979 = vshll.u32 %v1611, 16
      %v2981 = vrot.slane %v2979, 3
      %v2982 = vor.u32 %v2978, %v2981
      %v2983 = vsel %vm1923, %v2924, %v2982
      %v2985 = vshrl.u32 %v1707, 16
      %v2987 = vrot.slane %v2985, 2
      %v2988 = vshll.u32 %v1707, 16
      %v2990 = vrot.slane %v2988, 3
      %v2991 = vor.u32 %v2987, %v2990
      %v2992 = vsel %vm1923, %v2933, %v2991
      %v2994 = vshrl.u32 %v1768, 16
      %v2996 = vrot.slane %v2994, 2
      %v2997 = vshll.u32 %v1768, 16
      %v2999 = vrot.slane %v2997, 3
      %v3000 = vor.u32 %v2996, %v2999
      %v3001 = vsel %vm1923, %v2942, %v3000
      %v3002 = vrot.slane %v1280, 2
      %v3003 = vrot.slane %v1276, 3
      %v3004 = vor.u32 %v3002, %v3003
      %v3005 = vsel %vm1923, %v2946, %v3004
      %v3007 = vshrl.u32 %v1287, 16
      %v3009 = vrot.slane %v3007, 2
      %v3010 = vshll.u32 %v1287, 16
      %v3012 = vrot.slane %v3010, 3
      %v3013 = vor.u32 %v3009, %v3012
      %v3014 = vsel %vm1923, %v2955, %v3013
      %v3016 = vshrl.u32 %v1358, 16
      %v3018 = vrot.slane %v3016, 2
      %v3019 = vshll.u32 %v1358, 16
      %v3021 = vrot.slane %v3019, 3
      %v3022 = vor.u32 %v3018, %v3021
      %v3023 = vsel %vm1923, %v2964, %v3022
      %v3025 = vshrl.u32 %v1552, 16
      %v3027 = vrot.slane %v3025, 2
      %v3028 = vshll.u32 %v1552, 16
      %v3030 = vrot.slane %v3028, 3
      %v3031 = vor.u32 %v3027, %v3030
      %v3032 = vsel %vm1923, %v2973, %v3031
      %v3034 = vshrl.u32 %v1613, 16
      %v3036 = vrot.slane %v3034, 2
      %v3037 = vshll.u32 %v1613, 16
      %v3039 = vrot.slane %v3037, 3
      %v3040 = vor.u32 %v3036, %v3039
      %v3041 = vsel %vm1923, %v2982, %v3040
      %v3043 = vshrl.u32 %v1711, 16
      %v3045 = vrot.slane %v3043, 2
      %v3046 = vshll.u32 %v1711, 16
      %v3048 = vrot.slane %v3046, 3
      %v3049 = vor.u32 %v3045, %v3048
      %v3050 = vsel %vm1923, %v2991, %v3049
      %v3052 = vshrl.u32 %v1770, 16
      %v3054 = vrot.slane %v3052, 2
      %v3055 = vshll.u32 %v1770, 16
      %v3057 = vrot.slane %v3055, 3
      %v3058 = vor.u32 %v3054, %v3057
      %v3059 = vsel %vm1923, %v3000, %v3058
      %v3060 = vrot.slane %v1288, 2
      %v3061 = vrot.slane %v1284, 3
      %v3062 = vor.u32 %v3060, %v3061
      %v3063 = vsel %vm1923, %v3004, %v3062
      %v3065 = vshrl.u32 %v1295, 16
      %v3067 = vrot.slane %v3065, 2
      %v3068 = vshll.u32 %v1295, 16
      %v3070 = vrot.slane %v3068, 3
      %v3071 = vor.u32 %v3067, %v3070
      %v3072 = vsel %vm1923, %v3013, %v3071
      %v3074 = vshrl.u32 %v1343, 16
      %v3076 = vrot.slane %v3074, 2
      %v3077 = vshll.u32 %v1343, 16
      %v3079 = vrot.slane %v3077, 3
      %v3080 = vor.u32 %v3076, %v3079
      %v3081 = vsel %vm1923, %v2964, %v3080
      %v3083 = vshrl.u32 %v1360, 16
      %v3085 = vrot.slane %v3083, 2
      %v3086 = vshll.u32 %v1360, 16
      %v3088 = vrot.slane %v3086, 3
      %v3089 = vor.u32 %v3085, %v3088
      %v3090 = vsel %vm1923, %v3022, %v3089
      %v3092 = vshrl.u32 %v1561, 16
      %v3094 = vrot.slane %v3092, 2
      %v3095 = vshll.u32 %v1561, 16
      %v3097 = vrot.slane %v3095, 3
      %v3098 = vor.u32 %v3094, %v3097
      %v3099 = vsel %vm1923, %v3031, %v3098
      %v3101 = vshrl.u32 %v1625, 16
      %v3103 = vrot.slane %v3101, 2
      %v3104 = vshll.u32 %v1625, 16
      %v3106 = vrot.slane %v3104, 3
      %v3107 = vor.u32 %v3103, %v3106
      %v3108 = vsel %vm1923, %v3040, %v3107
      %v3110 = vshrl.u32 %v1720, 16
      %v3112 = vrot.slane %v3110, 2
      %v3113 = vshll.u32 %v1720, 16
      %v3115 = vrot.slane %v3113, 3
      %v3116 = vor.u32 %v3112, %v3115
      %v3117 = vsel %vm1923, %v3049, %v3116
      %v3119 = vshrl.u32 %v1772, 16
      %v3121 = vrot.slane %v3119, 2
      %v3122 = vshll.u32 %v1772, 16
      %v3124 = vrot.slane %v3122, 3
      %v3125 = vor.u32 %v3121, %v3124
      %v3126 = vsel %vm1923, %v3058, %v3125
      %v3127 = vrot.slane %v1296, 2
      %v3128 = vrot.slane %v1292, 3
      %v3129 = vor.u32 %v3127, %v3128
      %v3130 = vsel %vm1923, %v3062, %v3129
      %v3132 = vshrl.u32 %v1298, 16
      %v3134 = vrot.slane %v3132, 2
      %v3135 = vshll.u32 %v1298, 16
      %v3137 = vrot.slane %v3135, 3
      %v3138 = vor.u32 %v3134, %v3137
      %v3139 = vsel %vm1923, %v3071, %v3138
      %v3141 = vshrl.u32 %v1342, 16
      %v3143 = vrot.slane %v3141, 2
      %v3144 = vshll.u32 %v1342, 16
      %v3146 = vrot.slane %v3144, 3
      %v3147 = vor.u32 %v3143, %v3146
      %v3148 = vsel %vm1923, %v3080, %v3147
      %v3150 = vshrl.u32 %v1359, 16
      %v3152 = vrot.slane %v3150, 2
      %v3153 = vshll.u32 %v1359, 16
      %v3155 = vrot.slane %v3153, 3
      %v3156 = vor.u32 %v3152, %v3155
      %v3157 = vsel %vm1923, %v3089, %v3156
      %v3159 = vshrl.u32 %v1570, 16
      %v3161 = vrot.slane %v3159, 2
      %v3162 = vshll.u32 %v1570, 16
      %v3164 = vrot.slane %v3162, 3
      %v3165 = vor.u32 %v3161, %v3164
      %v3166 = vsel %vm1923, %v3098, %v3165
      %v3168 = vshrl.u32 %v1615, 16
      %v3170 = vrot.slane %v3168, 2
      %v3171 = vshll.u32 %v1615, 16
      %v3173 = vrot.slane %v3171, 3
      %v3174 = vor.u32 %v3170, %v3173
      %v3175 = vsel %vm1923, %v3040, %v3174
      %v3177 = vshrl.u32 %v1627, 16
      %v3179 = vrot.slane %v3177, 2
      %v3180 = vshll.u32 %v1627, 16
      %v3182 = vrot.slane %v3180, 3
      %v3183 = vor.u32 %v3179, %v3182
      %v3184 = vsel %vm1923, %v3107, %v3183
      %v3186 = vshrl.u32 %v1729, 16
      %v3188 = vrot.slane %v3186, 2
      %v3189 = vshll.u32 %v1729, 16
      %v3191 = vrot.slane %v3189, 3
      %v3192 = vor.u32 %v3188, %v3191
      %v3193 = vsel %vm1923, %v3116, %v3192
      %v3195 = vshrl.u32 %v1774, 16
      %v3197 = vrot.slane %v3195, 2
      %v3198 = vshll.u32 %v1774, 16
      %v3200 = vrot.slane %v3198, 3
      %v3201 = vor.u32 %v3197, %v3200
      %v3202 = vsel %vm1923, %v3125, %v3201
      %v3503 = vunpack.c.l.b16 %v1775
      %v3504 = vunpack.c.l.b16 %v1776
      %v3505 = vunpack.c.l.b16 %v1777
      %v3506 = vunpack.c.l.b16 %v1778
      %v3507 = vunpack.c.l.b16 %v1779
      %v3508 = vunpack.c.l.b16 %v1780
      %v3509 = vunpack.c.l.b16 %v1781
      %v3510 = vunpack.c.l.b16 %v1782
      %v3511 = vunpack.c.l.b16 %v1783
      %v3512 = vunpack.c.l.b16 %v1784
      %v3513 = vunpack.c.l.b16 %v1785
      %v3514 = vunpack.c.l.b16 %v1786
      %v3515 = vunpack.c.l.b16 %v1787
      %v3516 = vunpack.c.l.b16 %v1788
      %v3517 = vunpack.c.l.b16 %v1789
      %v3518 = vunpack.c.l.b16 %v1790
      %v3519 = vunpack.c.l.b16 %v1791
      %v3520 = vunpack.c.l.b16 %v1792
      %v3521 = vunpack.c.l.b16 %v1793
      %v3522 = vunpack.c.l.b16 %v1794
      %v3523 = vunpack.c.l.b16 %v1795
      %v3524 = vunpack.c.l.b16 %v1796
      %v3525 = vunpack.c.l.b16 %v1797
      %v3526 = vunpack.c.l.b16 %v1798
      %v3527 = vunpack.c.l.b16 %v1799
      %v3528 = vunpack.c.l.b16 %v1800
      %v3529 = vunpack.c.l.b16 %v1801
      %v3530 = vunpack.c.l.b16 %v1802
      %v3531 = vunpack.c.l.b16 %v1803
      %v3532 = vunpack.c.l.b16 %v1804
      %v3533 = vunpack.c.l.b16 %v1805
      %v3534 = vunpack.c.l.b16 %v1806
      %v3535 = vunpack.c.l.b16 %v1807
      %v3536 = vunpack.c.l.b16 %v1808
      %v3537 = vunpack.c.l.b16 %v1809
      %v3538 = vunpack.c.l.b16 %v1810
      %v3539 = vunpack.c.l.b16 %v1811
      %v3540 = vunpack.c.l.b16 %v1812
      %v3541 = vunpack.c.l.b16 %v1813
      %v3542 = vunpack.c.l.b16 %v1814
      %v3543 = vunpack.c.l.b16 %v1815
      %v3544 = vunpack.c.l.b16 %v1816
      %v3545 = vunpack.c.l.b16 %v1817
      %v3546 = vunpack.c.l.b16 %v1818
      %v3547 = vunpack.c.l.b16 %v1819
      %v3548 = vunpack.c.l.b16 %v1820
      %v3549 = vunpack.c.l.b16 %v1821
      %v3550 = vunpack.c.l.b16 %v1822
      %v3551 = vunpack.c.l.b16 %v1823
      %v3552 = vunpack.c.l.b16 %v1824
      %v3553 = vunpack.c.l.b16 %v1825
      %v3554 = vunpack.c.l.b16 %v1826
      %v3555 = vunpack.c.l.b16 %v1827
      %v3556 = vunpack.c.l.b16 %v1828
      %v3557 = vunpack.c.l.b16 %v1829
      %v3558 = vunpack.c.l.b16 %v1830
      %v3559 = vunpack.c.l.b16 %v1831
      %v3560 = vunpack.c.l.b16 %v1832
      %v3561 = vunpack.c.l.b16 %v1833
      %v3562 = vunpack.c.l.b16 %v1834
      %v3563 = vunpack.c.l.b16 %v1835
      %v3564 = vunpack.c.l.b16 %v1836
      %v3565 = vunpack.c.l.b16 %v1837
      %v3566 = vunpack.c.l.b16 %v1838
      %v3567 = vunpack.c.l.b16 %v1839
      %v3568 = vunpack.c.l.b16 %v1840
      %v3569 = vunpack.c.l.b16 %v1841
      %v3570 = vunpack.c.l.b16 %v1842
      %v3571 = vunpack.c.l.b16 %v1843
      %v3572 = vunpack.c.l.b16 %v1844
      %v3573 = vunpack.c.l.b16 %v1845
      %v3574 = vunpack.c.l.b16 %v1846
      %v3575 = vunpack.c.l.b16 %v1847
      %v3576 = vunpack.c.l.b16 %v1848
      %v3577 = vunpack.c.l.b16 %v1849
      %v3578 = vunpack.c.l.b16 %v1850
      %v3579 = vunpack.c.l.b16 %v1851
      %v3580 = vunpack.c.l.b16 %v1852
      %v3581 = vunpack.c.l.b16 %v1853
      %v3582 = vunpack.c.l.b16 %v1854
      %v3583 = vunpack.c.l.b16 %v1855
      %v3584 = vunpack.c.l.b16 %v1856
      %v3585 = vunpack.c.l.b16 %v1857
      %v3586 = vunpack.c.l.b16 %v1858
      %v3587 = vunpack.c.l.b16 %v1859
      %v3588 = vunpack.c.l.b16 %v1860
      %v3589 = vunpack.c.l.b16 %v1861
      %v3590 = vunpack.c.l.b16 %v1862
      %v3591 = vunpack.c.l.b16 %v1863
      %v3592 = vunpack.c.l.b16 %v1864
      %v3593 = vunpack.c.l.b16 %v1865
      %v3594 = vunpack.c.l.b16 %v1866
      %v3595 = vunpack.c.l.b16 %v1867
      %v3596 = vunpack.c.l.b16 %v1868
      %v3597 = vunpack.c.l.b16 %v1869
      %v3598 = vunpack.c.l.b16 %v1870
      %v3599 = vunpack.c.l.b16 %v1871
      %v3600 = vunpack.c.l.b16 %v1872
      %v3601 = vunpack.c.l.b16 %v1873
      %v3602 = vunpack.c.l.b16 %v1874
      %v3603 = vunpack.c.l.b16 %v1875
      %v3604 = vunpack.c.l.b16 %v1876
      %v3605 = vunpack.c.l.b16 %v1877
      %v3606 = vunpack.c.l.b16 %v1878
      %v3607 = vunpack.c.l.b16 %v1879
      %v3608 = vunpack.c.l.b16 %v1880
      %v3609 = vunpack.c.l.b16 %v1881
      %v3610 = vunpack.c.l.b16 %v1882
      %v3611 = vunpack.c.l.b16 %v1883
      %v3612 = vunpack.c.l.b16 %v1884
      %v3613 = vunpack.c.l.b16 %v1885
      %v3614 = vunpack.c.l.b16 %v1886
      %v3615 = vunpack.c.l.b16 %v1887
      %v3616 = vunpack.c.l.b16 %v1888
      %v3617 = vunpack.c.l.b16 %v1889
      %v3618 = vunpack.c.l.b16 %v1890
      %v3619 = vunpack.c.l.b16 %v1891
      %v3620 = vunpack.c.l.b16 %v1892
      %v3621 = vunpack.c.l.b16 %v1893
      %v3622 = vunpack.c.l.b16 %v1894
      %v3623 = vunpack.c.l.b16 %v1895
      %v3624 = vunpack.c.l.b16 %v1896
      %v3625 = vunpack.c.l.b16 %v1897
      %v3626 = vunpack.c.l.b16 %v1898
      %v3627 = vunpack.c.l.b16 %v1899
      %v3628 = vunpack.c.l.b16 %v1900
      %v3629 = vunpack.c.l.b16 %v1901
      %v3630 = vunpack.c.l.b16 %v1902
      %v3631 = vunpack.c.l.b16 %v1903
      %v3632 = vunpack.c.l.b16 %v1904
      %v3633 = vunpack.c.l.b16 %v1905
      %v3634 = vunpack.c.l.b16 %v1906
      %v3635 = vunpack.c.l.b16 %v1907
      %v3636 = vunpack.c.l.b16 %v1908
      %v3637 = vunpack.c.l.b16 %v1909
      %v3638 = vunpack.c.l.b16 %v1910
      %v3639 = vunpack.c.l.b16 %v1911
      %v3640 = vunpack.c.l.b16 %v1912
      %v3641 = vunpack.c.l.b16 %v1913
      %v3642 = vunpack.c.l.b16 %v1914
      %v3643 = vunpack.c.l.b16 %v1915
      %v3644 = vunpack.c.l.b16 %v1916
      %v3645 = vunpack.c.l.b16 %v1917
      %v3646 = vunpack.c.l.b16 %v1918
      %v3647 = vpack.c.b16 %v3504, %v3503
      %v3648 = vpack.c.b16 %v3506, %v3505
      %v3649 = vpack.c.b16 %v3508, %v3507
      %v3650 = vpack.c.b16 %v3510, %v3509
      %v3651 = vpack.c.b16 %v3512, %v3511
      %v3652 = vpack.c.b16 %v3514, %v3513
      %v3653 = vpack.c.b16 %v3516, %v3515
      %v3654 = vpack.c.b16 %v3518, %v3517
      %v3655 = vpack.c.b16 %v3520, %v3519
      %v3656 = vpack.c.b16 %v3522, %v3521
      %v3657 = vpack.c.b16 %v3524, %v3523
      %v3658 = vpack.c.b16 %v3526, %v3525
      %v3659 = vpack.c.b16 %v3528, %v3527
      %v3660 = vpack.c.b16 %v3530, %v3529
      %v3661 = vpack.c.b16 %v3532, %v3531
      %v3662 = vpack.c.b16 %v3534, %v3533
      %v3663 = vpack.c.b16 %v3536, %v3535
      %v3664 = vpack.c.b16 %v3538, %v3537
      %v3665 = vpack.c.b16 %v3540, %v3539
      %v3666 = vpack.c.b16 %v3542, %v3541
      %v3667 = vpack.c.b16 %v3544, %v3543
      %v3668 = vpack.c.b16 %v3546, %v3545
      %v3669 = vpack.c.b16 %v3548, %v3547
      %v3670 = vpack.c.b16 %v3550, %v3549
      %v3671 = vpack.c.b16 %v3552, %v3551
      %v3672 = vpack.c.b16 %v3554, %v3553
      %v3673 = vpack.c.b16 %v3556, %v3555
      %v3674 = vpack.c.b16 %v3558, %v3557
      %v3675 = vpack.c.b16 %v3560, %v3559
      %v3676 = vpack.c.b16 %v3562, %v3561
      %v3677 = vpack.c.b16 %v3564, %v3563
      %v3678 = vpack.c.b16 %v3566, %v3565
      %v3679 = vpack.c.b16 %v3568, %v3567
      %v3680 = vpack.c.b16 %v3570, %v3569
      %v3681 = vpack.c.b16 %v3572, %v3571
      %v3682 = vpack.c.b16 %v3574, %v3573
      %v3683 = vpack.c.b16 %v3576, %v3575
      %v3684 = vpack.c.b16 %v3578, %v3577
      %v3685 = vpack.c.b16 %v3580, %v3579
      %v3686 = vpack.c.b16 %v3582, %v3581
      %v3687 = vpack.c.b16 %v3584, %v3583
      %v3688 = vpack.c.b16 %v3586, %v3585
      %v3689 = vpack.c.b16 %v3588, %v3587
      %v3690 = vpack.c.b16 %v3590, %v3589
      %v3691 = vpack.c.b16 %v3592, %v3591
      %v3692 = vpack.c.b16 %v3594, %v3593
      %v3693 = vpack.c.b16 %v3596, %v3595
      %v3694 = vpack.c.b16 %v3598, %v3597
      %v3695 = vpack.c.b16 %v3600, %v3599
      %v3696 = vpack.c.b16 %v3602, %v3601
      %v3697 = vpack.c.b16 %v3604, %v3603
      %v3698 = vpack.c.b16 %v3606, %v3605
      %v3699 = vpack.c.b16 %v3608, %v3607
      %v3700 = vpack.c.b16 %v3610, %v3609
      %v3701 = vpack.c.b16 %v3612, %v3611
      %v3702 = vpack.c.b16 %v3614, %v3613
      %v3703 = vpack.c.b16 %v3616, %v3615
      %v3704 = vpack.c.b16 %v3618, %v3617
      %v3705 = vpack.c.b16 %v3620, %v3619
      %v3706 = vpack.c.b16 %v3622, %v3621
      %v3707 = vpack.c.b16 %v3624, %v3623
      %v3708 = vpack.c.b16 %v3626, %v3625
      %v3709 = vpack.c.b16 %v3628, %v3627
      %v3710 = vpack.c.b16 %v3630, %v3629
      %v3711 = vpack.c.b16 %v3632, %v3631
      %v3712 = vpack.c.b16 %v3634, %v3633
      %v3713 = vpack.c.b16 %v3636, %v3635
      %v3714 = vpack.c.b16 %v3638, %v3637
      %v3715 = vpack.c.b16 %v3640, %v3639
      %v3716 = vpack.c.b16 %v3642, %v3641
      %v3717 = vpack.c.b16 %v3644, %v3643
      %v3718 = vpack.c.b16 %v3646, %v3645
      %3791 = vmatpush.bf16.msra.mxu0 %v3654
      %3792 = vmatpush.bf16.msra.mxu0 %v3653
      %3793 = vmatpush.bf16.msra.mxu0 %v3652
      %3794 = vmatpush.bf16.msra.mxu0 %v3651
      %3795 = vmatpush.bf16.msra.mxu0 %v3650
      %3796 = vmatpush.bf16.msra.mxu0 %v3649
      %3797 = vmatpush.bf16.msra.mxu0 %v3648
      %3798 = vmatpush.bf16.msra.mxu0 %v3647
      %3799 = vmatmul.bf16.gmra.mxu0 %v1935
      %v3800 = vpop.f32.mrf.mxu0
      %v3801 = vadd.f32 %v1921, %v3800
      %v3802 = vpop.f32.mrf.mxu0
      %v3803 = vadd.f32 %v1921, %v3802
      %3804 = vmatmul.bf16.gmra.mxu0 %v2075
      %v3805 = vpop.f32.mrf.mxu0
      %v3806 = vadd.f32 %v1921, %v3805
      %v3807 = vpop.f32.mrf.mxu0
      %v3808 = vadd.f32 %v1921, %v3807
      %3809 = vmatmul.bf16.gmra.mxu0 %v2135
      %v3810 = vpop.f32.mrf.mxu0
      %v3811 = vadd.f32 %v1921, %v3810
      %v3812 = vpop.f32.mrf.mxu0
      %v3813 = vadd.f32 %v1921, %v3812
      %3814 = vmatmul.bf16.gmra.mxu0 %v2193
      %v3815 = vpop.f32.mrf.mxu0
      %v3816 = vadd.f32 %v1921, %v3815
      %v3817 = vpop.f32.mrf.mxu0
      %v3818 = vadd.f32 %v1921, %v3817
      %3819 = vmatmul.bf16.gmra.mxu0 %v2251
      %v3820 = vpop.f32.mrf.mxu0
      %v3821 = vadd.f32 %v1921, %v3820
      %v3822 = vpop.f32.mrf.mxu0
      %v3823 = vadd.f32 %v1921, %v3822
      %3824 = vmatmul.bf16.gmra.mxu0 %v2309
      %v3825 = vpop.f32.mrf.mxu0
      %v3826 = vadd.f32 %v1921, %v3825
      %v3827 = vpop.f32.mrf.mxu0
      %v3828 = vadd.f32 %v1921, %v3827
      %3829 = vmatmul.bf16.gmra.mxu0 %v2367
      %v3830 = vpop.f32.mrf.mxu0
      %v3831 = vadd.f32 %v1921, %v3830
      %v3832 = vpop.f32.mrf.mxu0
      %v3833 = vadd.f32 %v1921, %v3832
      %3834 = vmatmul.bf16.gmra.mxu0 %v2425
      %v3835 = vpop.f32.mrf.mxu0
      %v3836 = vadd.f32 %v1921, %v3835
      %v3837 = vpop.f32.mrf.mxu0
      %v3838 = vadd.f32 %v1921, %v3837
      %3839 = vmatmul.bf16.gmra.mxu0 %v2483
      %v3840 = vpop.f32.mrf.mxu0
      %v3841 = vadd.f32 %v1921, %v3840
      %v3842 = vpop.f32.mrf.mxu0
      %v3843 = vadd.f32 %v1921, %v3842
      %3844 = vmatmul.bf16.gmra.mxu0 %v2541
      %v3845 = vpop.f32.mrf.mxu0
      %v3846 = vadd.f32 %v1921, %v3845
      %v3847 = vpop.f32.mrf.mxu0
      %v3848 = vadd.f32 %v1921, %v3847
      %3849 = vmatmul.bf16.gmra.mxu0 %v2599
      %v3850 = vpop.f32.mrf.mxu0
      %v3851 = vadd.f32 %v1921, %v3850
      %v3852 = vpop.f32.mrf.mxu0
      %v3853 = vadd.f32 %v1921, %v3852
      %3854 = vmatmul.bf16.gmra.mxu0 %v2657
      %v3855 = vpop.f32.mrf.mxu0
      %v3856 = vadd.f32 %v1921, %v3855
      %v3857 = vpop.f32.mrf.mxu0
      %v3858 = vadd.f32 %v1921, %v3857
      %3859 = vmatmul.bf16.gmra.mxu0 %v2715
      %v3860 = vpop.f32.mrf.mxu0
      %v3861 = vadd.f32 %v1921, %v3860
      %v3862 = vpop.f32.mrf.mxu0
      %v3863 = vadd.f32 %v1921, %v3862
      %3864 = vmatmul.bf16.gmra.mxu0 %v2773
      %v3865 = vpop.f32.mrf.mxu0
      %v3866 = vadd.f32 %v1921, %v3865
      %v3867 = vpop.f32.mrf.mxu0
      %v3868 = vadd.f32 %v1921, %v3867
      %3869 = vmatmul.bf16.gmra.mxu0 %v2831
      %v3870 = vpop.f32.mrf.mxu0
      %v3871 = vadd.f32 %v1921, %v3870
      %v3872 = vpop.f32.mrf.mxu0
      %v3873 = vadd.f32 %v1921, %v3872
      %3874 = vmatmul.bf16.gmra.mxu0 %v2889
      %v3875 = vpop.f32.mrf.mxu0
      %v3876 = vadd.f32 %v1921, %v3875
      %v3877 = vpop.f32.mrf.mxu0
      %v3878 = vadd.f32 %v1921, %v3877
      %3879 = vmatmul.bf16.gmra.mxu0 %v2947
      %v3880 = vpop.f32.mrf.mxu0
      %v3881 = vadd.f32 %v1921, %v3880
      %v3882 = vpop.f32.mrf.mxu0
      %v3883 = vadd.f32 %v1921, %v3882
      %3884 = vmatmul.bf16.gmra.mxu0 %v3005
      %v3885 = vpop.f32.mrf.mxu0
      %v3886 = vadd.f32 %v1921, %v3885
      %v3887 = vpop.f32.mrf.mxu0
      %v3888 = vadd.f32 %v1921, %v3887
      %3889 = vmatmul.bf16.gmra.mxu0 %v3063
      %v3890 = vpop.f32.mrf.mxu0
      %v3891 = vadd.f32 %v1921, %v3890
      %v3892 = vpop.f32.mrf.mxu0
      %v3893 = vadd.f32 %v1921, %v3892
      %3894 = vmatmul.bf16.gmra.mxu0 %v3130
      %v3895 = vpop.f32.mrf.mxu0
      %v3896 = vadd.f32 %v1921, %v3895
      %v3897 = vpop.f32.mrf.mxu0
      %v3898 = vadd.f32 %v1921, %v3897
      %3899 = vmatmul.bf16.gmra.mxu0 %v3129
      %v3900 = vpop.f32.mrf.mxu0
      %v3901 = vadd.f32 %v1921, %v3900
      %v3902 = vpop.f32.mrf.mxu0
      %3903 = vdwg.mxu0
      %3904 = vmatpush.bf16.msra.mxu0 %v3662
      %3905 = vmatpush.bf16.msra.mxu0 %v3661
      %3906 = vmatpush.bf16.msra.mxu0 %v3660
      %3907 = vmatpush.bf16.msra.mxu0 %v3659
      %3908 = vmatpush.bf16.msra.mxu0 %v3658
      %3909 = vmatpush.bf16.msra.mxu0 %v3657
      %3910 = vmatpush.bf16.msra.mxu0 %v3656
      %3911 = vmatpush.bf16.msra.mxu0 %v3655
      %3912 = vmatmul.bf16.gmra.mxu0 %v1952
      %v3913 = vpop.f32.mrf.mxu0
      %v3914 = vadd.f32 %v3801, %v3913
      %v3915 = vpop.f32.mrf.mxu0
      %v3916 = vadd.f32 %v3803, %v3915
      %3917 = vmatmul.bf16.gmra.mxu0 %v2084
      %v3918 = vpop.f32.mrf.mxu0
      %v3919 = vadd.f32 %v3806, %v3918
      %v3920 = vpop.f32.mrf.mxu0
      %v3921 = vadd.f32 %v3808, %v3920
      %3922 = vmatmul.bf16.gmra.mxu0 %v2144
      %v3923 = vpop.f32.mrf.mxu0
      %v3924 = vadd.f32 %v3811, %v3923
      %v3925 = vpop.f32.mrf.mxu0
      %v3926 = vadd.f32 %v3813, %v3925
      %3927 = vmatmul.bf16.gmra.mxu0 %v2202
      %v3928 = vpop.f32.mrf.mxu0
      %v3929 = vadd.f32 %v3816, %v3928
      %v3930 = vpop.f32.mrf.mxu0
      %v3931 = vadd.f32 %v3818, %v3930
      %3932 = vmatmul.bf16.gmra.mxu0 %v2260
      %v3933 = vpop.f32.mrf.mxu0
      %v3934 = vadd.f32 %v3821, %v3933
      %v3935 = vpop.f32.mrf.mxu0
      %v3936 = vadd.f32 %v3823, %v3935
      %3937 = vmatmul.bf16.gmra.mxu0 %v2318
      %v3938 = vpop.f32.mrf.mxu0
      %v3939 = vadd.f32 %v3826, %v3938
      %v3940 = vpop.f32.mrf.mxu0
      %v3941 = vadd.f32 %v3828, %v3940
      %3942 = vmatmul.bf16.gmra.mxu0 %v2376
      %v3943 = vpop.f32.mrf.mxu0
      %v3944 = vadd.f32 %v3831, %v3943
      %v3945 = vpop.f32.mrf.mxu0
      %v3946 = vadd.f32 %v3833, %v3945
      %3947 = vmatmul.bf16.gmra.mxu0 %v2434
      %v3948 = vpop.f32.mrf.mxu0
      %v3949 = vadd.f32 %v3836, %v3948
      %v3950 = vpop.f32.mrf.mxu0
      %v3951 = vadd.f32 %v3838, %v3950
      %3952 = vmatmul.bf16.gmra.mxu0 %v2492
      %v3953 = vpop.f32.mrf.mxu0
      %v3954 = vadd.f32 %v3841, %v3953
      %v3955 = vpop.f32.mrf.mxu0
      %v3956 = vadd.f32 %v3843, %v3955
      %3957 = vmatmul.bf16.gmra.mxu0 %v2550
      %v3958 = vpop.f32.mrf.mxu0
      %v3959 = vadd.f32 %v3846, %v3958
      %v3960 = vpop.f32.mrf.mxu0
      %v3961 = vadd.f32 %v3848, %v3960
      %3962 = vmatmul.bf16.gmra.mxu0 %v2608
      %v3963 = vpop.f32.mrf.mxu0
      %v3964 = vadd.f32 %v3851, %v3963
      %v3965 = vpop.f32.mrf.mxu0
      %v3966 = vadd.f32 %v3853, %v3965
      %3967 = vmatmul.bf16.gmra.mxu0 %v2666
      %v3968 = vpop.f32.mrf.mxu0
      %v3969 = vadd.f32 %v3856, %v3968
      %v3970 = vpop.f32.mrf.mxu0
      %v3971 = vadd.f32 %v3858, %v3970
      %3972 = vmatmul.bf16.gmra.mxu0 %v2724
      %v3973 = vpop.f32.mrf.mxu0
      %v3974 = vadd.f32 %v3861, %v3973
      %v3975 = vpop.f32.mrf.mxu0
      %v3976 = vadd.f32 %v3863, %v3975
      %3977 = vmatmul.bf16.gmra.mxu0 %v2782
      %v3978 = vpop.f32.mrf.mxu0
      %v3979 = vadd.f32 %v3866, %v3978
      %v3980 = vpop.f32.mrf.mxu0
      %v3981 = vadd.f32 %v3868, %v3980
      %3982 = vmatmul.bf16.gmra.mxu0 %v2840
      %v3983 = vpop.f32.mrf.mxu0
      %v3984 = vadd.f32 %v3871, %v3983
      %v3985 = vpop.f32.mrf.mxu0
      %v3986 = vadd.f32 %v3873, %v3985
      %3987 = vmatmul.bf16.gmra.mxu0 %v2898
      %v3988 = vpop.f32.mrf.mxu0
      %v3989 = vadd.f32 %v3876, %v3988
      %v3990 = vpop.f32.mrf.mxu0
      %v3991 = vadd.f32 %v3878, %v3990
      %3992 = vmatmul.bf16.gmra.mxu0 %v2956
      %v3993 = vpop.f32.mrf.mxu0
      %v3994 = vadd.f32 %v3881, %v3993
      %v3995 = vpop.f32.mrf.mxu0
      %v3996 = vadd.f32 %v3883, %v3995
      %3997 = vmatmul.bf16.gmra.mxu0 %v3014
      %v3998 = vpop.f32.mrf.mxu0
      %v3999 = vadd.f32 %v3886, %v3998
      %v4000 = vpop.f32.mrf.mxu0
      %v4001 = vadd.f32 %v3888, %v4000
      %4002 = vmatmul.bf16.gmra.mxu0 %v3072
      %v4003 = vpop.f32.mrf.mxu0
      %v4004 = vadd.f32 %v3891, %v4003
      %v4005 = vpop.f32.mrf.mxu0
      %v4006 = vadd.f32 %v3893, %v4005
      %4007 = vmatmul.bf16.gmra.mxu0 %v3139
      %v4008 = vpop.f32.mrf.mxu0
      %v4009 = vadd.f32 %v3896, %v4008
      %v4010 = vpop.f32.mrf.mxu0
      %v4011 = vadd.f32 %v3898, %v4010
      %4012 = vmatmul.bf16.gmra.mxu0 %v3138
      %v4013 = vpop.f32.mrf.mxu0
      %v4014 = vadd.f32 %v3901, %v4013
      %v4015 = vpop.f32.mrf.mxu0
      %4016 = vdwg.mxu0
      %4017 = vmatpush.bf16.msra.mxu0 %v3670
      %4018 = vmatpush.bf16.msra.mxu0 %v3669
      %4019 = vmatpush.bf16.msra.mxu0 %v3668
      %4020 = vmatpush.bf16.msra.mxu0 %v3667
      %4021 = vmatpush.bf16.msra.mxu0 %v3666
      %4022 = vmatpush.bf16.msra.mxu0 %v3665
      %4023 = vmatpush.bf16.msra.mxu0 %v3664
      %4024 = vmatpush.bf16.msra.mxu0 %v3663
      %4025 = vmatmul.bf16.gmra.mxu0 %v1969
      %v4026 = vpop.f32.mrf.mxu0
      %v4027 = vadd.f32 %v3914, %v4026
      %v4028 = vpop.f32.mrf.mxu0
      %v4029 = vadd.f32 %v3916, %v4028
      %4030 = vmatmul.bf16.gmra.mxu0 %v2085
      %v4031 = vpop.f32.mrf.mxu0
      %v4032 = vadd.f32 %v3919, %v4031
      %v4033 = vpop.f32.mrf.mxu0
      %v4034 = vadd.f32 %v3921, %v4033
      %4035 = vmatmul.bf16.gmra.mxu0 %v2094
      %v4036 = vpop.f32.mrf.mxu0
      %v4037 = vadd.f32 %v3924, %v4036
      %v4038 = vpop.f32.mrf.mxu0
      %v4039 = vadd.f32 %v3926, %v4038
      %4040 = vmatmul.bf16.gmra.mxu0 %v2153
      %v4041 = vpop.f32.mrf.mxu0
      %v4042 = vadd.f32 %v3929, %v4041
      %v4043 = vpop.f32.mrf.mxu0
      %v4044 = vadd.f32 %v3931, %v4043
      %4045 = vmatmul.bf16.gmra.mxu0 %v2211
      %v4046 = vpop.f32.mrf.mxu0
      %v4047 = vadd.f32 %v3934, %v4046
      %v4048 = vpop.f32.mrf.mxu0
      %v4049 = vadd.f32 %v3936, %v4048
      %4050 = vmatmul.bf16.gmra.mxu0 %v2269
      %v4051 = vpop.f32.mrf.mxu0
      %v4052 = vadd.f32 %v3939, %v4051
      %v4053 = vpop.f32.mrf.mxu0
      %v4054 = vadd.f32 %v3941, %v4053
      %4055 = vmatmul.bf16.gmra.mxu0 %v2327
      %v4056 = vpop.f32.mrf.mxu0
      %v4057 = vadd.f32 %v3944, %v4056
      %v4058 = vpop.f32.mrf.mxu0
      %v4059 = vadd.f32 %v3946, %v4058
      %4060 = vmatmul.bf16.gmra.mxu0 %v2385
      %v4061 = vpop.f32.mrf.mxu0
      %v4062 = vadd.f32 %v3949, %v4061
      %v4063 = vpop.f32.mrf.mxu0
      %v4064 = vadd.f32 %v3951, %v4063
      %4065 = vmatmul.bf16.gmra.mxu0 %v2443
      %v4066 = vpop.f32.mrf.mxu0
      %v4067 = vadd.f32 %v3954, %v4066
      %v4068 = vpop.f32.mrf.mxu0
      %v4069 = vadd.f32 %v3956, %v4068
      %4070 = vmatmul.bf16.gmra.mxu0 %v2501
      %v4071 = vpop.f32.mrf.mxu0
      %v4072 = vadd.f32 %v3959, %v4071
      %v4073 = vpop.f32.mrf.mxu0
      %v4074 = vadd.f32 %v3961, %v4073
      %4075 = vmatmul.bf16.gmra.mxu0 %v2559
      %v4076 = vpop.f32.mrf.mxu0
      %v4077 = vadd.f32 %v3964, %v4076
      %v4078 = vpop.f32.mrf.mxu0
      %v4079 = vadd.f32 %v3966, %v4078
      %4080 = vmatmul.bf16.gmra.mxu0 %v2617
      %v4081 = vpop.f32.mrf.mxu0
      %v4082 = vadd.f32 %v3969, %v4081
      %v4083 = vpop.f32.mrf.mxu0
      %v4084 = vadd.f32 %v3971, %v4083
      %4085 = vmatmul.bf16.gmra.mxu0 %v2675
      %v4086 = vpop.f32.mrf.mxu0
      %v4087 = vadd.f32 %v3974, %v4086
      %v4088 = vpop.f32.mrf.mxu0
      %v4089 = vadd.f32 %v3976, %v4088
      %4090 = vmatmul.bf16.gmra.mxu0 %v2733
      %v4091 = vpop.f32.mrf.mxu0
      %v4092 = vadd.f32 %v3979, %v4091
      %v4093 = vpop.f32.mrf.mxu0
      %v4094 = vadd.f32 %v3981, %v4093
      %4095 = vmatmul.bf16.gmra.mxu0 %v2791
      %v4096 = vpop.f32.mrf.mxu0
      %v4097 = vadd.f32 %v3984, %v4096
      %v4098 = vpop.f32.mrf.mxu0
      %v4099 = vadd.f32 %v3986, %v4098
      %4100 = vmatmul.bf16.gmra.mxu0 %v2849
      %v4101 = vpop.f32.mrf.mxu0
      %v4102 = vadd.f32 %v3989, %v4101
      %v4103 = vpop.f32.mrf.mxu0
      %v4104 = vadd.f32 %v3991, %v4103
      %4105 = vmatmul.bf16.gmra.mxu0 %v2907
      %v4106 = vpop.f32.mrf.mxu0
      %v4107 = vadd.f32 %v3994, %v4106
      %v4108 = vpop.f32.mrf.mxu0
      %v4109 = vadd.f32 %v3996, %v4108
      %4110 = vmatmul.bf16.gmra.mxu0 %v2965
      %v4111 = vpop.f32.mrf.mxu0
      %v4112 = vadd.f32 %v3999, %v4111
      %v4113 = vpop.f32.mrf.mxu0
      %v4114 = vadd.f32 %v4001, %v4113
      %4115 = vmatmul.bf16.gmra.mxu0 %v3081
      %v4116 = vpop.f32.mrf.mxu0
      %v4117 = vadd.f32 %v4004, %v4116
      %v4118 = vpop.f32.mrf.mxu0
      %v4119 = vadd.f32 %v4006, %v4118
      %4120 = vmatmul.bf16.gmra.mxu0 %v3148
      %v4121 = vpop.f32.mrf.mxu0
      %v4122 = vadd.f32 %v4009, %v4121
      %v4123 = vpop.f32.mrf.mxu0
      %v4124 = vadd.f32 %v4011, %v4123
      %4125 = vmatmul.bf16.gmra.mxu0 %v3147
      %v4126 = vpop.f32.mrf.mxu0
      %v4127 = vadd.f32 %v4014, %v4126
      %v4128 = vpop.f32.mrf.mxu0
      %4129 = vdwg.mxu0
      %4130 = vmatpush.bf16.msra.mxu0 %v3678
      %4131 = vmatpush.bf16.msra.mxu0 %v3677
      %4132 = vmatpush.bf16.msra.mxu0 %v3676
      %4133 = vmatpush.bf16.msra.mxu0 %v3675
      %4134 = vmatpush.bf16.msra.mxu0 %v3674
      %4135 = vmatpush.bf16.msra.mxu0 %v3673
      %4136 = vmatpush.bf16.msra.mxu0 %v3672
      %4137 = vmatpush.bf16.msra.mxu0 %v3671
      %4138 = vmatmul.bf16.gmra.mxu0 %v1986
      %v4139 = vpop.f32.mrf.mxu0
      %v4140 = vadd.f32 %v4027, %v4139
      %v4141 = vpop.f32.mrf.mxu0
      %v4142 = vadd.f32 %v4029, %v4141
      %4143 = vmatmul.bf16.gmra.mxu0 %v2094
      %v4144 = vpop.f32.mrf.mxu0
      %v4145 = vadd.f32 %v4032, %v4144
      %v4146 = vpop.f32.mrf.mxu0
      %v4147 = vadd.f32 %v4034, %v4146
      %4148 = vmatmul.bf16.gmra.mxu0 %v2153
      %v4149 = vpop.f32.mrf.mxu0
      %v4150 = vadd.f32 %v4037, %v4149
      %v4151 = vpop.f32.mrf.mxu0
      %v4152 = vadd.f32 %v4039, %v4151
      %4153 = vmatmul.bf16.gmra.mxu0 %v2211
      %v4154 = vpop.f32.mrf.mxu0
      %v4155 = vadd.f32 %v4042, %v4154
      %v4156 = vpop.f32.mrf.mxu0
      %v4157 = vadd.f32 %v4044, %v4156
      %4158 = vmatmul.bf16.gmra.mxu0 %v2269
      %v4159 = vpop.f32.mrf.mxu0
      %v4160 = vadd.f32 %v4047, %v4159
      %v4161 = vpop.f32.mrf.mxu0
      %v4162 = vadd.f32 %v4049, %v4161
      %4163 = vmatmul.bf16.gmra.mxu0 %v2327
      %v4164 = vpop.f32.mrf.mxu0
      %v4165 = vadd.f32 %v4052, %v4164
      %v4166 = vpop.f32.mrf.mxu0
      %v4167 = vadd.f32 %v4054, %v4166
      %4168 = vmatmul.bf16.gmra.mxu0 %v2385
      %v4169 = vpop.f32.mrf.mxu0
      %v4170 = vadd.f32 %v4057, %v4169
      %v4171 = vpop.f32.mrf.mxu0
      %v4172 = vadd.f32 %v4059, %v4171
      %4173 = vmatmul.bf16.gmra.mxu0 %v2443
      %v4174 = vpop.f32.mrf.mxu0
      %v4175 = vadd.f32 %v4062, %v4174
      %v4176 = vpop.f32.mrf.mxu0
      %v4177 = vadd.f32 %v4064, %v4176
      %4178 = vmatmul.bf16.gmra.mxu0 %v2501
      %v4179 = vpop.f32.mrf.mxu0
      %v4180 = vadd.f32 %v4067, %v4179
      %v4181 = vpop.f32.mrf.mxu0
      %v4182 = vadd.f32 %v4069, %v4181
      %4183 = vmatmul.bf16.gmra.mxu0 %v2559
      %v4184 = vpop.f32.mrf.mxu0
      %v4185 = vadd.f32 %v4072, %v4184
      %v4186 = vpop.f32.mrf.mxu0
      %v4187 = vadd.f32 %v4074, %v4186
      %4188 = vmatmul.bf16.gmra.mxu0 %v2617
      %v4189 = vpop.f32.mrf.mxu0
      %v4190 = vadd.f32 %v4077, %v4189
      %v4191 = vpop.f32.mrf.mxu0
      %v4192 = vadd.f32 %v4079, %v4191
      %4193 = vmatmul.bf16.gmra.mxu0 %v2675
      %v4194 = vpop.f32.mrf.mxu0
      %v4195 = vadd.f32 %v4082, %v4194
      %v4196 = vpop.f32.mrf.mxu0
      %v4197 = vadd.f32 %v4084, %v4196
      %4198 = vmatmul.bf16.gmra.mxu0 %v2733
      %v4199 = vpop.f32.mrf.mxu0
      %v4200 = vadd.f32 %v4087, %v4199
      %v4201 = vpop.f32.mrf.mxu0
      %v4202 = vadd.f32 %v4089, %v4201
      %4203 = vmatmul.bf16.gmra.mxu0 %v2791
      %v4204 = vpop.f32.mrf.mxu0
      %v4205 = vadd.f32 %v4092, %v4204
      %v4206 = vpop.f32.mrf.mxu0
      %v4207 = vadd.f32 %v4094, %v4206
      %4208 = vmatmul.bf16.gmra.mxu0 %v2849
      %v4209 = vpop.f32.mrf.mxu0
      %v4210 = vadd.f32 %v4097, %v4209
      %v4211 = vpop.f32.mrf.mxu0
      %v4212 = vadd.f32 %v4099, %v4211
      %4213 = vmatmul.bf16.gmra.mxu0 %v2907
      %v4214 = vpop.f32.mrf.mxu0
      %v4215 = vadd.f32 %v4102, %v4214
      %v4216 = vpop.f32.mrf.mxu0
      %v4217 = vadd.f32 %v4104, %v4216
      %4218 = vmatmul.bf16.gmra.mxu0 %v2965
      %v4219 = vpop.f32.mrf.mxu0
      %v4220 = vadd.f32 %v4107, %v4219
      %v4221 = vpop.f32.mrf.mxu0
      %v4222 = vadd.f32 %v4109, %v4221
      %4223 = vmatmul.bf16.gmra.mxu0 %v3023
      %v4224 = vpop.f32.mrf.mxu0
      %v4225 = vadd.f32 %v4112, %v4224
      %v4226 = vpop.f32.mrf.mxu0
      %v4227 = vadd.f32 %v4114, %v4226
      %4228 = vmatmul.bf16.gmra.mxu0 %v3090
      %v4229 = vpop.f32.mrf.mxu0
      %v4230 = vadd.f32 %v4117, %v4229
      %v4231 = vpop.f32.mrf.mxu0
      %v4232 = vadd.f32 %v4119, %v4231
      %4233 = vmatmul.bf16.gmra.mxu0 %v3157
      %v4234 = vpop.f32.mrf.mxu0
      %v4235 = vadd.f32 %v4122, %v4234
      %v4236 = vpop.f32.mrf.mxu0
      %v4237 = vadd.f32 %v4124, %v4236
      %4238 = vmatmul.bf16.gmra.mxu0 %v3156
      %v4239 = vpop.f32.mrf.mxu0
      %v4240 = vadd.f32 %v4127, %v4239
      %v4241 = vpop.f32.mrf.mxu0
      %4242 = vdwg.mxu0
      %4243 = vmatpush.bf16.msra.mxu0 %v3686
      %4244 = vmatpush.bf16.msra.mxu0 %v3685
      %4245 = vmatpush.bf16.msra.mxu0 %v3684
      %4246 = vmatpush.bf16.msra.mxu0 %v3683
      %4247 = vmatpush.bf16.msra.mxu0 %v3682
      %4248 = vmatpush.bf16.msra.mxu0 %v3681
      %4249 = vmatpush.bf16.msra.mxu0 %v3680
      %4250 = vmatpush.bf16.msra.mxu0 %v3679
      %4251 = vmatmul.bf16.gmra.mxu0 %v2003
      %v4252 = vpop.f32.mrf.mxu0
      %v4253 = vadd.f32 %v4140, %v4252
      %v4254 = vpop.f32.mrf.mxu0
      %v4255 = vadd.f32 %v4142, %v4254
      %4256 = vmatmul.bf16.gmra.mxu0 %v2103
      %v4257 = vpop.f32.mrf.mxu0
      %v4258 = vadd.f32 %v4145, %v4257
      %v4259 = vpop.f32.mrf.mxu0
      %v4260 = vadd.f32 %v4147, %v4259
      %4261 = vmatmul.bf16.gmra.mxu0 %v2162
      %v4262 = vpop.f32.mrf.mxu0
      %v4263 = vadd.f32 %v4150, %v4262
      %v4264 = vpop.f32.mrf.mxu0
      %v4265 = vadd.f32 %v4152, %v4264
      %4266 = vmatmul.bf16.gmra.mxu0 %v2220
      %v4267 = vpop.f32.mrf.mxu0
      %v4268 = vadd.f32 %v4155, %v4267
      %v4269 = vpop.f32.mrf.mxu0
      %v4270 = vadd.f32 %v4157, %v4269
      %4271 = vmatmul.bf16.gmra.mxu0 %v2278
      %v4272 = vpop.f32.mrf.mxu0
      %v4273 = vadd.f32 %v4160, %v4272
      %v4274 = vpop.f32.mrf.mxu0
      %v4275 = vadd.f32 %v4162, %v4274
      %4276 = vmatmul.bf16.gmra.mxu0 %v2336
      %v4277 = vpop.f32.mrf.mxu0
      %v4278 = vadd.f32 %v4165, %v4277
      %v4279 = vpop.f32.mrf.mxu0
      %v4280 = vadd.f32 %v4167, %v4279
      %4281 = vmatmul.bf16.gmra.mxu0 %v2394
      %v4282 = vpop.f32.mrf.mxu0
      %v4283 = vadd.f32 %v4170, %v4282
      %v4284 = vpop.f32.mrf.mxu0
      %v4285 = vadd.f32 %v4172, %v4284
      %4286 = vmatmul.bf16.gmra.mxu0 %v2452
      %v4287 = vpop.f32.mrf.mxu0
      %v4288 = vadd.f32 %v4175, %v4287
      %v4289 = vpop.f32.mrf.mxu0
      %v4290 = vadd.f32 %v4177, %v4289
      %4291 = vmatmul.bf16.gmra.mxu0 %v2510
      %v4292 = vpop.f32.mrf.mxu0
      %v4293 = vadd.f32 %v4180, %v4292
      %v4294 = vpop.f32.mrf.mxu0
      %v4295 = vadd.f32 %v4182, %v4294
      %4296 = vmatmul.bf16.gmra.mxu0 %v2568
      %v4297 = vpop.f32.mrf.mxu0
      %v4298 = vadd.f32 %v4185, %v4297
      %v4299 = vpop.f32.mrf.mxu0
      %v4300 = vadd.f32 %v4187, %v4299
      %4301 = vmatmul.bf16.gmra.mxu0 %v2626
      %v4302 = vpop.f32.mrf.mxu0
      %v4303 = vadd.f32 %v4190, %v4302
      %v4304 = vpop.f32.mrf.mxu0
      %v4305 = vadd.f32 %v4192, %v4304
      %4306 = vmatmul.bf16.gmra.mxu0 %v2684
      %v4307 = vpop.f32.mrf.mxu0
      %v4308 = vadd.f32 %v4195, %v4307
      %v4309 = vpop.f32.mrf.mxu0
      %v4310 = vadd.f32 %v4197, %v4309
      %4311 = vmatmul.bf16.gmra.mxu0 %v2742
      %v4312 = vpop.f32.mrf.mxu0
      %v4313 = vadd.f32 %v4200, %v4312
      %v4314 = vpop.f32.mrf.mxu0
      %v4315 = vadd.f32 %v4202, %v4314
      %4316 = vmatmul.bf16.gmra.mxu0 %v2800
      %v4317 = vpop.f32.mrf.mxu0
      %v4318 = vadd.f32 %v4205, %v4317
      %v4319 = vpop.f32.mrf.mxu0
      %v4320 = vadd.f32 %v4207, %v4319
      %4321 = vmatmul.bf16.gmra.mxu0 %v2858
      %v4322 = vpop.f32.mrf.mxu0
      %v4323 = vadd.f32 %v4210, %v4322
      %v4324 = vpop.f32.mrf.mxu0
      %v4325 = vadd.f32 %v4212, %v4324
      %4326 = vmatmul.bf16.gmra.mxu0 %v2916
      %v4327 = vpop.f32.mrf.mxu0
      %v4328 = vadd.f32 %v4215, %v4327
      %v4329 = vpop.f32.mrf.mxu0
      %v4330 = vadd.f32 %v4217, %v4329
      %4331 = vmatmul.bf16.gmra.mxu0 %v2974
      %v4332 = vpop.f32.mrf.mxu0
      %v4333 = vadd.f32 %v4220, %v4332
      %v4334 = vpop.f32.mrf.mxu0
      %v4335 = vadd.f32 %v4222, %v4334
      %4336 = vmatmul.bf16.gmra.mxu0 %v3032
      %v4337 = vpop.f32.mrf.mxu0
      %v4338 = vadd.f32 %v4225, %v4337
      %v4339 = vpop.f32.mrf.mxu0
      %v4340 = vadd.f32 %v4227, %v4339
      %4341 = vmatmul.bf16.gmra.mxu0 %v3099
      %v4342 = vpop.f32.mrf.mxu0
      %v4343 = vadd.f32 %v4230, %v4342
      %v4344 = vpop.f32.mrf.mxu0
      %v4345 = vadd.f32 %v4232, %v4344
      %4346 = vmatmul.bf16.gmra.mxu0 %v3166
      %v4347 = vpop.f32.mrf.mxu0
      %v4348 = vadd.f32 %v4235, %v4347
      %v4349 = vpop.f32.mrf.mxu0
      %v4350 = vadd.f32 %v4237, %v4349
      %4351 = vmatmul.bf16.gmra.mxu0 %v3165
      %v4352 = vpop.f32.mrf.mxu0
      %v4353 = vadd.f32 %v4240, %v4352
      %v4354 = vpop.f32.mrf.mxu0
      %4355 = vdwg.mxu0
      %4356 = vmatpush.bf16.msra.mxu0 %v3694
      %4357 = vmatpush.bf16.msra.mxu0 %v3693
      %4358 = vmatpush.bf16.msra.mxu0 %v3692
      %4359 = vmatpush.bf16.msra.mxu0 %v3691
      %4360 = vmatpush.bf16.msra.mxu0 %v3690
      %4361 = vmatpush.bf16.msra.mxu0 %v3689
      %4362 = vmatpush.bf16.msra.mxu0 %v3688
      %4363 = vmatpush.bf16.msra.mxu0 %v3687
      %4364 = vmatmul.bf16.gmra.mxu0 %v2020
      %v4365 = vpop.f32.mrf.mxu0
      %v4366 = vadd.f32 %v4253, %v4365
      %v4367 = vpop.f32.mrf.mxu0
      %v4368 = vadd.f32 %v4255, %v4367
      %4369 = vmatmul.bf16.gmra.mxu0 %v2104
      %v4370 = vpop.f32.mrf.mxu0
      %v4371 = vadd.f32 %v4258, %v4370
      %v4372 = vpop.f32.mrf.mxu0
      %v4373 = vadd.f32 %v4260, %v4372
      %4374 = vmatmul.bf16.gmra.mxu0 %v2113
      %v4375 = vpop.f32.mrf.mxu0
      %v4376 = vadd.f32 %v4263, %v4375
      %v4377 = vpop.f32.mrf.mxu0
      %v4378 = vadd.f32 %v4265, %v4377
      %4379 = vmatmul.bf16.gmra.mxu0 %v2171
      %v4380 = vpop.f32.mrf.mxu0
      %v4381 = vadd.f32 %v4268, %v4380
      %v4382 = vpop.f32.mrf.mxu0
      %v4383 = vadd.f32 %v4270, %v4382
      %4384 = vmatmul.bf16.gmra.mxu0 %v2229
      %v4385 = vpop.f32.mrf.mxu0
      %v4386 = vadd.f32 %v4273, %v4385
      %v4387 = vpop.f32.mrf.mxu0
      %v4388 = vadd.f32 %v4275, %v4387
      %4389 = vmatmul.bf16.gmra.mxu0 %v2287
      %v4390 = vpop.f32.mrf.mxu0
      %v4391 = vadd.f32 %v4278, %v4390
      %v4392 = vpop.f32.mrf.mxu0
      %v4393 = vadd.f32 %v4280, %v4392
      %4394 = vmatmul.bf16.gmra.mxu0 %v2345
      %v4395 = vpop.f32.mrf.mxu0
      %v4396 = vadd.f32 %v4283, %v4395
      %v4397 = vpop.f32.mrf.mxu0
      %v4398 = vadd.f32 %v4285, %v4397
      %4399 = vmatmul.bf16.gmra.mxu0 %v2403
      %v4400 = vpop.f32.mrf.mxu0
      %v4401 = vadd.f32 %v4288, %v4400
      %v4402 = vpop.f32.mrf.mxu0
      %v4403 = vadd.f32 %v4290, %v4402
      %4404 = vmatmul.bf16.gmra.mxu0 %v2461
      %v4405 = vpop.f32.mrf.mxu0
      %v4406 = vadd.f32 %v4293, %v4405
      %v4407 = vpop.f32.mrf.mxu0
      %v4408 = vadd.f32 %v4295, %v4407
      %4409 = vmatmul.bf16.gmra.mxu0 %v2519
      %v4410 = vpop.f32.mrf.mxu0
      %v4411 = vadd.f32 %v4298, %v4410
      %v4412 = vpop.f32.mrf.mxu0
      %v4413 = vadd.f32 %v4300, %v4412
      %4414 = vmatmul.bf16.gmra.mxu0 %v2577
      %v4415 = vpop.f32.mrf.mxu0
      %v4416 = vadd.f32 %v4303, %v4415
      %v4417 = vpop.f32.mrf.mxu0
      %v4418 = vadd.f32 %v4305, %v4417
      %4419 = vmatmul.bf16.gmra.mxu0 %v2635
      %v4420 = vpop.f32.mrf.mxu0
      %v4421 = vadd.f32 %v4308, %v4420
      %v4422 = vpop.f32.mrf.mxu0
      %v4423 = vadd.f32 %v4310, %v4422
      %4424 = vmatmul.bf16.gmra.mxu0 %v2693
      %v4425 = vpop.f32.mrf.mxu0
      %v4426 = vadd.f32 %v4313, %v4425
      %v4427 = vpop.f32.mrf.mxu0
      %v4428 = vadd.f32 %v4315, %v4427
      %4429 = vmatmul.bf16.gmra.mxu0 %v2751
      %v4430 = vpop.f32.mrf.mxu0
      %v4431 = vadd.f32 %v4318, %v4430
      %v4432 = vpop.f32.mrf.mxu0
      %v4433 = vadd.f32 %v4320, %v4432
      %4434 = vmatmul.bf16.gmra.mxu0 %v2809
      %v4435 = vpop.f32.mrf.mxu0
      %v4436 = vadd.f32 %v4323, %v4435
      %v4437 = vpop.f32.mrf.mxu0
      %v4438 = vadd.f32 %v4325, %v4437
      %4439 = vmatmul.bf16.gmra.mxu0 %v2867
      %v4440 = vpop.f32.mrf.mxu0
      %v4441 = vadd.f32 %v4328, %v4440
      %v4442 = vpop.f32.mrf.mxu0
      %v4443 = vadd.f32 %v4330, %v4442
      %4444 = vmatmul.bf16.gmra.mxu0 %v2925
      %v4445 = vpop.f32.mrf.mxu0
      %v4446 = vadd.f32 %v4333, %v4445
      %v4447 = vpop.f32.mrf.mxu0
      %v4448 = vadd.f32 %v4335, %v4447
      %4449 = vmatmul.bf16.gmra.mxu0 %v2983
      %v4450 = vpop.f32.mrf.mxu0
      %v4451 = vadd.f32 %v4338, %v4450
      %v4452 = vpop.f32.mrf.mxu0
      %v4453 = vadd.f32 %v4340, %v4452
      %4454 = vmatmul.bf16.gmra.mxu0 %v3041
      %v4455 = vpop.f32.mrf.mxu0
      %v4456 = vadd.f32 %v4343, %v4455
      %v4457 = vpop.f32.mrf.mxu0
      %v4458 = vadd.f32 %v4345, %v4457
      %4459 = vmatmul.bf16.gmra.mxu0 %v3175
      %v4460 = vpop.f32.mrf.mxu0
      %v4461 = vadd.f32 %v4348, %v4460
      %v4462 = vpop.f32.mrf.mxu0
      %v4463 = vadd.f32 %v4350, %v4462
      %4464 = vmatmul.bf16.gmra.mxu0 %v3174
      %v4465 = vpop.f32.mrf.mxu0
      %v4466 = vadd.f32 %v4353, %v4465
      %v4467 = vpop.f32.mrf.mxu0
      %4468 = vdwg.mxu0
      %4469 = vmatpush.bf16.msra.mxu0 %v3702
      %4470 = vmatpush.bf16.msra.mxu0 %v3701
      %4471 = vmatpush.bf16.msra.mxu0 %v3700
      %4472 = vmatpush.bf16.msra.mxu0 %v3699
      %4473 = vmatpush.bf16.msra.mxu0 %v3698
      %4474 = vmatpush.bf16.msra.mxu0 %v3697
      %4475 = vmatpush.bf16.msra.mxu0 %v3696
      %4476 = vmatpush.bf16.msra.mxu0 %v3695
      %4477 = vmatmul.bf16.gmra.mxu0 %v2037
      %v4478 = vpop.f32.mrf.mxu0
      %v4479 = vadd.f32 %v4366, %v4478
      %v4480 = vpop.f32.mrf.mxu0
      %v4481 = vadd.f32 %v4368, %v4480
      %4482 = vmatmul.bf16.gmra.mxu0 %v2113
      %v4483 = vpop.f32.mrf.mxu0
      %v4484 = vadd.f32 %v4371, %v4483
      %v4485 = vpop.f32.mrf.mxu0
      %v4486 = vadd.f32 %v4373, %v4485
      %4487 = vmatmul.bf16.gmra.mxu0 %v2171
      %v4488 = vpop.f32.mrf.mxu0
      %v4489 = vadd.f32 %v4376, %v4488
      %v4490 = vpop.f32.mrf.mxu0
      %v4491 = vadd.f32 %v4378, %v4490
      %4492 = vmatmul.bf16.gmra.mxu0 %v2229
      %v4493 = vpop.f32.mrf.mxu0
      %v4494 = vadd.f32 %v4381, %v4493
      %v4495 = vpop.f32.mrf.mxu0
      %v4496 = vadd.f32 %v4383, %v4495
      %4497 = vmatmul.bf16.gmra.mxu0 %v2287
      %v4498 = vpop.f32.mrf.mxu0
      %v4499 = vadd.f32 %v4386, %v4498
      %v4500 = vpop.f32.mrf.mxu0
      %v4501 = vadd.f32 %v4388, %v4500
      %4502 = vmatmul.bf16.gmra.mxu0 %v2345
      %v4503 = vpop.f32.mrf.mxu0
      %v4504 = vadd.f32 %v4391, %v4503
      %v4505 = vpop.f32.mrf.mxu0
      %v4506 = vadd.f32 %v4393, %v4505
      %4507 = vmatmul.bf16.gmra.mxu0 %v2403
      %v4508 = vpop.f32.mrf.mxu0
      %v4509 = vadd.f32 %v4396, %v4508
      %v4510 = vpop.f32.mrf.mxu0
      %v4511 = vadd.f32 %v4398, %v4510
      %4512 = vmatmul.bf16.gmra.mxu0 %v2461
      %v4513 = vpop.f32.mrf.mxu0
      %v4514 = vadd.f32 %v4401, %v4513
      %v4515 = vpop.f32.mrf.mxu0
      %v4516 = vadd.f32 %v4403, %v4515
      %4517 = vmatmul.bf16.gmra.mxu0 %v2519
      %v4518 = vpop.f32.mrf.mxu0
      %v4519 = vadd.f32 %v4406, %v4518
      %v4520 = vpop.f32.mrf.mxu0
      %v4521 = vadd.f32 %v4408, %v4520
      %4522 = vmatmul.bf16.gmra.mxu0 %v2577
      %v4523 = vpop.f32.mrf.mxu0
      %v4524 = vadd.f32 %v4411, %v4523
      %v4525 = vpop.f32.mrf.mxu0
      %v4526 = vadd.f32 %v4413, %v4525
      %4527 = vmatmul.bf16.gmra.mxu0 %v2635
      %v4528 = vpop.f32.mrf.mxu0
      %v4529 = vadd.f32 %v4416, %v4528
      %v4530 = vpop.f32.mrf.mxu0
      %v4531 = vadd.f32 %v4418, %v4530
      %4532 = vmatmul.bf16.gmra.mxu0 %v2693
      %v4533 = vpop.f32.mrf.mxu0
      %v4534 = vadd.f32 %v4421, %v4533
      %v4535 = vpop.f32.mrf.mxu0
      %v4536 = vadd.f32 %v4423, %v4535
      %4537 = vmatmul.bf16.gmra.mxu0 %v2751
      %v4538 = vpop.f32.mrf.mxu0
      %v4539 = vadd.f32 %v4426, %v4538
      %v4540 = vpop.f32.mrf.mxu0
      %v4541 = vadd.f32 %v4428, %v4540
      %4542 = vmatmul.bf16.gmra.mxu0 %v2809
      %v4543 = vpop.f32.mrf.mxu0
      %v4544 = vadd.f32 %v4431, %v4543
      %v4545 = vpop.f32.mrf.mxu0
      %v4546 = vadd.f32 %v4433, %v4545
      %4547 = vmatmul.bf16.gmra.mxu0 %v2867
      %v4548 = vpop.f32.mrf.mxu0
      %v4549 = vadd.f32 %v4436, %v4548
      %v4550 = vpop.f32.mrf.mxu0
      %v4551 = vadd.f32 %v4438, %v4550
      %4552 = vmatmul.bf16.gmra.mxu0 %v2925
      %v4553 = vpop.f32.mrf.mxu0
      %v4554 = vadd.f32 %v4441, %v4553
      %v4555 = vpop.f32.mrf.mxu0
      %v4556 = vadd.f32 %v4443, %v4555
      %4557 = vmatmul.bf16.gmra.mxu0 %v2983
      %v4558 = vpop.f32.mrf.mxu0
      %v4559 = vadd.f32 %v4446, %v4558
      %v4560 = vpop.f32.mrf.mxu0
      %v4561 = vadd.f32 %v4448, %v4560
      %4562 = vmatmul.bf16.gmra.mxu0 %v3041
      %v4563 = vpop.f32.mrf.mxu0
      %v4564 = vadd.f32 %v4451, %v4563
      %v4565 = vpop.f32.mrf.mxu0
      %v4566 = vadd.f32 %v4453, %v4565
      %4567 = vmatmul.bf16.gmra.mxu0 %v3108
      %v4568 = vpop.f32.mrf.mxu0
      %v4569 = vadd.f32 %v4456, %v4568
      %v4570 = vpop.f32.mrf.mxu0
      %v4571 = vadd.f32 %v4458, %v4570
      %4572 = vmatmul.bf16.gmra.mxu0 %v3184
      %v4573 = vpop.f32.mrf.mxu0
      %v4574 = vadd.f32 %v4461, %v4573
      %v4575 = vpop.f32.mrf.mxu0
      %v4576 = vadd.f32 %v4463, %v4575
      %4577 = vmatmul.bf16.gmra.mxu0 %v3183
      %v4578 = vpop.f32.mrf.mxu0
      %v4579 = vadd.f32 %v4466, %v4578
      %v4580 = vpop.f32.mrf.mxu0
      %4581 = vdwg.mxu0
      %4582 = vmatpush.bf16.msra.mxu0 %v3710
      %4583 = vmatpush.bf16.msra.mxu0 %v3709
      %4584 = vmatpush.bf16.msra.mxu0 %v3708
      %4585 = vmatpush.bf16.msra.mxu0 %v3707
      %4586 = vmatpush.bf16.msra.mxu0 %v3706
      %4587 = vmatpush.bf16.msra.mxu0 %v3705
      %4588 = vmatpush.bf16.msra.mxu0 %v3704
      %4589 = vmatpush.bf16.msra.mxu0 %v3703
      %4590 = vmatmul.bf16.gmra.mxu0 %v2054
      %v4591 = vpop.f32.mrf.mxu0
      %v4592 = vadd.f32 %v4479, %v4591
      %v4593 = vpop.f32.mrf.mxu0
      %v4594 = vadd.f32 %v4481, %v4593
      %4595 = vmatmul.bf16.gmra.mxu0 %v2122
      %v4596 = vpop.f32.mrf.mxu0
      %v4597 = vadd.f32 %v4484, %v4596
      %v4598 = vpop.f32.mrf.mxu0
      %v4599 = vadd.f32 %v4486, %v4598
      %4600 = vmatmul.bf16.gmra.mxu0 %v2180
      %v4601 = vpop.f32.mrf.mxu0
      %v4602 = vadd.f32 %v4489, %v4601
      %v4603 = vpop.f32.mrf.mxu0
      %v4604 = vadd.f32 %v4491, %v4603
      %4605 = vmatmul.bf16.gmra.mxu0 %v2238
      %v4606 = vpop.f32.mrf.mxu0
      %v4607 = vadd.f32 %v4494, %v4606
      %v4608 = vpop.f32.mrf.mxu0
      %v4609 = vadd.f32 %v4496, %v4608
      %4610 = vmatmul.bf16.gmra.mxu0 %v2296
      %v4611 = vpop.f32.mrf.mxu0
      %v4612 = vadd.f32 %v4499, %v4611
      %v4613 = vpop.f32.mrf.mxu0
      %v4614 = vadd.f32 %v4501, %v4613
      %4615 = vmatmul.bf16.gmra.mxu0 %v2354
      %v4616 = vpop.f32.mrf.mxu0
      %v4617 = vadd.f32 %v4504, %v4616
      %v4618 = vpop.f32.mrf.mxu0
      %v4619 = vadd.f32 %v4506, %v4618
      %4620 = vmatmul.bf16.gmra.mxu0 %v2412
      %v4621 = vpop.f32.mrf.mxu0
      %v4622 = vadd.f32 %v4509, %v4621
      %v4623 = vpop.f32.mrf.mxu0
      %v4624 = vadd.f32 %v4511, %v4623
      %4625 = vmatmul.bf16.gmra.mxu0 %v2470
      %v4626 = vpop.f32.mrf.mxu0
      %v4627 = vadd.f32 %v4514, %v4626
      %v4628 = vpop.f32.mrf.mxu0
      %v4629 = vadd.f32 %v4516, %v4628
      %4630 = vmatmul.bf16.gmra.mxu0 %v2528
      %v4631 = vpop.f32.mrf.mxu0
      %v4632 = vadd.f32 %v4519, %v4631
      %v4633 = vpop.f32.mrf.mxu0
      %v4634 = vadd.f32 %v4521, %v4633
      %4635 = vmatmul.bf16.gmra.mxu0 %v2586
      %v4636 = vpop.f32.mrf.mxu0
      %v4637 = vadd.f32 %v4524, %v4636
      %v4638 = vpop.f32.mrf.mxu0
      %v4639 = vadd.f32 %v4526, %v4638
      %4640 = vmatmul.bf16.gmra.mxu0 %v2644
      %v4641 = vpop.f32.mrf.mxu0
      %v4642 = vadd.f32 %v4529, %v4641
      %v4643 = vpop.f32.mrf.mxu0
      %v4644 = vadd.f32 %v4531, %v4643
      %4645 = vmatmul.bf16.gmra.mxu0 %v2702
      %v4646 = vpop.f32.mrf.mxu0
      %v4647 = vadd.f32 %v4534, %v4646
      %v4648 = vpop.f32.mrf.mxu0
      %v4649 = vadd.f32 %v4536, %v4648
      %4650 = vmatmul.bf16.gmra.mxu0 %v2760
      %v4651 = vpop.f32.mrf.mxu0
      %v4652 = vadd.f32 %v4539, %v4651
      %v4653 = vpop.f32.mrf.mxu0
      %v4654 = vadd.f32 %v4541, %v4653
      %4655 = vmatmul.bf16.gmra.mxu0 %v2818
      %v4656 = vpop.f32.mrf.mxu0
      %v4657 = vadd.f32 %v4544, %v4656
      %v4658 = vpop.f32.mrf.mxu0
      %v4659 = vadd.f32 %v4546, %v4658
      %4660 = vmatmul.bf16.gmra.mxu0 %v2876
      %v4661 = vpop.f32.mrf.mxu0
      %v4662 = vadd.f32 %v4549, %v4661
      %v4663 = vpop.f32.mrf.mxu0
      %v4664 = vadd.f32 %v4551, %v4663
      %4665 = vmatmul.bf16.gmra.mxu0 %v2934
      %v4666 = vpop.f32.mrf.mxu0
      %v4667 = vadd.f32 %v4554, %v4666
      %v4668 = vpop.f32.mrf.mxu0
      %v4669 = vadd.f32 %v4556, %v4668
      %4670 = vmatmul.bf16.gmra.mxu0 %v2992
      %v4671 = vpop.f32.mrf.mxu0
      %v4672 = vadd.f32 %v4559, %v4671
      %v4673 = vpop.f32.mrf.mxu0
      %v4674 = vadd.f32 %v4561, %v4673
      %4675 = vmatmul.bf16.gmra.mxu0 %v3050
      %v4676 = vpop.f32.mrf.mxu0
      %v4677 = vadd.f32 %v4564, %v4676
      %v4678 = vpop.f32.mrf.mxu0
      %v4679 = vadd.f32 %v4566, %v4678
      %4680 = vmatmul.bf16.gmra.mxu0 %v3117
      %v4681 = vpop.f32.mrf.mxu0
      %v4682 = vadd.f32 %v4569, %v4681
      %v4683 = vpop.f32.mrf.mxu0
      %v4684 = vadd.f32 %v4571, %v4683
      %4685 = vmatmul.bf16.gmra.mxu0 %v3193
      %v4686 = vpop.f32.mrf.mxu0
      %v4687 = vadd.f32 %v4574, %v4686
      %v4688 = vpop.f32.mrf.mxu0
      %v4689 = vadd.f32 %v4576, %v4688
      %4690 = vmatmul.bf16.gmra.mxu0 %v3192
      %v4691 = vpop.f32.mrf.mxu0
      %v4692 = vadd.f32 %v4579, %v4691
      %v4693 = vpop.f32.mrf.mxu0
      %4694 = vdwg.mxu0
      %4695 = vmatpush.bf16.msra.mxu0 %v3718
      %4696 = vmatpush.bf16.msra.mxu0 %v3717
      %4697 = vmatpush.bf16.msra.mxu0 %v3716
      %4698 = vmatpush.bf16.msra.mxu0 %v3715
      %4699 = vmatpush.bf16.msra.mxu0 %v3714
      %4700 = vmatpush.bf16.msra.mxu0 %v3713
      %4701 = vmatpush.bf16.msra.mxu0 %v3712
      %4702 = vmatpush.bf16.msra.mxu0 %v3711
      %4703 = vmatmul.bf16.gmra.mxu0 %v2071
      %v4704 = vpop.f32.mrf.mxu0
      %v4705 = vadd.f32 %v4592, %v4704
      %v4706 = vpop.f32.mrf.mxu0
      %v4707 = vadd.f32 %v4594, %v4706
      %4708 = vmatmul.bf16.gmra.mxu0 %v2131
      %v4709 = vpop.f32.mrf.mxu0
      %v4710 = vadd.f32 %v4597, %v4709
      %v4711 = vpop.f32.mrf.mxu0
      %v4712 = vadd.f32 %v4599, %v4711
      %4713 = vmatmul.bf16.gmra.mxu0 %v2189
      %v4714 = vpop.f32.mrf.mxu0
      %v4715 = vadd.f32 %v4602, %v4714
      %v4716 = vpop.f32.mrf.mxu0
      %v4717 = vadd.f32 %v4604, %v4716
      %4718 = vmatmul.bf16.gmra.mxu0 %v2247
      %v4719 = vpop.f32.mrf.mxu0
      %v4720 = vadd.f32 %v4607, %v4719
      %v4721 = vpop.f32.mrf.mxu0
      %v4722 = vadd.f32 %v4609, %v4721
      %4723 = vmatmul.bf16.gmra.mxu0 %v2305
      %v4724 = vpop.f32.mrf.mxu0
      %v4725 = vadd.f32 %v4612, %v4724
      %v4726 = vpop.f32.mrf.mxu0
      %v4727 = vadd.f32 %v4614, %v4726
      %4728 = vmatmul.bf16.gmra.mxu0 %v2363
      %v4729 = vpop.f32.mrf.mxu0
      %v4730 = vadd.f32 %v4617, %v4729
      %v4731 = vpop.f32.mrf.mxu0
      %v4732 = vadd.f32 %v4619, %v4731
      %4733 = vmatmul.bf16.gmra.mxu0 %v2421
      %v4734 = vpop.f32.mrf.mxu0
      %v4735 = vadd.f32 %v4622, %v4734
      %v4736 = vpop.f32.mrf.mxu0
      %v4737 = vadd.f32 %v4624, %v4736
      %4738 = vmatmul.bf16.gmra.mxu0 %v2479
      %v4739 = vpop.f32.mrf.mxu0
      %v4740 = vadd.f32 %v4627, %v4739
      %v4741 = vpop.f32.mrf.mxu0
      %v4742 = vadd.f32 %v4629, %v4741
      %4743 = vmatmul.bf16.gmra.mxu0 %v2537
      %v4744 = vpop.f32.mrf.mxu0
      %v4745 = vadd.f32 %v4632, %v4744
      %v4746 = vpop.f32.mrf.mxu0
      %v4747 = vadd.f32 %v4634, %v4746
      %4748 = vmatmul.bf16.gmra.mxu0 %v2595
      %v4749 = vpop.f32.mrf.mxu0
      %v4750 = vadd.f32 %v4637, %v4749
      %v4751 = vpop.f32.mrf.mxu0
      %v4752 = vadd.f32 %v4639, %v4751
      %4753 = vmatmul.bf16.gmra.mxu0 %v2653
      %v4754 = vpop.f32.mrf.mxu0
      %v4755 = vadd.f32 %v4642, %v4754
      %v4756 = vpop.f32.mrf.mxu0
      %v4757 = vadd.f32 %v4644, %v4756
      %4758 = vmatmul.bf16.gmra.mxu0 %v2711
      %v4759 = vpop.f32.mrf.mxu0
      %v4760 = vadd.f32 %v4647, %v4759
      %v4761 = vpop.f32.mrf.mxu0
      %v4762 = vadd.f32 %v4649, %v4761
      %4763 = vmatmul.bf16.gmra.mxu0 %v2769
      %v4764 = vpop.f32.mrf.mxu0
      %v4765 = vadd.f32 %v4652, %v4764
      %v4766 = vpop.f32.mrf.mxu0
      %v4767 = vadd.f32 %v4654, %v4766
      %4768 = vmatmul.bf16.gmra.mxu0 %v2827
      %v4769 = vpop.f32.mrf.mxu0
      %v4770 = vadd.f32 %v4657, %v4769
      %v4771 = vpop.f32.mrf.mxu0
      %v4772 = vadd.f32 %v4659, %v4771
      %4773 = vmatmul.bf16.gmra.mxu0 %v2885
      %v4774 = vpop.f32.mrf.mxu0
      %v4775 = vadd.f32 %v4662, %v4774
      %v4776 = vpop.f32.mrf.mxu0
      %v4777 = vadd.f32 %v4664, %v4776
      %4778 = vmatmul.bf16.gmra.mxu0 %v2943
      %v4779 = vpop.f32.mrf.mxu0
      %v4780 = vadd.f32 %v4667, %v4779
      %v4781 = vpop.f32.mrf.mxu0
      %v4782 = vadd.f32 %v4669, %v4781
      %4783 = vmatmul.bf16.gmra.mxu0 %v3001
      %v4784 = vpop.f32.mrf.mxu0
      %v4785 = vadd.f32 %v4672, %v4784
      %v4786 = vpop.f32.mrf.mxu0
      %v4787 = vadd.f32 %v4674, %v4786
      %4788 = vmatmul.bf16.gmra.mxu0 %v3059
      %v4789 = vpop.f32.mrf.mxu0
      %v4790 = vadd.f32 %v4677, %v4789
      %v4791 = vpop.f32.mrf.mxu0
      %v4792 = vadd.f32 %v4679, %v4791
      %4793 = vmatmul.bf16.gmra.mxu0 %v3126
      %v4794 = vpop.f32.mrf.mxu0
      %v4795 = vadd.f32 %v4682, %v4794
      %v4796 = vpop.f32.mrf.mxu0
      %v4797 = vadd.f32 %v4684, %v4796
      %4798 = vmatmul.bf16.gmra.mxu0 %v3202
      %v4799 = vpop.f32.mrf.mxu0
      %v4800 = vadd.f32 %v4687, %v4799
      %v4801 = vpop.f32.mrf.mxu0
      %v4802 = vadd.f32 %v4689, %v4801
      %4803 = vmatmul.bf16.gmra.mxu0 %v3201
      %v4804 = vpop.f32.mrf.mxu0
      %v4805 = vadd.f32 %v4692, %v4804
      %v4806 = vpop.f32.mrf.mxu0
      %4807 = vdwg.mxu0
      %v4808 = vmax.f32 %v4705, 0.0
      %v4809 = vmax.f32 %v4707, 0.0
      %v4810 = vmax.f32 %v4710, 0.0
      %v4811 = vmax.f32 %v4712, 0.0
      %v4812 = vmax.f32 %v4715, 0.0
      %v4813 = vmax.f32 %v4717, 0.0
      %v4814 = vmax.f32 %v4720, 0.0
      %v4815 = vmax.f32 %v4722, 0.0
      %v4816 = vmax.f32 %v4725, 0.0
      %v4817 = vmax.f32 %v4727, 0.0
      %v4818 = vmax.f32 %v4730, 0.0
      %v4819 = vmax.f32 %v4732, 0.0
      %v4820 = vmax.f32 %v4735, 0.0
      %v4821 = vmax.f32 %v4737, 0.0
      %v4822 = vmax.f32 %v4740, 0.0
      %v4823 = vmax.f32 %v4742, 0.0
      %v4824 = vmax.f32 %v4745, 0.0
      %v4825 = vmax.f32 %v4747, 0.0
      %v4826 = vmax.f32 %v4750, 0.0
      %v4827 = vmax.f32 %v4752, 0.0
      %v4828 = vmax.f32 %v4755, 0.0
      %v4829 = vmax.f32 %v4757, 0.0
      %v4830 = vmax.f32 %v4760, 0.0
      %v4831 = vmax.f32 %v4762, 0.0
      %v4832 = vmax.f32 %v4765, 0.0
      %v4833 = vmax.f32 %v4767, 0.0
      %v4834 = vmax.f32 %v4770, 0.0
      %v4835 = vmax.f32 %v4772, 0.0
      %v4836 = vmax.f32 %v4775, 0.0
      %v4837 = vmax.f32 %v4777, 0.0
      %v4838 = vmax.f32 %v4780, 0.0
      %v4839 = vmax.f32 %v4782, 0.0
      %v4840 = vmax.f32 %v4785, 0.0
      %v4841 = vmax.f32 %v4787, 0.0
      %v4842 = vmax.f32 %v4790, 0.0
      %v4843 = vmax.f32 %v4792, 0.0
      %v4844 = vmax.f32 %v4795, 0.0
      %v4845 = vmax.f32 %v4797, 0.0
      %v4846 = vmax.f32 %v4800, 0.0
      %v4847 = vmax.f32 %v4802, 0.0
      %v4848 = vmax.f32 %v4805, 0.0
      %v4849 = vpack.c.bf16 %v4809, %v4808
      %v4850 = vpack.c.bf16 %v4811, %v4810
      %v4851 = vpack.c.bf16 %v4813, %v4812
      %v4852 = vpack.c.bf16 %v4815, %v4814
      %v4853 = vpack.c.bf16 %v4817, %v4816
      %v4854 = vpack.c.bf16 %v4819, %v4818
      %v4855 = vpack.c.bf16 %v4821, %v4820
      %v4856 = vpack.c.bf16 %v4823, %v4822
      %v4857 = vpack.c.bf16 %v4825, %v4824
      %v4858 = vpack.c.bf16 %v4827, %v4826
      %v4859 = vpack.c.bf16 %v4829, %v4828
      %v4860 = vpack.c.bf16 %v4831, %v4830
      %v4861 = vpack.c.bf16 %v4833, %v4832
      %v4862 = vpack.c.bf16 %v4835, %v4834
      %v4863 = vpack.c.bf16 %v4837, %v4836
      %v4864 = vpack.c.bf16 %v4839, %v4838
      %v4865 = vpack.c.bf16 %v4841, %v4840
      %v4866 = vpack.c.bf16 %v4843, %v4842
      %v4867 = vpack.c.bf16 %v4845, %v4844
      %v4868 = vpack.c.bf16 %v4847, %v4846
      %v4869 = vpack.c.bf16 %v4848, %v4848
      %v4870 = vld [vmem:[%s6] sm:$0xf]
      %v4871 = vld [vmem:[%s6 + $0x4] sm:$0xf]
      %v4872 = vld [vmem:[%s6 + $0x8] sm:$0xf]
      %v4873 = vld [vmem:[%s6 + $0xc] sm:$0xf]
      %v4874 = vld [vmem:[%s6 + $0x10] sm:$0xf]
      %v4875 = vld [vmem:[%s6 + $0x14] sm:$0xf]
      %v4876 = vld [vmem:[%s6 + $0x18] sm:$0xf]
      %v4877 = vld [vmem:[%s6 + $0x1c] sm:$0xf]
      %v4878 = vld [vmem:[%s6 + $0x20] sm:$0xf]
      %v4879 = vld [vmem:[%s6 + $0x24] sm:$0xf]
      %v4880 = vld [vmem:[%s6 + $0x28] sm:$0xf]
      %v4881 = vld [vmem:[%s6 + $0x2c] sm:$0xf]
      %v4882 = vld [vmem:[%s6 + $0x30] sm:$0xf]
      %v4883 = vld [vmem:[%s6 + $0x34] sm:$0xf]
      %v4884 = vld [vmem:[%s6 + $0x38] sm:$0xf]
      %v4885 = vld [vmem:[%s6 + $0x3c] sm:$0xf]
      %v4886 = vld [vmem:[%s7] sm:$0x1]
      %v4888 = vperm.slane %v4886, 0
      %v4906 = vunpack.c.l.b16 %v4870
      %v4907 = vunpack.c.l.b16 %v4871
      %v4908 = vunpack.c.l.b16 %v4872
      %v4909 = vunpack.c.l.b16 %v4873
      %v4910 = vunpack.c.l.b16 %v4874
      %v4911 = vunpack.c.l.b16 %v4875
      %v4912 = vunpack.c.l.b16 %v4876
      %v4913 = vunpack.c.l.b16 %v4877
      %v4914 = vunpack.c.l.b16 %v4878
      %v4915 = vunpack.c.l.b16 %v4879
      %v4916 = vunpack.c.l.b16 %v4880
      %v4917 = vunpack.c.l.b16 %v4881
      %v4918 = vunpack.c.l.b16 %v4882
      %v4919 = vunpack.c.l.b16 %v4883
      %v4920 = vunpack.c.l.b16 %v4884
      %v4921 = vunpack.c.l.b16 %v4885
      %v4922 = vpack.c.b16 %v4907, %v4906
      %v4923 = vpack.c.b16 %v4909, %v4908
      %v4924 = vpack.c.b16 %v4911, %v4910
      %v4925 = vpack.c.b16 %v4913, %v4912
      %v4926 = vpack.c.b16 %v4915, %v4914
      %v4927 = vpack.c.b16 %v4917, %v4916
      %v4928 = vpack.c.b16 %v4919, %v4918
      %v4929 = vpack.c.b16 %v4921, %v4920
      %4938 = vmatpush.bf16.msra.mxu0 %v4929
      %4939 = vmatpush.bf16.msra.mxu0 %v4928
      %4940 = vmatpush.bf16.msra.mxu0 %v4927
      %4941 = vmatpush.bf16.msra.mxu0 %v4926
      %4942 = vmatpush.bf16.msra.mxu0 %v4925
      %4943 = vmatpush.bf16.msra.mxu0 %v4924
      %4944 = vmatpush.bf16.msra.mxu0 %v4923
      %4945 = vmatpush.bf16.msra.mxu0 %v4922
      %4946 = vmatmul.bf16.gmra.mxu0 %v4849
      %v4947 = vpop.f32.mrf.mxu0
      %v4948 = vadd.f32 %v4888, %v4947
      %v4949 = vpop.f32.mrf.mxu0
      %v4950 = vadd.f32 %v4888, %v4949
      %4951 = vmatmul.bf16.gmra.mxu0 %v4850
      %v4952 = vpop.f32.mrf.mxu0
      %v4953 = vadd.f32 %v4888, %v4952
      %v4954 = vpop.f32.mrf.mxu0
      %v4955 = vadd.f32 %v4888, %v4954
      %4956 = vmatmul.bf16.gmra.mxu0 %v4851
      %v4957 = vpop.f32.mrf.mxu0
      %v4958 = vadd.f32 %v4888, %v4957
      %v4959 = vpop.f32.mrf.mxu0
      %v4960 = vadd.f32 %v4888, %v4959
      %4961 = vmatmul.bf16.gmra.mxu0 %v4852
      %v4962 = vpop.f32.mrf.mxu0
      %v4963 = vadd.f32 %v4888, %v4962
      %v4964 = vpop.f32.mrf.mxu0
      %v4965 = vadd.f32 %v4888, %v4964
      %4966 = vmatmul.bf16.gmra.mxu0 %v4853
      %v4967 = vpop.f32.mrf.mxu0
      %v4968 = vadd.f32 %v4888, %v4967
      %v4969 = vpop.f32.mrf.mxu0
      %v4970 = vadd.f32 %v4888, %v4969
      %4971 = vmatmul.bf16.gmra.mxu0 %v4854
      %v4972 = vpop.f32.mrf.mxu0
      %v4973 = vadd.f32 %v4888, %v4972
      %v4974 = vpop.f32.mrf.mxu0
      %v4975 = vadd.f32 %v4888, %v4974
      %4976 = vmatmul.bf16.gmra.mxu0 %v4855
      %v4977 = vpop.f32.mrf.mxu0
      %v4978 = vadd.f32 %v4888, %v4977
      %v4979 = vpop.f32.mrf.mxu0
      %v4980 = vadd.f32 %v4888, %v4979
      %4981 = vmatmul.bf16.gmra.mxu0 %v4856
      %v4982 = vpop.f32.mrf.mxu0
      %v4983 = vadd.f32 %v4888, %v4982
      %v4984 = vpop.f32.mrf.mxu0
      %v4985 = vadd.f32 %v4888, %v4984
      %4986 = vmatmul.bf16.gmra.mxu0 %v4857
      %v4987 = vpop.f32.mrf.mxu0
      %v4988 = vadd.f32 %v4888, %v4987
      %v4989 = vpop.f32.mrf.mxu0
      %v4990 = vadd.f32 %v4888, %v4989
      %4991 = vmatmul.bf16.gmra.mxu0 %v4858
      %v4992 = vpop.f32.mrf.mxu0
      %v4993 = vadd.f32 %v4888, %v4992
      %v4994 = vpop.f32.mrf.mxu0
      %v4995 = vadd.f32 %v4888, %v4994
      %4996 = vmatmul.bf16.gmra.mxu0 %v4859
      %v4997 = vpop.f32.mrf.mxu0
      %v4998 = vadd.f32 %v4888, %v4997
      %v4999 = vpop.f32.mrf.mxu0
      %v5000 = vadd.f32 %v4888, %v4999
      %5001 = vmatmul.bf16.gmra.mxu0 %v4860
      %v5002 = vpop.f32.mrf.mxu0
      %v5003 = vadd.f32 %v4888, %v5002
      %v5004 = vpop.f32.mrf.mxu0
      %v5005 = vadd.f32 %v4888, %v5004
      %5006 = vmatmul.bf16.gmra.mxu0 %v4861
      %v5007 = vpop.f32.mrf.mxu0
      %v5008 = vadd.f32 %v4888, %v5007
      %v5009 = vpop.f32.mrf.mxu0
      %v5010 = vadd.f32 %v4888, %v5009
      %5011 = vmatmul.bf16.gmra.mxu0 %v4862
      %v5012 = vpop.f32.mrf.mxu0
      %v5013 = vadd.f32 %v4888, %v5012
      %v5014 = vpop.f32.mrf.mxu0
      %v5015 = vadd.f32 %v4888, %v5014
      %5016 = vmatmul.bf16.gmra.mxu0 %v4863
      %v5017 = vpop.f32.mrf.mxu0
      %v5018 = vadd.f32 %v4888, %v5017
      %v5019 = vpop.f32.mrf.mxu0
      %v5020 = vadd.f32 %v4888, %v5019
      %5021 = vmatmul.bf16.gmra.mxu0 %v4864
      %v5022 = vpop.f32.mrf.mxu0
      %v5023 = vadd.f32 %v4888, %v5022
      %v5024 = vpop.f32.mrf.mxu0
      %v5025 = vadd.f32 %v4888, %v5024
      %5026 = vmatmul.bf16.gmra.mxu0 %v4865
      %v5027 = vpop.f32.mrf.mxu0
      %v5028 = vadd.f32 %v4888, %v5027
      %v5029 = vpop.f32.mrf.mxu0
      %v5030 = vadd.f32 %v4888, %v5029
      %5031 = vmatmul.bf16.gmra.mxu0 %v4866
      %v5032 = vpop.f32.mrf.mxu0
      %v5033 = vadd.f32 %v4888, %v5032
      %v5034 = vpop.f32.mrf.mxu0
      %v5035 = vadd.f32 %v4888, %v5034
      %5036 = vmatmul.bf16.gmra.mxu0 %v4867
      %v5037 = vpop.f32.mrf.mxu0
      %v5038 = vadd.f32 %v4888, %v5037
      %v5039 = vpop.f32.mrf.mxu0
      %v5040 = vadd.f32 %v4888, %v5039
      %5041 = vmatmul.bf16.gmra.mxu0 %v4868
      %v5042 = vpop.f32.mrf.mxu0
      %v5043 = vadd.f32 %v4888, %v5042
      %v5044 = vpop.f32.mrf.mxu0
      %v5045 = vadd.f32 %v4888, %v5044
      %5046 = vmatmul.bf16.gmra.mxu0 %v4869
      %v5047 = vpop.f32.mrf.mxu0
      %v5048 = vadd.f32 %v4888, %v5047
      %v5049 = vpop.f32.mrf.mxu0
      %5050 = vdwg.mxu0
      %v5051 = vld [vmem:[%s300] sm:$0xff]
      %v5052 = vld [vmem:[%s300 + $0x8] sm:$0xff]
      %v5053 = vld [vmem:[%s300 + $0x10] sm:$0xff]
      %v5054 = vld [vmem:[%s300 + $0x18] sm:$0xff]
      %v5055 = vld [vmem:[%s300 + $0x20] sm:$0xff]
      %v5056 = vld [vmem:[%s300 + $0x28] sm:$0xff]
      %v5057 = vld [vmem:[%s300 + $0x30] sm:$0xff]
      %v5058 = vld [vmem:[%s300 + $0x38] sm:$0xff]
      %v5059 = vld [vmem:[%s300 + $0x40] sm:$0xff]
      %v5060 = vld [vmem:[%s300 + $0x48] sm:$0xff]
      %v5061 = vld [vmem:[%s300 + $0x50] sm:$0xff]
      %v5062 = vld [vmem:[%s300 + $0x58] sm:$0xff]
      %v5063 = vld [vmem:[%s300 + $0x60] sm:$0xff]
      %v5064 = vld [vmem:[%s300 + $0x68] sm:$0xff]
      %v5065 = vld [vmem:[%s300 + $0x70] sm:$0xff]
      %v5066 = vld [vmem:[%s300 + $0x78] sm:$0xff]
      %v5067 = vld [vmem:[%s300 + $0x80] sm:$0xff]
      %v5068 = vld [vmem:[%s300 + $0x88] sm:$0xff]
      %v5069 = vld [vmem:[%s300 + $0x90] sm:$0xff]
      %v5070 = vld [vmem:[%s300 + $0x98] sm:$0xff]
      %v5071 = vld [vmem:[%s300 + $0xa0] sm:$0xff]
      %v5072 = vld [vmem:[%s300 + $0xa8] sm:$0xff]
      %v5073 = vld [vmem:[%s300 + $0xb0] sm:$0xff]
      %v5074 = vld [vmem:[%s300 + $0xb8] sm:$0xff]
      %v5075 = vld [vmem:[%s300 + $0xc0] sm:$0xff]
      %v5076 = vld [vmem:[%s300 + $0xc8] sm:$0xff]
      %v5077 = vld [vmem:[%s300 + $0xd0] sm:$0xff]
      %v5078 = vld [vmem:[%s300 + $0xd8] sm:$0xff]
      %v5079 = vld [vmem:[%s300 + $0xe0] sm:$0xff]
      %v5080 = vld [vmem:[%s300 + $0xe8] sm:$0xff]
      %v5081 = vld [vmem:[%s300 + $0xf0] sm:$0xff]
      %v5082 = vld [vmem:[%s300 + $0xf8] sm:$0xff]
      %v5083 = vld [vmem:[%s300 + $0x100] sm:$0xff]
      %v5084 = vld [vmem:[%s300 + $0x108] sm:$0xff]
      %v5085 = vld [vmem:[%s300 + $0x110] sm:$0xff]
      %v5086 = vld [vmem:[%s300 + $0x118] sm:$0xff]
      %v5087 = vld [vmem:[%s300 + $0x120] sm:$0xff]
      %v5088 = vld [vmem:[%s300 + $0x128] sm:$0xff]
      %v5089 = vld [vmem:[%s300 + $0x130] sm:$0xff]
      %v5090 = vld [vmem:[%s300 + $0x138] sm:$0xff]
      %v5091 = vld [vmem:[%s300 + $0x140] sm:$0xf]
      %v5092 = vadd.f32 %v4948, %v5051
      %v5093 = vadd.f32 %v4950, %v5052
      %v5094 = vadd.f32 %v4953, %v5053
      %v5095 = vadd.f32 %v4955, %v5054
      %v5096 = vadd.f32 %v4958, %v5055
      %v5097 = vadd.f32 %v4960, %v5056
      %v5098 = vadd.f32 %v4963, %v5057
      %v5099 = vadd.f32 %v4965, %v5058
      %v5100 = vadd.f32 %v4968, %v5059
      %v5101 = vadd.f32 %v4970, %v5060
      %v5102 = vadd.f32 %v4973, %v5061
      %v5103 = vadd.f32 %v4975, %v5062
      %v5104 = vadd.f32 %v4978, %v5063
      %v5105 = vadd.f32 %v4980, %v5064
      %v5106 = vadd.f32 %v4983, %v5065
      %v5107 = vadd.f32 %v4985, %v5066
      %v5108 = vadd.f32 %v4988, %v5067
      %v5109 = vadd.f32 %v4990, %v5068
      %v5110 = vadd.f32 %v4993, %v5069
      %v5111 = vadd.f32 %v4995, %v5070
      %v5112 = vadd.f32 %v4998, %v5071
      %v5113 = vadd.f32 %v5000, %v5072
      %v5114 = vadd.f32 %v5003, %v5073
      %v5115 = vadd.f32 %v5005, %v5074
      %v5116 = vadd.f32 %v5008, %v5075
      %v5117 = vadd.f32 %v5010, %v5076
      %v5118 = vadd.f32 %v5013, %v5077
      %v5119 = vadd.f32 %v5015, %v5078
      %v5120 = vadd.f32 %v5018, %v5079
      %v5121 = vadd.f32 %v5020, %v5080
      %v5122 = vadd.f32 %v5023, %v5081
      %v5123 = vadd.f32 %v5025, %v5082
      %v5124 = vadd.f32 %v5028, %v5083
      %v5125 = vadd.f32 %v5030, %v5084
      %v5126 = vadd.f32 %v5033, %v5085
      %v5127 = vadd.f32 %v5035, %v5086
      %v5128 = vadd.f32 %v5038, %v5087
      %v5129 = vadd.f32 %v5040, %v5088
      %v5130 = vadd.f32 %v5043, %v5089
      %v5131 = vadd.f32 %v5045, %v5090
      %v5132 = vadd.f32 %v5048, %v5091
      %v5133 = vmax.f32 %v5092, 0.0
      %v5134 = vmax.f32 %v5093, 0.0
      %v5135 = vmax.f32 %v5094, 0.0
      %v5136 = vmax.f32 %v5095, 0.0
      %v5137 = vmax.f32 %v5096, 0.0
      %v5138 = vmax.f32 %v5097, 0.0
      %v5139 = vmax.f32 %v5098, 0.0
      %v5140 = vmax.f32 %v5099, 0.0
      %v5141 = vmax.f32 %v5100, 0.0
      %v5142 = vmax.f32 %v5101, 0.0
      %v5143 = vmax.f32 %v5102, 0.0
      %v5144 = vmax.f32 %v5103, 0.0
      %v5145 = vmax.f32 %v5104, 0.0
      %v5146 = vmax.f32 %v5105, 0.0
      %v5147 = vmax.f32 %v5106, 0.0
      %v5148 = vmax.f32 %v5107, 0.0
      %v5149 = vmax.f32 %v5108, 0.0
      %v5150 = vmax.f32 %v5109, 0.0
      %v5151 = vmax.f32 %v5110, 0.0
      %v5152 = vmax.f32 %v5111, 0.0
      %v5153 = vmax.f32 %v5112, 0.0
      %v5154 = vmax.f32 %v5113, 0.0
      %v5155 = vmax.f32 %v5114, 0.0
      %v5156 = vmax.f32 %v5115, 0.0
      %v5157 = vmax.f32 %v5116, 0.0
      %v5158 = vmax.f32 %v5117, 0.0
      %v5159 = vmax.f32 %v5118, 0.0
      %v5160 = vmax.f32 %v5119, 0.0
      %v5161 = vmax.f32 %v5120, 0.0
      %v5162 = vmax.f32 %v5121, 0.0
      %v5163 = vmax.f32 %v5122, 0.0
      %v5164 = vmax.f32 %v5123, 0.0
      %v5165 = vmax.f32 %v5124, 0.0
      %v5166 = vmax.f32 %v5125, 0.0
      %v5167 = vmax.f32 %v5126, 0.0
      %v5168 = vmax.f32 %v5127, 0.0
      %v5169 = vmax.f32 %v5128, 0.0
      %v5170 = vmax.f32 %v5129, 0.0
      %v5171 = vmax.f32 %v5130, 0.0
      %v5172 = vmax.f32 %v5131, 0.0
      %v5173 = vmax.f32 %v5132, 0.0
      %5174 = vst [vmem:[%s305] sm:$0xff] %v5133
      %5175 = vst [vmem:[%s305 + $0x8] sm:$0xff] %v5134
      %5176 = vst [vmem:[%s305 + $0x10] sm:$0xff] %v5135
      %5177 = vst [vmem:[%s305 + $0x18] sm:$0xff] %v5136
      %5178 = vst [vmem:[%s305 + $0x20] sm:$0xff] %v5137
      %5179 = vst [vmem:[%s305 + $0x28] sm:$0xff] %v5138
      %5180 = vst [vmem:[%s305 + $0x30] sm:$0xff] %v5139
      %5181 = vst [vmem:[%s305 + $0x38] sm:$0xff] %v5140
      %5182 = vst [vmem:[%s305 + $0x40] sm:$0xff] %v5141
      %5183 = vst [vmem:[%s305 + $0x48] sm:$0xff] %v5142
      %5184 = vst [vmem:[%s305 + $0x50] sm:$0xff] %v5143
      %5185 = vst [vmem:[%s305 + $0x58] sm:$0xff] %v5144
      %5186 = vst [vmem:[%s305 + $0x60] sm:$0xff] %v5145
      %5187 = vst [vmem:[%s305 + $0x68] sm:$0xff] %v5146
      %5188 = vst [vmem:[%s305 + $0x70] sm:$0xff] %v5147
      %5189 = vst [vmem:[%s305 + $0x78] sm:$0xff] %v5148
      %5190 = vst [vmem:[%s305 + $0x80] sm:$0xff] %v5149
      %5191 = vst [vmem:[%s305 + $0x88] sm:$0xff] %v5150
      %5192 = vst [vmem:[%s305 + $0x90] sm:$0xff] %v5151
      %5193 = vst [vmem:[%s305 + $0x98] sm:$0xff] %v5152
      %5194 = vst [vmem:[%s305 + $0xa0] sm:$0xff] %v5153
      %5195 = vst [vmem:[%s305 + $0xa8] sm:$0xff] %v5154
      %5196 = vst [vmem:[%s305 + $0xb0] sm:$0xff] %v5155
      %5197 = vst [vmem:[%s305 + $0xb8] sm:$0xff] %v5156
      %5198 = vst [vmem:[%s305 + $0xc0] sm:$0xff] %v5157
      %5199 = vst [vmem:[%s305 + $0xc8] sm:$0xff] %v5158
      %5200 = vst [vmem:[%s305 + $0xd0] sm:$0xff] %v5159
      %5201 = vst [vmem:[%s305 + $0xd8] sm:$0xff] %v5160
      %5202 = vst [vmem:[%s305 + $0xe0] sm:$0xff] %v5161
      %5203 = vst [vmem:[%s305 + $0xe8] sm:$0xff] %v5162
      %5204 = vst [vmem:[%s305 + $0xf0] sm:$0xff] %v5163
      %5205 = vst [vmem:[%s305 + $0xf8] sm:$0xff] %v5164
      %5206 = vst [vmem:[%s305 + $0x100] sm:$0xff] %v5165
      %5207 = vst [vmem:[%s305 + $0x108] sm:$0xff] %v5166
      %5208 = vst [vmem:[%s305 + $0x110] sm:$0xff] %v5167
      %5209 = vst [vmem:[%s305 + $0x118] sm:$0xff] %v5168
      %5210 = vst [vmem:[%s305 + $0x120] sm:$0xff] %v5169
      %5211 = vst [vmem:[%s305 + $0x128] sm:$0xff] %v5170
      %5212 = vst [vmem:[%s305 + $0x130] sm:$0xff] %v5171
      %5213 = vst [vmem:[%s305 + $0x138] sm:$0xff] %v5172
      %5214 = vst [vmem:[%s305 + $0x140] sm:$0xf] %v5173
      %p5215 = scmp.lt.s32.totalorder %s19, 1
      %s5216 = scalar_select %p5215, %s19, 1
      %s5217 = smul.addr %s5216, 41
      %s5218 = smul.addr %s5217, 8
      %s5219 = scalar_lea.vmem %s8, %s5218
      // Predicated region
      $region53: #{tpu_custom_call.1} parent=51 // pred_check
        %p5220 = pneg %p210
      $region54: #{tpu_custom_call.1} parent=51 // pred_check_branch
        %5222 = sbr.rel (%p5220) target = $region56
      $region55: #{tpu_custom_call.1} parent=51 // pred_region
        _
      $region56: #{tpu_custom_call.1} parent=51 // pred_fallthru
        _
    $region52: #{tpu_custom_call.1} parent=5 // pred_fallthru
      _
    %p5223 = scmp.le.s32.totalorder 2, %s14
    // Predicated region
    $region57: #{tpu_custom_call.1} parent=5 // pred_check
      %p5224 = pneg %p5223
    $region58: #{tpu_custom_call.1} parent=5 // pred_check_branch
      %5226 = sbr.rel (%p5224) target = $region60
    $region59: #{tpu_custom_call.1} parent=5 // pred_region
      %s5227 = ssub.s32 %s14, 2
      // Predicated region
      $region61: #{tpu_custom_call.1} parent=59 // pred_check
        %p5228 = pneg %p216
      $region62: #{tpu_custom_call.1} parent=59 // pred_check_branch
        %5230 = sbr.rel (%p5228) target = $region64
      $region63: #{tpu_custom_call.1} parent=59 // pred_region
        %p5231 = scmp.lt.s32.totalorder %s20, 1
        %s5232 = scalar_select %p5231, %s20, 1
        %s5233 = smul.addr %s5232, 41
        %s5234 = smul.addr %s5233, 8
        %s5235 = scalar_lea.vmem %s8, %s5234
      $region64: #{tpu_custom_call.1} parent=59 // pred_fallthru
        _
    $region60: #{tpu_custom_call.1} parent=5 // pred_fallthru
      _
  $region6: #{tpu_custom_call.1} parent=0 // loop_footer
    %s18 = sadd.s32 1, %s14
  $region7: #{tpu_custom_call.1} parent=0 // loop_footer_branch
    %13 = sbr.rel target = $region3
  $region8: #{tpu_custom_call.1} parent=0 // loop_exit
    _

</llo_original>
